<compile_context>
chip_gen: v5e
topology: v5e:2x2
jax: 0.10.0
libtpu: 0.0.40
codegen_flags: <defaults>
</compile_context>

<pallas_src>
import functools

import jax
import jax.numpy as jnp
import numpy as np
from jax import lax
from jax.experimental import pallas as pl
from jax.experimental.pallas import tpu as pltpu

EPS = 1e-5
LANE = 128


# --------------------------------------------------------------------------- kernel math
def _bn_train(y, gamma, beta):
    """Training-mode BatchNorm (biased var, eps=1e-5) over rows; f32 math.

    y: (M, C) f32, gamma/beta: (1, C) f32.  Padded channels (gamma=beta=0) stay exactly 0.
    """
    m = y.shape[0]
    mean = jnp.sum(y, axis=0, keepdims=True) * (1.0 / m)
    d = y - mean
    var = jnp.sum(d * d, axis=0, keepdims=True) * (1.0 / m)
    scale = lax.rsqrt(var + EPS) * gamma          # per-channel scalars hoisted
    return d * scale + beta


def _make_kernel(*, use_downsample, stride, n_img, ho, wo, cp):
    """Fused bottleneck kernel.  Input rows are phase-major: (ry, rx, n, oy, ox)."""
    hs, ws = ho, wo
    m_out = n_img * ho * wo
    n_phase = stride * stride

    def kernel(*refs):
        if use_downsample:
            (x_ref, w1_ref, w2_ref, w3_ref, wd_ref, gam_ref, bet_ref,
             o_ref, y1s_ref) = refs
        else:
            (x_ref, w1_ref, w2_ref, w3_ref, gam_ref, bet_ref,
             o_ref, y1s_ref) = refs
        f32, bf16 = jnp.float32, jnp.bfloat16

        # ---- conv1 (1x1) + bn1 + relu  (order of rows is irrelevant for pointwise ops)
        xb = x_ref[...].astype(bf16)
        y1 = jnp.dot(xb, w1_ref[...], preferred_element_type=f32)
        y1 = jnp.maximum(_bn_train(y1, gam_ref[0:1, :], bet_ref[0:1, :]), 0.0)

        # ---- stage y1 into a spatially zero-padded VMEM scratch:
        #      (phase*N, Hs+2, Ws+2, Cp); borders are zero => pad=1 handled for free.
        y1s_ref[...] = jnp.zeros(y1s_ref.shape, f32)
        y1s_ref[:, 1:hs + 1, 1:ws + 1, :] = y1.reshape(n_phase * n_img, hs, ws, cp)

        # ---- conv2 (3x3, pad=1, stride=s) as 9 shifted-window tap matmuls.
        #      Tap (ky,kx): input row s*oy + ky - 1 = s*(oy + qy) + ry  with
        #      (qy, ry) = divmod(ky-1, s)  => phase (ry,rx) slab shifted by (qy,qx).
        acc = jnp.zeros((m_out, cp), f32)
        for ky in range(3):
            qy, ry = divmod(ky - 1, stride)
            for kx in range(3):
                qx, rx = divmod(kx - 1, stride)
                base = (ry * stride + rx) * n_img
                win = y1s_ref[base:base + n_img,
                              1 + qy:1 + qy + hs,
                              1 + qx:1 + qx + ws, :]
                shifted = win.reshape(m_out, cp).astype(bf16)
                acc = acc + jnp.dot(shifted, w2_ref[ky * 3 + kx],
                                    preferred_element_type=f32)
        y2 = jnp.maximum(_bn_train(acc, gam_ref[1:2, :], bet_ref[1:2, :]), 0.0)

        # ---- conv3 (1x1) + bn3
        y3 = jnp.dot(y2.astype(bf16), w3_ref[...], preferred_element_type=f32)
        y3 = _bn_train(y3, gam_ref[2:3, :], bet_ref[2:3, :])

        # ---- identity branch
        if use_downsample:
            # phase-(0,0) rows of the rearranged input == x[:, ::s, ::s, :]
            xs = x_ref[0:m_out, :].astype(bf16)
            ident = jnp.dot(xs, wd_ref[...], preferred_element_type=f32)
            ident = _bn_train(ident, gam_ref[3:4, :], bet_ref[3:4, :])
        else:
            ident = x_ref[...]                      # (m_out, cp) f32, exact residual

        o_ref[...] = jnp.maximum(y3 + ident, 0.0).astype(o_ref.dtype)

    return kernel


# ------------------------------------------------------------------------------- wrapper
def bottleneck_forward(x_nchw, p, *, use_downsample: bool, stride: int):
    """Pallas implementation of Bottleneck.forward (NCHW in / NCHW out)."""
    x = jnp.transpose(x_nchw, (0, 2, 3, 1)).astype(jnp.float32)   # NCHW -> NHWC
    n, h, w, cin = x.shape
    mid = p["w1"].shape[1]
    cout = p["w3"].shape[1]
    if not use_downsample:
        assert stride == 1 and cin == cout, (
            "identity path requires stride == 1 and inplane == 4 * mid_plane")
    assert h % stride == 0 and w % stride == 0, "spatial dims must divide the stride"
    # TODO(synk): non-divisible spatial sizes need one extra zero phase row/col.

    cp = ((max(mid, cout) + LANE - 1) // LANE) * LANE             # lane-dense channel pad
    ho, wo = h // stride, w // stride
    m_out = n * ho * wo
    n_phase = stride * stride
    m_in = n_phase * m_out                                        # == n*h*w

    bf16, f32 = jnp.bfloat16, jnp.float32

    # ---- activations --------------------------------------------------------
    if use_downsample:
        # Phase-major rearrangement: rows ordered (ry, rx, n, oy, ox).  Phase (0,0)
        # is x[:, ::s, ::s, :] (identity-branch input); strided conv2 taps become
        # unit window offsets per phase slab.  Channels stay at true Cin (no HBM pad).
        xr = x.reshape(n, ho, stride, wo, stride, cin)
        xf = jnp.transpose(xr, (2, 4, 0, 1, 3, 5)).reshape(m_in, cin)
        x_cols = cin
    else:
        # Identity path: pad channels to Cp so the residual add is a plain lane-dense
        # add (Cin == Cout is already a multiple of 128 at real ResNet sizes).
        xf = jnp.pad(x.reshape(m_in, cin), ((0, 0), (0, cp - cin)))
        x_cols = cp

    # ---- weights / BN params (padded to lane-dense Cp; padded channels stay 0) ----
    w1p = jnp.pad(p["w1"], ((0, x_cols - cin), (0, cp - mid))).astype(bf16)
    w2p = jnp.pad(p["w2"].reshape(9, mid, mid),
                  ((0, 0), (0, cp - mid), (0, cp - mid))).astype(bf16)
    w3p = jnp.pad(p["w3"], ((0, cp - mid), (0, cp - cout))).astype(bf16)

    def padv(v):
        return jnp.pad(v.astype(f32), (0, cp - v.shape[0]))

    if use_downsample:
        wdp = jnp.pad(p["wd"], ((0, 0), (0, cp - cout))).astype(bf16)
        gd, bd = padv(p["gd"]), padv(p["bd"])
    else:
        gd = bd = jnp.zeros((cp,), f32)
    gam = jnp.stack([padv(p["g1"]), padv(p["g2"]), padv(p["g3"]), gd])
    bet = jnp.stack([padv(p["b1"]), padv(p["b2"]), padv(p["b3"]), bd])

    args = [xf, w1p, w2p, w3p]
    if use_downsample:
        args.append(wdp)
    args += [gam, bet]

    in_specs = [pl.BlockSpec(a.shape, lambda i, _r=a.ndim: (0,) * _r) for a in args]
    out_spec = pl.BlockSpec((m_out, cp), lambda i: (0, 0))

    flops = 2 * m_in * x_cols * cp                                # conv1
    flops += 9 * 2 * m_out * cp * cp                              # conv2 tap matmuls
    flops += 2 * m_out * cp * cp                                  # conv3
    if use_downsample:
        flops += 2 * m_out * cin * cp                             # downsample 1x1
    bytes_accessed = sum(int(a.size) * a.dtype.itemsize for a in args) + m_out * cp * 4

    y = pl.pallas_call(
        _make_kernel(use_downsample=use_downsample, stride=stride,
                     n_img=n, ho=ho, wo=wo, cp=cp),
        grid=(1,),
        in_specs=in_specs,
        out_specs=out_spec,
        out_shape=jax.ShapeDtypeStruct((m_out, cp), f32),
        scratch_shapes=[pltpu.VMEM((n_phase * n, ho + 2, wo + 2, cp), f32)],
        compiler_params=pltpu.CompilerParams(
            dimension_semantics=("arbitrary",)),
        cost_estimate=pl.CostEstimate(flops=int(flops), transcendentals=4 * cp,
                                      bytes_accessed=int(bytes_accessed)),
    )(*args)

    out = y[:, :cout].reshape(n, ho, wo, cout)
    return jnp.transpose(out, (0, 3, 1, 2))                       # NHWC -> NCHW


# --------------------------------------------------------------------- pure-JAX reference
def _bn_ref(y, gamma, beta):
    mean = y.mean(axis=(0, 1, 2), keepdims=True)
    var = ((y - mean) ** 2).mean(axis=(0, 1, 2), keepdims=True)
    return (y - mean) * jax.lax.rsqrt(var + EPS) * gamma + beta


def bottleneck_ref(x_nchw, p, *, use_downsample: bool, stride: int):
    """lax.conv-based reference with the kernel's precision policy (bf16 MXU, f32 accum/BN)."""
    x = jnp.transpose(x_nchw, (0, 2, 3, 1)).astype(jnp.float32)
    cin = x.shape[-1]
    mid = p["w1"].shape[1]
    cout = p["w3"].shape[1]

    def conv(a, wgt, s, pad):
        return jax.lax.conv_general_dilated(
            a.astype(jnp.bfloat16), wgt.astype(jnp.bfloat16), (s, s),
            [(pad, pad), (pad, pad)], dimension_numbers=("NHWC", "HWIO", "NHWC"),
            preferred_element_type=jnp.float32)

    y = jnp.maximum(_bn_ref(conv(x, p["w1"].reshape(1, 1, cin, mid), 1, 0),
                            p["g1"], p["b1"]), 0.0)
    y = jnp.maximum(_bn_ref(conv(y, p["w2"], stride, 1), p["g2"], p["b2"]), 0.0)
    y = _bn_ref(conv(y, p["w3"].reshape(1, 1, mid, cout), 1, 0), p["g3"], p["b3"])
    if use_downsample:
        identity = _bn_ref(conv(x, p["wd"].reshape(1, 1, cin, cout), stride, 0),
                           p["gd"], p["bd"])
    else:
        identity = x
    out = jnp.maximum(y + identity, 0.0)
    return jnp.transpose(out, (0, 3, 1, 2))


# ------------------------------------------------------------------------------- main
def _make_params(key, cin, mid, cout, use_downsample):
    ks = jax.random.split(key, 12)
    p = {
        "w1": jax.random.normal(ks[0], (cin, mid), jnp.float32) * 0.1,
        "g1": jax.random.uniform(ks[1], (mid,), jnp.float32, 0.5, 1.5),
        "b1": jax.random.normal(ks[2], (mid,), jnp.float32) * 0.1,
        "w2": jax.random.normal(ks[3], (3, 3, mid, mid), jnp.float32) * 0.1,
        "g2": jax.random.uniform(ks[4], (mid,), jnp.float32, 0.5, 1.5),
        "b2": jax.random.normal(ks[5], (mid,), jnp.float32) * 0.1,
        "w3": jax.random.normal(ks[6], (mid, cout), jnp.float32) * 0.1,
        "g3": jax.random.uniform(ks[7], (cout,), jnp.float32, 0.5, 1.5),
        "b3": jax.random.normal(ks[8], (cout,), jnp.float32) * 0.1,
    }
    if use_downsample:
        p["wd"] = jax.random.normal(ks[9], (cin, cout), jnp.float32) * 0.1
        p["gd"] = jax.random.uniform(ks[10], (cout,), jnp.float32, 0.5, 1.5)
        p["bd"] = jax.random.normal(ks[11], (cout,), jnp.float32) * 0.1
    return p


if __name__ == "__main__":
    key = jax.random.PRNGKey(0)
    k1, k2, k3, k4 = jax.random.split(key, 4)

    # Config 1: downsample bottleneck (inplane=4, mid=4, out=16, stride=2).
    N, Cin, H, W = 2, 4, 16, 16
    mid_plane, Cout = 4, 16
    x1 = jax.random.normal(k1, (N, Cin, H, W), jnp.float32)
    p1 = _make_params(k2, Cin, mid_plane, Cout, True)
    fwd1 = jax.jit(functools.partial(bottleneck_forward, use_downsample=True, stride=2))
    out1 = fwd1(x1, p1)
    jax.block_until_ready(out1)
    ref1 = bottleneck_ref(x1, p1, use_downsample=True, stride=2)
    np.testing.assert_allclose(np.asarray(out1), np.asarray(ref1), rtol=2e-3, atol=2e-3)
    assert out1.shape == (N, Cout, H // 2, W // 2)

    # Config 2: identity bottleneck (inplane=16 == 4*mid, stride=1, no downsample).
    N2, Cin2, H2, W2 = 2, 16, 8, 8
    mid2, Cout2 = 4, 16
    x2 = jax.random.normal(k3, (N2, Cin2, H2, W2), jnp.float32)
    p2 = _make_params(k4, Cin2, mid2, Cout2, False)
    fwd2 = jax.jit(functools.partial(bottleneck_forward, use_downsample=False, stride=1))
    out2 = fwd2(x2, p2)
    jax.block_until_ready(out2)
    ref2 = bottleneck_ref(x2, p2, use_downsample=False, stride=1)
    np.testing.assert_allclose(np.asarray(out2), np.asarray(ref2), rtol=2e-3, atol=2e-3)
    assert out2.shape == (N2, Cout2, H2, W2)

    print("KERNEL_OK")
</pallas_src>

<mosaic_0001>
module attributes {stable_mosaic.version = 11 : i64} {
  func.func @kernel(%arg0: i32, %arg1: memref<512x4xf32, #tpu.memory_space<vmem>>, %arg2: memref<4x128xbf16, #tpu.memory_space<vmem>>, %arg3: memref<9x128x128xbf16, #tpu.memory_space<vmem>>, %arg4: memref<128x128xbf16, #tpu.memory_space<vmem>>, %arg5: memref<4x128xbf16, #tpu.memory_space<vmem>>, %arg6: memref<4x128xf32, #tpu.memory_space<vmem>>, %arg7: memref<4x128xf32, #tpu.memory_space<vmem>>, %arg8: memref<128x128xf32, #tpu.memory_space<vmem>>, %arg9: memref<8x10x10x128xf32, #tpu.memory_space<vmem>>) attributes {dimension_semantics = [#tpu.dimension_semantics<arbitrary>], iteration_bounds = array<i64: 1>, scalar_prefetch = 0 : i64, scratch_operands = 1 : i64, tpu.core_type = #tpu.core_type<tc>, window_params = [{pipeline_mode = #tpu.pipeline_mode<synchronous>, transform_indices = @transform_0, window_bounds = array<i64: 512, 4>}, {pipeline_mode = #tpu.pipeline_mode<synchronous>, transform_indices = @transform_1, window_bounds = array<i64: 4, 128>}, {pipeline_mode = #tpu.pipeline_mode<synchronous>, transform_indices = @transform_2, window_bounds = array<i64: 9, 128, 128>}, {pipeline_mode = #tpu.pipeline_mode<synchronous>, transform_indices = @transform_3, window_bounds = array<i64: 128, 128>}, {pipeline_mode = #tpu.pipeline_mode<synchronous>, transform_indices = @transform_4, window_bounds = array<i64: 4, 128>}, {pipeline_mode = #tpu.pipeline_mode<synchronous>, transform_indices = @transform_5, window_bounds = array<i64: 4, 128>}, {pipeline_mode = #tpu.pipeline_mode<synchronous>, transform_indices = @transform_6, window_bounds = array<i64: 4, 128>}, {pipeline_mode = #tpu.pipeline_mode<synchronous>, transform_indices = @transform_7, window_bounds = array<i64: 128, 128>}]} {
    %c0 = arith.constant 0 : index
    %c0_0 = arith.constant 0 : index
    %0 = vector.load %arg1[%c0, %c0_0] : memref<512x4xf32, #tpu.memory_space<vmem>>, vector<512x4xf32>
    %1 = arith.truncf %0 : vector<512x4xf32> to vector<512x4xbf16>
    %c0_1 = arith.constant 0 : index
    %c0_2 = arith.constant 0 : index
    %2 = vector.load %arg2[%c0_1, %c0_2] : memref<4x128xbf16, #tpu.memory_space<vmem>>, vector<4x128xbf16>
    %cst = arith.constant dense<0.000000e+00> : vector<512x128xf32>
    %3 = tpu.matmul %1, %2, %cst {dimension_numbers = #tpu.dot_dimension_numbers<[1], [0], [0], [1], [0, 0, 1, 1], [], []>} : vector<512x4xbf16>, vector<4x128xbf16>, vector<512x128xf32> -> vector<512x128xf32>
    %c0_3 = arith.constant 0 : index
    %c0_4 = arith.constant 0 : index
    %4 = vector.load %arg6[%c0_3, %c0_4] : memref<4x128xf32, #tpu.memory_space<vmem>>, vector<1x128xf32>
    %c0_5 = arith.constant 0 : index
    %c0_6 = arith.constant 0 : index
    %5 = vector.load %arg7[%c0_5, %c0_6] : memref<4x128xf32, #tpu.memory_space<vmem>>, vector<1x128xf32>
    %cst_7 = arith.constant dense<0.000000e+00> : vector<128xf32>
    %6 = vector.multi_reduction <add>, %3, %cst_7 [0] : vector<512x128xf32> to vector<128xf32>
    %7 = vector.shape_cast %6 : vector<128xf32> to vector<1x128xf32>
    %cst_8 = arith.constant 0.001953125 : f32
    %8 = vector.broadcast %cst_8 : f32 to vector<1x128xf32>
    %9 = arith.mulf %7, %8 : vector<1x128xf32>
    %10 = vector.broadcast %9 : vector<1x128xf32> to vector<512x128xf32>
    %11 = arith.subf %3, %10 : vector<512x128xf32>
    %12 = arith.mulf %11, %11 : vector<512x128xf32>
    %cst_9 = arith.constant dense<0.000000e+00> : vector<128xf32>
    %13 = vector.multi_reduction <add>, %12, %cst_9 [0] : vector<512x128xf32> to vector<128xf32>
    %14 = vector.shape_cast %13 : vector<128xf32> to vector<1x128xf32>
    %cst_10 = arith.constant 0.001953125 : f32
    %15 = vector.broadcast %cst_10 : f32 to vector<1x128xf32>
    %16 = arith.mulf %14, %15 : vector<1x128xf32>
    %cst_11 = arith.constant 9.99999974E-6 : f32
    %17 = vector.broadcast %cst_11 : f32 to vector<1x128xf32>
    %18 = arith.addf %16, %17 : vector<1x128xf32>
    %19 = math.rsqrt %18 : vector<1x128xf32>
    %20 = arith.mulf %19, %4 : vector<1x128xf32>
    %21 = vector.broadcast %20 : vector<1x128xf32> to vector<512x128xf32>
    %22 = arith.mulf %11, %21 : vector<512x128xf32>
    %23 = vector.broadcast %5 : vector<1x128xf32> to vector<512x128xf32>
    %24 = arith.addf %22, %23 : vector<512x128xf32>
    %cst_12 = arith.constant 0.000000e+00 : f32
    %25 = vector.broadcast %cst_12 : f32 to vector<512x128xf32>
    %26 = arith.maximumf %24, %25 : vector<512x128xf32>
    %cst_13 = arith.constant 0.000000e+00 : f32
    %27 = vector.broadcast %cst_13 : f32 to vector<8x10x10x128xf32>
    %c0_14 = arith.constant 0 : index
    %c0_15 = arith.constant 0 : index
    %c0_16 = arith.constant 0 : index
    %c0_17 = arith.constant 0 : index
    %28 = vector.load %arg9[%c0_14, %c0_15, %c0_16, %c0_17] : memref<8x10x10x128xf32, #tpu.memory_space<vmem>>, vector<8x10x10x128xf32>
    tpu.vector_store %arg9[%c0_14, %c0_15, %c0_16, %c0_17], %27 {strides = array<i32>} : memref<8x10x10x128xf32, #tpu.memory_space<vmem>>, vector<8x10x10x128xf32>,
    %29 = vector.shape_cast %26 : vector<512x128xf32> to vector<8x8x8x128xf32>
    %c0_18 = arith.constant 0 : index
    %c1 = arith.constant 1 : index
    %c1_19 = arith.constant 1 : index
    %c0_20 = arith.constant 0 : index
    %30 = vector.load %arg9[%c0_18, %c1, %c1_19, %c0_20] : memref<8x10x10x128xf32, #tpu.memory_space<vmem>>, vector<8x8x8x128xf32>
    tpu.vector_store %arg9[%c0_18, %c1, %c1_19, %c0_20], %29 {strides = array<i32>} : memref<8x10x10x128xf32, #tpu.memory_space<vmem>>, vector<8x8x8x128xf32>,
    %cst_21 = arith.constant 0.000000e+00 : f32
    %31 = vector.broadcast %cst_21 : f32 to vector<128x128xf32>
    %c6 = arith.constant 6 : index
    %c0_22 = arith.constant 0 : index
    %c0_23 = arith.constant 0 : index
    %c0_24 = arith.constant 0 : index
    %32 = vector.load %arg9[%c6, %c0_22, %c0_23, %c0_24] : memref<8x10x10x128xf32, #tpu.memory_space<vmem>>, vector<2x8x8x128xf32>
    %33 = vector.shape_cast %32 : vector<2x8x8x128xf32> to vector<128x128xf32>
    %34 = arith.truncf %33 : vector<128x128xf32> to vector<128x128xbf16>
    %c0_25 = arith.constant 0 : index
    %c0_26 = arith.constant 0 : index
    %c0_27 = arith.constant 0 : index
    %35 = vector.load %arg3[%c0_25, %c0_26, %c0_27] : memref<9x128x128xbf16, #tpu.memory_space<vmem>>, vector<1x128x128xbf16>
    %36 = vector.shape_cast %35 : vector<1x128x128xbf16> to vector<128x128xbf16>
    %cst_28 = arith.constant dense<0.000000e+00> : vector<128x128xf32>
    %37 = tpu.matmul %34, %36, %cst_28 {dimension_numbers = #tpu.dot_dimension_numbers<[1], [0], [0], [1], [0, 0, 1, 1], [], []>} : vector<128x128xbf16>, vector<128x128xbf16>, vector<128x128xf32> -> vector<128x128xf32>
    %38 = arith.addf %31, %37 : vector<128x128xf32>
    %c4 = arith.constant 4 : index
    %c0_29 = arith.constant 0 : index
    %c1_30 = arith.constant 1 : index
    %c0_31 = arith.constant 0 : index
    %39 = vector.load %arg9[%c4, %c0_29, %c1_30, %c0_31] : memref<8x10x10x128xf32, #tpu.memory_space<vmem>>, vector<2x8x8x128xf32>
    %40 = vector.shape_cast %39 : vector<2x8x8x128xf32> to vector<128x128xf32>
    %41 = arith.truncf %40 : vector<128x128xf32> to vector<128x128xbf16>
    %c1_32 = arith.constant 1 : index
    %c0_33 = arith.constant 0 : index
    %c0_34 = arith.constant 0 : index
    %42 = vector.load %arg3[%c1_32, %c0_33, %c0_34] : memref<9x128x128xbf16, #tpu.memory_space<vmem>>, vector<1x128x128xbf16>
    %43 = vector.shape_cast %42 : vector<1x128x128xbf16> to vector<128x128xbf16>
    %cst_35 = arith.constant dense<0.000000e+00> : vector<128x128xf32>
    %44 = tpu.matmul %41, %43, %cst_35 {dimension_numbers = #tpu.dot_dimension_numbers<[1], [0], [0], [1], [0, 0, 1, 1], [], []>} : vector<128x128xbf16>, vector<128x128xbf16>, vector<128x128xf32> -> vector<128x128xf32>
    %45 = arith.addf %38, %44 : vector<128x128xf32>
    %c6_36 = arith.constant 6 : index
    %c0_37 = arith.constant 0 : index
    %c1_38 = arith.constant 1 : index
    %c0_39 = arith.constant 0 : index
    %46 = vector.load %arg9[%c6_36, %c0_37, %c1_38, %c0_39] : memref<8x10x10x128xf32, #tpu.memory_space<vmem>>, vector<2x8x8x128xf32>
    %47 = vector.shape_cast %46 : vector<2x8x8x128xf32> to vector<128x128xf32>
    %48 = arith.truncf %47 : vector<128x128xf32> to vector<128x128xbf16>
    %c2 = arith.constant 2 : index
    %c0_40 = arith.constant 0 : index
    %c0_41 = arith.constant 0 : index
    %49 = vector.load %arg3[%c2, %c0_40, %c0_41] : memref<9x128x128xbf16, #tpu.memory_space<vmem>>, vector<1x128x128xbf16>
    %50 = vector.shape_cast %49 : vector<1x128x128xbf16> to vector<128x128xbf16>
    %cst_42 = arith.constant dense<0.000000e+00> : vector<128x128xf32>
    %51 = tpu.matmul %48, %50, %cst_42 {dimension_numbers = #tpu.dot_dimension_numbers<[1], [0], [0], [1], [0, 0, 1, 1], [], []>} : vector<128x128xbf16>, vector<128x128xbf16>, vector<128x128xf32> -> vector<128x128xf32>
    %52 = arith.addf %45, %51 : vector<128x128xf32>
    %c2_43 = arith.constant 2 : index
    %c1_44 = arith.constant 1 : index
    %c0_45 = arith.constant 0 : index
    %c0_46 = arith.constant 0 : index
    %53 = vector.load %arg9[%c2_43, %c1_44, %c0_45, %c0_46] : memref<8x10x10x128xf32, #tpu.memory_space<vmem>>, vector<2x8x8x128xf32>
    %54 = vector.shape_cast %53 : vector<2x8x8x128xf32> to vector<128x128xf32>
    %55 = arith.truncf %54 : vector<128x128xf32> to vector<128x128xbf16>
    %c3 = arith.constant 3 : index
    %c0_47 = arith.constant 0 : index
    %c0_48 = arith.constant 0 : index
    %56 = vector.load %arg3[%c3, %c0_47, %c0_48] : memref<9x128x128xbf16, #tpu.memory_space<vmem>>, vector<1x128x128xbf16>
    %57 = vector.shape_cast %56 : vector<1x128x128xbf16> to vector<128x128xbf16>
    %cst_49 = arith.constant dense<0.000000e+00> : vector<128x128xf32>
    %58 = tpu.matmul %55, %57, %cst_49 {dimension_numbers = #tpu.dot_dimension_numbers<[1], [0], [0], [1], [0, 0, 1, 1], [], []>} : vector<128x128xbf16>, vector<128x128xbf16>, vector<128x128xf32> -> vector<128x128xf32>
    %59 = arith.addf %52, %58 : vector<128x128xf32>
    %c0_50 = arith.constant 0 : index
    %c1_51 = arith.constant 1 : index
    %c1_52 = arith.constant 1 : index
    %c0_53 = arith.constant 0 : index
    %60 = vector.load %arg9[%c0_50, %c1_51, %c1_52, %c0_53] : memref<8x10x10x128xf32, #tpu.memory_space<vmem>>, vector<2x8x8x128xf32>
    %61 = vector.shape_cast %60 : vector<2x8x8x128xf32> to vector<128x128xf32>
    %62 = arith.truncf %61 : vector<128x128xf32> to vector<128x128xbf16>
    %c4_54 = arith.constant 4 : index
    %c0_55 = arith.constant 0 : index
    %c0_56 = arith.constant 0 : index
    %63 = vector.load %arg3[%c4_54, %c0_55, %c0_56] : memref<9x128x128xbf16, #tpu.memory_space<vmem>>, vector<1x128x128xbf16>
    %64 = vector.shape_cast %63 : vector<1x128x128xbf16> to vector<128x128xbf16>
    %cst_57 = arith.constant dense<0.000000e+00> : vector<128x128xf32>
    %65 = tpu.matmul %62, %64, %cst_57 {dimension_numbers = #tpu.dot_dimension_numbers<[1], [0], [0], [1], [0, 0, 1, 1], [], []>} : vector<128x128xbf16>, vector<128x128xbf16>, vector<128x128xf32> -> vector<128x128xf32>
    %66 = arith.addf %59, %65 : vector<128x128xf32>
    %c2_58 = arith.constant 2 : index
    %c1_59 = arith.constant 1 : index
    %c1_60 = arith.constant 1 : index
    %c0_61 = arith.constant 0 : index
    %67 = vector.load %arg9[%c2_58, %c1_59, %c1_60, %c0_61] : memref<8x10x10x128xf32, #tpu.memory_space<vmem>>, vector<2x8x8x128xf32>
    %68 = vector.shape_cast %67 : vector<2x8x8x128xf32> to vector<128x128xf32>
    %69 = arith.truncf %68 : vector<128x128xf32> to vector<128x128xbf16>
    %c5 = arith.constant 5 : index
    %c0_62 = arith.constant 0 : index
    %c0_63 = arith.constant 0 : index
    %70 = vector.load %arg3[%c5, %c0_62, %c0_63] : memref<9x128x128xbf16, #tpu.memory_space<vmem>>, vector<1x128x128xbf16>
    %71 = vector.shape_cast %70 : vector<1x128x128xbf16> to vector<128x128xbf16>
    %cst_64 = arith.constant dense<0.000000e+00> : vector<128x128xf32>
    %72 = tpu.matmul %69, %71, %cst_64 {dimension_numbers = #tpu.dot_dimension_numbers<[1], [0], [0], [1], [0, 0, 1, 1], [], []>} : vector<128x128xbf16>, vector<128x128xbf16>, vector<128x128xf32> -> vector<128x128xf32>
    %73 = arith.addf %66, %72 : vector<128x128xf32>
    %c6_65 = arith.constant 6 : index
    %c1_66 = arith.constant 1 : index
    %c0_67 = arith.constant 0 : index
    %c0_68 = arith.constant 0 : index
    %74 = vector.load %arg9[%c6_65, %c1_66, %c0_67, %c0_68] : memref<8x10x10x128xf32, #tpu.memory_space<vmem>>, vector<2x8x8x128xf32>
    %75 = vector.shape_cast %74 : vector<2x8x8x128xf32> to vector<128x128xf32>
    %76 = arith.truncf %75 : vector<128x128xf32> to vector<128x128xbf16>
    %c6_69 = arith.constant 6 : index
    %c0_70 = arith.constant 0 : index
    %c0_71 = arith.constant 0 : index
    %77 = vector.load %arg3[%c6_69, %c0_70, %c0_71] : memref<9x128x128xbf16, #tpu.memory_space<vmem>>, vector<1x128x128xbf16>
    %78 = vector.shape_cast %77 : vector<1x128x128xbf16> to vector<128x128xbf16>
    %cst_72 = arith.constant dense<0.000000e+00> : vector<128x128xf32>
    %79 = tpu.matmul %76, %78, %cst_72 {dimension_numbers = #tpu.dot_dimension_numbers<[1], [0], [0], [1], [0, 0, 1, 1], [], []>} : vector<128x128xbf16>, vector<128x128xbf16>, vector<128x128xf32> -> vector<128x128xf32>
    %80 = arith.addf %73, %79 : vector<128x128xf32>
    %c4_73 = arith.constant 4 : index
    %c1_74 = arith.constant 1 : index
    %c1_75 = arith.constant 1 : index
    %c0_76 = arith.constant 0 : index
    %81 = vector.load %arg9[%c4_73, %c1_74, %c1_75, %c0_76] : memref<8x10x10x128xf32, #tpu.memory_space<vmem>>, vector<2x8x8x128xf32>
    %82 = vector.shape_cast %81 : vector<2x8x8x128xf32> to vector<128x128xf32>
    %83 = arith.truncf %82 : vector<128x128xf32> to vector<128x128xbf16>
    %c7 = arith.constant 7 : index
    %c0_77 = arith.constant 0 : index
    %c0_78 = arith.constant 0 : index
    %84 = vector.load %arg3[%c7, %c0_77, %c0_78] : memref<9x128x128xbf16, #tpu.memory_space<vmem>>, vector<1x128x128xbf16>
    %85 = vector.shape_cast %84 : vector<1x128x128xbf16> to vector<128x128xbf16>
    %cst_79 = arith.constant dense<0.000000e+00> : vector<128x128xf32>
    %86 = tpu.matmul %83, %85, %cst_79 {dimension_numbers = #tpu.dot_dimension_numbers<[1], [0], [0], [1], [0, 0, 1, 1], [], []>} : vector<128x128xbf16>, vector<128x128xbf16>, vector<128x128xf32> -> vector<128x128xf32>
    %87 = arith.addf %80, %86 : vector<128x128xf32>
    %c6_80 = arith.constant 6 : index
    %c1_81 = arith.constant 1 : index
    %c1_82 = arith.constant 1 : index
    %c0_83 = arith.constant 0 : index
    %88 = vector.load %arg9[%c6_80, %c1_81, %c1_82, %c0_83] : memref<8x10x10x128xf32, #tpu.memory_space<vmem>>, vector<2x8x8x128xf32>
    %89 = vector.shape_cast %88 : vector<2x8x8x128xf32> to vector<128x128xf32>
    %90 = arith.truncf %89 : vector<128x128xf32> to vector<128x128xbf16>
    %c8 = arith.constant 8 : index
    %c0_84 = arith.constant 0 : index
    %c0_85 = arith.constant 0 : index
    %91 = vector.load %arg3[%c8, %c0_84, %c0_85] : memref<9x128x128xbf16, #tpu.memory_space<vmem>>, vector<1x128x128xbf16>
    %92 = vector.shape_cast %91 : vector<1x128x128xbf16> to vector<128x128xbf16>
    %cst_86 = arith.constant dense<0.000000e+00> : vector<128x128xf32>
    %93 = tpu.matmul %90, %92, %cst_86 {dimension_numbers = #tpu.dot_dimension_numbers<[1], [0], [0], [1], [0, 0, 1, 1], [], []>} : vector<128x128xbf16>, vector<128x128xbf16>, vector<128x128xf32> -> vector<128x128xf32>
    %94 = arith.addf %87, %93 : vector<128x128xf32>
    %c1_87 = arith.constant 1 : index
    %c0_88 = arith.constant 0 : index
    %95 = vector.load %arg6[%c1_87, %c0_88] : memref<4x128xf32, #tpu.memory_space<vmem>>, vector<1x128xf32>
    %c1_89 = arith.constant 1 : index
    %c0_90 = arith.constant 0 : index
    %96 = vector.load %arg7[%c1_89, %c0_90] : memref<4x128xf32, #tpu.memory_space<vmem>>, vector<1x128xf32>
    %cst_91 = arith.constant dense<0.000000e+00> : vector<128xf32>
    %97 = vector.multi_reduction <add>, %94, %cst_91 [0] : vector<128x128xf32> to vector<128xf32>
    %98 = vector.shape_cast %97 : vector<128xf32> to vector<1x128xf32>
    %cst_92 = arith.constant 7.812500e-03 : f32
    %99 = vector.broadcast %cst_92 : f32 to vector<1x128xf32>
    %100 = arith.mulf %98, %99 : vector<1x128xf32>
    %101 = vector.broadcast %100 : vector<1x128xf32> to vector<128x128xf32>
    %102 = arith.subf %94, %101 : vector<128x128xf32>
    %103 = arith.mulf %102, %102 : vector<128x128xf32>
    %cst_93 = arith.constant dense<0.000000e+00> : vector<128xf32>
    %104 = vector.multi_reduction <add>, %103, %cst_93 [0] : vector<128x128xf32> to vector<128xf32>
    %105 = vector.shape_cast %104 : vector<128xf32> to vector<1x128xf32>
    %cst_94 = arith.constant 7.812500e-03 : f32
    %106 = vector.broadcast %cst_94 : f32 to vector<1x128xf32>
    %107 = arith.mulf %105, %106 : vector<1x128xf32>
    %cst_95 = arith.constant 9.99999974E-6 : f32
    %108 = vector.broadcast %cst_95 : f32 to vector<1x128xf32>
    %109 = arith.addf %107, %108 : vector<1x128xf32>
    %110 = math.rsqrt %109 : vector<1x128xf32>
    %111 = arith.mulf %110, %95 : vector<1x128xf32>
    %112 = vector.broadcast %111 : vector<1x128xf32> to vector<128x128xf32>
    %113 = arith.mulf %102, %112 : vector<128x128xf32>
    %114 = vector.broadcast %96 : vector<1x128xf32> to vector<128x128xf32>
    %115 = arith.addf %113, %114 : vector<128x128xf32>
    %cst_96 = arith.constant 0.000000e+00 : f32
    %116 = vector.broadcast %cst_96 : f32 to vector<128x128xf32>
    %117 = arith.maximumf %115, %116 : vector<128x128xf32>
    %118 = arith.truncf %117 : vector<128x128xf32> to vector<128x128xbf16>
    %c0_97 = arith.constant 0 : index
    %c0_98 = arith.constant 0 : index
    %119 = vector.load %arg4[%c0_97, %c0_98] : memref<128x128xbf16, #tpu.memory_space<vmem>>, vector<128x128xbf16>
    %cst_99 = arith.constant dense<0.000000e+00> : vector<128x128xf32>
    %120 = tpu.matmul %118, %119, %cst_99 {dimension_numbers = #tpu.dot_dimension_numbers<[1], [0], [0], [1], [0, 0, 1, 1], [], []>} : vector<128x128xbf16>, vector<128x128xbf16>, vector<128x128xf32> -> vector<128x128xf32>
    %c2_100 = arith.constant 2 : index
    %c0_101 = arith.constant 0 : index
    %121 = vector.load %arg6[%c2_100, %c0_101] : memref<4x128xf32, #tpu.memory_space<vmem>>, vector<1x128xf32>
    %c2_102 = arith.constant 2 : index
    %c0_103 = arith.constant 0 : index
    %122 = vector.load %arg7[%c2_102, %c0_103] : memref<4x128xf32, #tpu.memory_space<vmem>>, vector<1x128xf32>
    %cst_104 = arith.constant dense<0.000000e+00> : vector<128xf32>
    %123 = vector.multi_reduction <add>, %120, %cst_104 [0] : vector<128x128xf32> to vector<128xf32>
    %124 = vector.shape_cast %123 : vector<128xf32> to vector<1x128xf32>
    %cst_105 = arith.constant 7.812500e-03 : f32
    %125 = vector.broadcast %cst_105 : f32 to vector<1x128xf32>
    %126 = arith.mulf %124, %125 : vector<1x128xf32>
    %127 = vector.broadcast %126 : vector<1x128xf32> to vector<128x128xf32>
    %128 = arith.subf %120, %127 : vector<128x128xf32>
    %129 = arith.mulf %128, %128 : vector<128x128xf32>
    %cst_106 = arith.constant dense<0.000000e+00> : vector<128xf32>
    %130 = vector.multi_reduction <add>, %129, %cst_106 [0] : vector<128x128xf32> to vector<128xf32>
    %131 = vector.shape_cast %130 : vector<128xf32> to vector<1x128xf32>
    %cst_107 = arith.constant 7.812500e-03 : f32
    %132 = vector.broadcast %cst_107 : f32 to vector<1x128xf32>
    %133 = arith.mulf %131, %132 : vector<1x128xf32>
    %cst_108 = arith.constant 9.99999974E-6 : f32
    %134 = vector.broadcast %cst_108 : f32 to vector<1x128xf32>
    %135 = arith.addf %133, %134 : vector<1x128xf32>
    %136 = math.rsqrt %135 : vector<1x128xf32>
    %137 = arith.mulf %136, %121 : vector<1x128xf32>
    %138 = vector.broadcast %137 : vector<1x128xf32> to vector<128x128xf32>
    %139 = arith.mulf %128, %138 : vector<128x128xf32>
    %140 = vector.broadcast %122 : vector<1x128xf32> to vector<128x128xf32>
    %141 = arith.addf %139, %140 : vector<128x128xf32>
    %c0_109 = arith.constant 0 : index
    %c0_110 = arith.constant 0 : index
    %142 = vector.load %arg1[%c0_109, %c0_110] : memref<512x4xf32, #tpu.memory_space<vmem>>, vector<128x4xf32>
    %143 = arith.truncf %142 : vector<128x4xf32> to vector<128x4xbf16>
    %c0_111 = arith.constant 0 : index
    %c0_112 = arith.constant 0 : index
    %144 = vector.load %arg5[%c0_111, %c0_112] : memref<4x128xbf16, #tpu.memory_space<vmem>>, vector<4x128xbf16>
    %cst_113 = arith.constant dense<0.000000e+00> : vector<128x128xf32>
    %145 = tpu.matmul %143, %144, %cst_113 {dimension_numbers = #tpu.dot_dimension_numbers<[1], [0], [0], [1], [0, 0, 1, 1], [], []>} : vector<128x4xbf16>, vector<4x128xbf16>, vector<128x128xf32> -> vector<128x128xf32>
    %c3_114 = arith.constant 3 : index
    %c0_115 = arith.constant 0 : index
    %146 = vector.load %arg6[%c3_114, %c0_115] : memref<4x128xf32, #tpu.memory_space<vmem>>, vector<1x128xf32>
    %c3_116 = arith.constant 3 : index
    %c0_117 = arith.constant 0 : index
    %147 = vector.load %arg7[%c3_116, %c0_117] : memref<4x128xf32, #tpu.memory_space<vmem>>, vector<1x128xf32>
    %cst_118 = arith.constant dense<0.000000e+00> : vector<128xf32>
    %148 = vector.multi_reduction <add>, %145, %cst_118 [0] : vector<128x128xf32> to vector<128xf32>
    %149 = vector.shape_cast %148 : vector<128xf32> to vector<1x128xf32>
    %cst_119 = arith.constant 7.812500e-03 : f32
    %150 = vector.broadcast %cst_119 : f32 to vector<1x128xf32>
    %151 = arith.mulf %149, %150 : vector<1x128xf32>
    %152 = vector.broadcast %151 : vector<1x128xf32> to vector<128x128xf32>
    %153 = arith.subf %145, %152 : vector<128x128xf32>
    %154 = arith.mulf %153, %153 : vector<128x128xf32>
    %cst_120 = arith.constant dense<0.000000e+00> : vector<128xf32>
    %155 = vector.multi_reduction <add>, %154, %cst_120 [0] : vector<128x128xf32> to vector<128xf32>
    %156 = vector.shape_cast %155 : vector<128xf32> to vector<1x128xf32>
    %cst_121 = arith.constant 7.812500e-03 : f32
    %157 = vector.broadcast %cst_121 : f32 to vector<1x128xf32>
    %158 = arith.mulf %156, %157 : vector<1x128xf32>
    %cst_122 = arith.constant 9.99999974E-6 : f32
    %159 = vector.broadcast %cst_122 : f32 to vector<1x128xf32>
    %160 = arith.addf %158, %159 : vector<1x128xf32>
    %161 = math.rsqrt %160 : vector<1x128xf32>
    %162 = arith.mulf %161, %146 : vector<1x128xf32>
    %163 = vector.broadcast %162 : vector<1x128xf32> to vector<128x128xf32>
    %164 = arith.mulf %153, %163 : vector<128x128xf32>
    %165 = vector.broadcast %147 : vector<1x128xf32> to vector<128x128xf32>
    %166 = arith.addf %164, %165 : vector<128x128xf32>
    %167 = arith.addf %141, %166 : vector<128x128xf32>
    %cst_123 = arith.constant 0.000000e+00 : f32
    %168 = vector.broadcast %cst_123 : f32 to vector<128x128xf32>
    %169 = arith.maximumf %167, %168 : vector<128x128xf32>
    %c0_124 = arith.constant 0 : index
    %c0_125 = arith.constant 0 : index
    %170 = vector.load %arg8[%c0_124, %c0_125] : memref<128x128xf32, #tpu.memory_space<vmem>>, vector<128x128xf32>
    tpu.vector_store %arg8[%c0_124, %c0_125], %169 {strides = array<i32>} : memref<128x128xf32, #tpu.memory_space<vmem>>, vector<128x128xf32>,
    return
  }
  func.func @transform_0(%arg0: i32) -> (i32, i32) {
    %c0_i32 = arith.constant 0 : i32
    %c0_i32_0 = arith.constant 0 : i32
    %c0_i32_1 = arith.constant 0 : i32
    return %c0_i32, %c0_i32_0 : i32, i32
  }
  func.func @transform_1(%arg0: i32) -> (i32, i32) {
    %c0_i32 = arith.constant 0 : i32
    %c0_i32_0 = arith.constant 0 : i32
    %c0_i32_1 = arith.constant 0 : i32
    return %c0_i32, %c0_i32_0 : i32, i32
  }
  func.func @transform_2(%arg0: i32) -> (i32, i32, i32) {
    %c0_i32 = arith.constant 0 : i32
    %c0_i32_0 = arith.constant 0 : i32
    %c0_i32_1 = arith.constant 0 : i32
    %c0_i32_2 = arith.constant 0 : i32
    return %c0_i32, %c0_i32_0, %c0_i32_1 : i32, i32, i32
  }
  func.func @transform_3(%arg0: i32) -> (i32, i32) {
    %c0_i32 = arith.constant 0 : i32
    %c0_i32_0 = arith.constant 0 : i32
    %c0_i32_1 = arith.constant 0 : i32
    return %c0_i32, %c0_i32_0 : i32, i32
  }
  func.func @transform_4(%arg0: i32) -> (i32, i32) {
    %c0_i32 = arith.constant 0 : i32
    %c0_i32_0 = arith.constant 0 : i32
    %c0_i32_1 = arith.constant 0 : i32
    return %c0_i32, %c0_i32_0 : i32, i32
  }
  func.func @transform_5(%arg0: i32) -> (i32, i32) {
    %c0_i32 = arith.constant 0 : i32
    %c0_i32_0 = arith.constant 0 : i32
    %c0_i32_1 = arith.constant 0 : i32
    return %c0_i32, %c0_i32_0 : i32, i32
  }
  func.func @transform_6(%arg0: i32) -> (i32, i32) {
    %c0_i32 = arith.constant 0 : i32
    %c0_i32_0 = arith.constant 0 : i32
    %c0_i32_1 = arith.constant 0 : i32
    return %c0_i32, %c0_i32_0 : i32, i32
  }
  func.func @transform_7(%arg0: i32) -> (i32, i32) {
    %c0_i32 = arith.constant 0 : i32
    %c0_i32_0 = arith.constant 0 : i32
    %c0_i32_1 = arith.constant 0 : i32
    return %c0_i32, %c0_i32_0 : i32, i32
  }
}

</mosaic_0001>

<llo_original>
// kernel: bottleneck_forward.1
$region0: #{bottleneck_forward.1}
  #allocation0 [shape = 'u32[]', space=smem, size = 0x4, offset = 0x4, fixed_abs, tag = 'smem constant byte address 0x4 - core index']
  #allocation1 [shape = 'u32[72,128]{1,0:T(1,128)}', space=vmem, size = 0x9000, scoped, tag = 'internal scratch']
  #allocation2 [shape = 'f32[8,10,10,128]{3,2,1,0:T(8,128)}', space=vmem, size = 0xa0000, scoped, tag = 'scratch operand']
  %s0 = inlined_call_operand.vmem [shape: f32[512,4], index: 0, kind: input, shape index: {}]
  %s1 = inlined_call_operand.vmem [shape: bf16[4,128], index: 1, kind: input, shape index: {}]
  %s2 = inlined_call_operand.vmem [shape: bf16[9,128,128], index: 2, kind: input, shape index: {}]
  %s3 = inlined_call_operand.vmem [shape: bf16[128,128], index: 3, kind: input, shape index: {}]
  %s4 = inlined_call_operand.vmem [shape: bf16[4,128], index: 4, kind: input, shape index: {}]
  %s5 = inlined_call_operand.vmem [shape: f32[4,128], index: 5, kind: input, shape index: {}]
  %s6 = inlined_call_operand.vmem [shape: f32[4,128], index: 6, kind: input, shape index: {}]
  %s7 = inlined_call_operand.hbm [shape: f32[128,128], index: 7, kind: output, shape index: {}]
  %s8 = sld [smem:[#allocation0]]
  $region38: #{bottleneck_forward.1} parent=0
    _
  %s10 = ssub.s32 1, %s8
  %s11 = scalar_select 0, %s10, %s8
  $region1: #{bottleneck_forward.1} parent=0
    #allocation3 [shape = 'u8[65536]{0}', space=vmem, size = 0x10000, scoped, tag = 'output window, operand 0, single buffered']
    #allocation4 [shape = 's32[1]{0}', space=sflag, size = 0x4, scoped, tag = 'scoped memory for bottleneck_forward.1']
    %12 = vsyncpa [#allocation4], 0
    // Predicated region
    $region2: #{bottleneck_forward.1} parent=1 // pred_check
      _
    $region3: #{bottleneck_forward.1} parent=1 // pred_check_branch
      %14 = sbr.rel (0) target = $region5
    $region4: #{bottleneck_forward.1} parent=1 // pred_region
      _
    $region5: #{bottleneck_forward.1} parent=1 // pred_fallthru
      _
    // Predicated region
    $region6: #{bottleneck_forward.1} parent=1 // pred_check
      _
    $region7: #{bottleneck_forward.1} parent=1 // pred_check_branch
      %16 = sbr.rel (0) target = $region9
    $region8: #{bottleneck_forward.1} parent=1 // pred_region
      _
    $region9: #{bottleneck_forward.1} parent=1 // pred_fallthru
      _
    // Predicated region
    $region10: #{bottleneck_forward.1} parent=1 // pred_check
      _
    $region11: #{bottleneck_forward.1} parent=1 // pred_check_branch
      %18 = sbr.rel (0) target = $region13
    $region12: #{bottleneck_forward.1} parent=1 // pred_region
      _
    $region13: #{bottleneck_forward.1} parent=1 // pred_fallthru
      _
    // Predicated region
    $region14: #{bottleneck_forward.1} parent=1 // pred_check
      _
    $region15: #{bottleneck_forward.1} parent=1 // pred_check_branch
      %20 = sbr.rel (0) target = $region17
    $region16: #{bottleneck_forward.1} parent=1 // pred_region
      _
    $region17: #{bottleneck_forward.1} parent=1 // pred_fallthru
      _
    // Predicated region
    $region18: #{bottleneck_forward.1} parent=1 // pred_check
      _
    $region19: #{bottleneck_forward.1} parent=1 // pred_check_branch
      %22 = sbr.rel (0) target = $region21
    $region20: #{bottleneck_forward.1} parent=1 // pred_region
      _
    $region21: #{bottleneck_forward.1} parent=1 // pred_fallthru
      _
    // Predicated region
    $region22: #{bottleneck_forward.1} parent=1 // pred_check
      _
    $region23: #{bottleneck_forward.1} parent=1 // pred_check_branch
      %24 = sbr.rel (0) target = $region25
    $region24: #{bottleneck_forward.1} parent=1 // pred_region
      _
    $region25: #{bottleneck_forward.1} parent=1 // pred_fallthru
      _
    // Predicated region
    $region26: #{bottleneck_forward.1} parent=1 // pred_check
      _
    $region27: #{bottleneck_forward.1} parent=1 // pred_check_branch
      %26 = sbr.rel (0) target = $region29
    $region28: #{bottleneck_forward.1} parent=1 // pred_region
      _
    $region29: #{bottleneck_forward.1} parent=1 // pred_fallthru
      _
    %v28 = vld [vmem:[%s0] sm:$0xff]
    %v29 = vld [vmem:[%s0 + $0x8] sm:$0xff]
    %v30 = vld [vmem:[%s0 + $0x10] sm:$0xff]
    %v31 = vld [vmem:[%s0 + $0x18] sm:$0xff]
    %v32 = vld [vmem:[%s0 + $0x20] sm:$0xff]
    %v33 = vld [vmem:[%s0 + $0x28] sm:$0xff]
    %v34 = vld [vmem:[%s0 + $0x30] sm:$0xff]
    %v35 = vld [vmem:[%s0 + $0x38] sm:$0xff]
    %v36 = vld [vmem:[%s0 + $0x40] sm:$0xff]
    %v37 = vld [vmem:[%s0 + $0x48] sm:$0xff]
    %v38 = vld [vmem:[%s0 + $0x50] sm:$0xff]
    %v39 = vld [vmem:[%s0 + $0x58] sm:$0xff]
    %v40 = vld [vmem:[%s0 + $0x60] sm:$0xff]
    %v41 = vld [vmem:[%s0 + $0x68] sm:$0xff]
    %v42 = vld [vmem:[%s0 + $0x70] sm:$0xff]
    %v43 = vld [vmem:[%s0 + $0x78] sm:$0xff]
    %v44 = vld [vmem:[%s0 + $0x80] sm:$0xff]
    %v45 = vld [vmem:[%s0 + $0x88] sm:$0xff]
    %v46 = vld [vmem:[%s0 + $0x90] sm:$0xff]
    %v47 = vld [vmem:[%s0 + $0x98] sm:$0xff]
    %v48 = vld [vmem:[%s0 + $0xa0] sm:$0xff]
    %v49 = vld [vmem:[%s0 + $0xa8] sm:$0xff]
    %v50 = vld [vmem:[%s0 + $0xb0] sm:$0xff]
    %v51 = vld [vmem:[%s0 + $0xb8] sm:$0xff]
    %v52 = vld [vmem:[%s0 + $0xc0] sm:$0xff]
    %v53 = vld [vmem:[%s0 + $0xc8] sm:$0xff]
    %v54 = vld [vmem:[%s0 + $0xd0] sm:$0xff]
    %v55 = vld [vmem:[%s0 + $0xd8] sm:$0xff]
    %v56 = vld [vmem:[%s0 + $0xe0] sm:$0xff]
    %v57 = vld [vmem:[%s0 + $0xe8] sm:$0xff]
    %v58 = vld [vmem:[%s0 + $0xf0] sm:$0xff]
    %v59 = vld [vmem:[%s0 + $0xf8] sm:$0xff]
    %v60 = vld [vmem:[%s0 + $0x100] sm:$0xff]
    %v61 = vld [vmem:[%s0 + $0x108] sm:$0xff]
    %v62 = vld [vmem:[%s0 + $0x110] sm:$0xff]
    %v63 = vld [vmem:[%s0 + $0x118] sm:$0xff]
    %v64 = vld [vmem:[%s0 + $0x120] sm:$0xff]
    %v65 = vld [vmem:[%s0 + $0x128] sm:$0xff]
    %v66 = vld [vmem:[%s0 + $0x130] sm:$0xff]
    %v67 = vld [vmem:[%s0 + $0x138] sm:$0xff]
    %v68 = vld [vmem:[%s0 + $0x140] sm:$0xff]
    %v69 = vld [vmem:[%s0 + $0x148] sm:$0xff]
    %v70 = vld [vmem:[%s0 + $0x150] sm:$0xff]
    %v71 = vld [vmem:[%s0 + $0x158] sm:$0xff]
    %v72 = vld [vmem:[%s0 + $0x160] sm:$0xff]
    %v73 = vld [vmem:[%s0 + $0x168] sm:$0xff]
    %v74 = vld [vmem:[%s0 + $0x170] sm:$0xff]
    %v75 = vld [vmem:[%s0 + $0x178] sm:$0xff]
    %v76 = vld [vmem:[%s0 + $0x180] sm:$0xff]
    %v77 = vld [vmem:[%s0 + $0x188] sm:$0xff]
    %v78 = vld [vmem:[%s0 + $0x190] sm:$0xff]
    %v79 = vld [vmem:[%s0 + $0x198] sm:$0xff]
    %v80 = vld [vmem:[%s0 + $0x1a0] sm:$0xff]
    %v81 = vld [vmem:[%s0 + $0x1a8] sm:$0xff]
    %v82 = vld [vmem:[%s0 + $0x1b0] sm:$0xff]
    %v83 = vld [vmem:[%s0 + $0x1b8] sm:$0xff]
    %v84 = vld [vmem:[%s0 + $0x1c0] sm:$0xff]
    %v85 = vld [vmem:[%s0 + $0x1c8] sm:$0xff]
    %v86 = vld [vmem:[%s0 + $0x1d0] sm:$0xff]
    %v87 = vld [vmem:[%s0 + $0x1d8] sm:$0xff]
    %v88 = vld [vmem:[%s0 + $0x1e0] sm:$0xff]
    %v89 = vld [vmem:[%s0 + $0x1e8] sm:$0xff]
    %v90 = vld [vmem:[%s0 + $0x1f0] sm:$0xff]
    %v91 = vld [vmem:[%s0 + $0x1f8] sm:$0xff]
    %v92 = vpack.c.bf16 %v29, %v28
    %v93 = vpack.c.bf16 %v31, %v30
    %v94 = vpack.c.bf16 %v33, %v32
    %v95 = vpack.c.bf16 %v35, %v34
    %v96 = vpack.c.bf16 %v37, %v36
    %v97 = vpack.c.bf16 %v39, %v38
    %v98 = vpack.c.bf16 %v41, %v40
    %v99 = vpack.c.bf16 %v43, %v42
    %v100 = vpack.c.bf16 %v45, %v44
    %v101 = vpack.c.bf16 %v47, %v46
    %v102 = vpack.c.bf16 %v49, %v48
    %v103 = vpack.c.bf16 %v51, %v50
    %v104 = vpack.c.bf16 %v53, %v52
    %v105 = vpack.c.bf16 %v55, %v54
    %v106 = vpack.c.bf16 %v57, %v56
    %v107 = vpack.c.bf16 %v59, %v58
    %v108 = vpack.c.bf16 %v61, %v60
    %v109 = vpack.c.bf16 %v63, %v62
    %v110 = vpack.c.bf16 %v65, %v64
    %v111 = vpack.c.bf16 %v67, %v66
    %v112 = vpack.c.bf16 %v69, %v68
    %v113 = vpack.c.bf16 %v71, %v70
    %v114 = vpack.c.bf16 %v73, %v72
    %v115 = vpack.c.bf16 %v75, %v74
    %v116 = vpack.c.bf16 %v77, %v76
    %v117 = vpack.c.bf16 %v79, %v78
    %v118 = vpack.c.bf16 %v81, %v80
    %v119 = vpack.c.bf16 %v83, %v82
    %v120 = vpack.c.bf16 %v85, %v84
    %v121 = vpack.c.bf16 %v87, %v86
    %v122 = vpack.c.bf16 %v89, %v88
    %v123 = vpack.c.bf16 %v91, %v90
    %v124 = vld [vmem:[%s1] sm:$0x3]
    %vm125 = vcmask 31744
    %v127 = vsel %vm125, %v92, 0
    %v130 = vsel %vm125, %v93, 0
    %v133 = vsel %vm125, %v94, 0
    %v136 = vsel %vm125, %v95, 0
    %v139 = vsel %vm125, %v96, 0
    %v142 = vsel %vm125, %v97, 0
    %v145 = vsel %vm125, %v98, 0
    %v148 = vsel %vm125, %v99, 0
    %v151 = vsel %vm125, %v100, 0
    %v154 = vsel %vm125, %v101, 0
    %v157 = vsel %vm125, %v102, 0
    %v160 = vsel %vm125, %v103, 0
    %v163 = vsel %vm125, %v104, 0
    %v166 = vsel %vm125, %v105, 0
    %v169 = vsel %vm125, %v106, 0
    %v172 = vsel %vm125, %v107, 0
    %v175 = vsel %vm125, %v108, 0
    %v178 = vsel %vm125, %v109, 0
    %v181 = vsel %vm125, %v110, 0
    %v184 = vsel %vm125, %v111, 0
    %v187 = vsel %vm125, %v112, 0
    %v190 = vsel %vm125, %v113, 0
    %v193 = vsel %vm125, %v114, 0
    %v196 = vsel %vm125, %v115, 0
    %v199 = vsel %vm125, %v116, 0
    %v202 = vsel %vm125, %v117, 0
    %v205 = vsel %vm125, %v118, 0
    %v208 = vsel %vm125, %v119, 0
    %v211 = vsel %vm125, %v120, 0
    %v214 = vsel %vm125, %v121, 0
    %v217 = vsel %vm125, %v122, 0
    %v220 = vsel %vm125, %v123, 0
    %vm222 = vcmask 1041408
    %v224 = vsel %vm222, %v124, 0
    %226 = vmatpush.bf16.msra.mxu0 0
    %227 = vmatpush.bf16.msra.mxu0 0
    %228 = vmatpush.bf16.msra.mxu0 0
    %229 = vmatpush.bf16.msra.mxu0 0
    %230 = vmatpush.bf16.msra.mxu0 0
    %231 = vmatpush.bf16.msra.mxu0 0
    %232 = vmatpush.bf16.msra.mxu0 0
    %233 = vmatpush.bf16.msra.mxu0 %v224
    %234 = vmatmul.bf16.gmra.mxu0 %v127
    %v235 = vpop.f32.mrf.mxu0
    %v236 = vadd.f32 0.0, %v235
    %v237 = vpop.f32.mrf.mxu0
    %v238 = vadd.f32 0.0, %v237
    %239 = vmatmul.bf16.gmra.mxu0 %v130
    %v240 = vpop.f32.mrf.mxu0
    %v241 = vadd.f32 0.0, %v240
    %v242 = vpop.f32.mrf.mxu0
    %v243 = vadd.f32 0.0, %v242
    %244 = vmatmul.bf16.gmra.mxu0 %v133
    %v245 = vpop.f32.mrf.mxu0
    %v246 = vadd.f32 0.0, %v245
    %v247 = vpop.f32.mrf.mxu0
    %v248 = vadd.f32 0.0, %v247
    %249 = vmatmul.bf16.gmra.mxu0 %v136
    %v250 = vpop.f32.mrf.mxu0
    %v251 = vadd.f32 0.0, %v250
    %v252 = vpop.f32.mrf.mxu0
    %v253 = vadd.f32 0.0, %v252
    %254 = vmatmul.bf16.gmra.mxu0 %v139
    %v255 = vpop.f32.mrf.mxu0
    %v256 = vadd.f32 0.0, %v255
    %v257 = vpop.f32.mrf.mxu0
    %v258 = vadd.f32 0.0, %v257
    %259 = vmatmul.bf16.gmra.mxu0 %v142
    %v260 = vpop.f32.mrf.mxu0
    %v261 = vadd.f32 0.0, %v260
    %v262 = vpop.f32.mrf.mxu0
    %v263 = vadd.f32 0.0, %v262
    %264 = vmatmul.bf16.gmra.mxu0 %v145
    %v265 = vpop.f32.mrf.mxu0
    %v266 = vadd.f32 0.0, %v265
    %v267 = vpop.f32.mrf.mxu0
    %v268 = vadd.f32 0.0, %v267
    %269 = vmatmul.bf16.gmra.mxu0 %v148
    %v270 = vpop.f32.mrf.mxu0
    %v271 = vadd.f32 0.0, %v270
    %v272 = vpop.f32.mrf.mxu0
    %v273 = vadd.f32 0.0, %v272
    %274 = vmatmul.bf16.gmra.mxu0 %v151
    %v275 = vpop.f32.mrf.mxu0
    %v276 = vadd.f32 0.0, %v275
    %v277 = vpop.f32.mrf.mxu0
    %v278 = vadd.f32 0.0, %v277
    %279 = vmatmul.bf16.gmra.mxu0 %v154
    %v280 = vpop.f32.mrf.mxu0
    %v281 = vadd.f32 0.0, %v280
    %v282 = vpop.f32.mrf.mxu0
    %v283 = vadd.f32 0.0, %v282
    %284 = vmatmul.bf16.gmra.mxu0 %v157
    %v285 = vpop.f32.mrf.mxu0
    %v286 = vadd.f32 0.0, %v285
    %v287 = vpop.f32.mrf.mxu0
    %v288 = vadd.f32 0.0, %v287
    %289 = vmatmul.bf16.gmra.mxu0 %v160
    %v290 = vpop.f32.mrf.mxu0
    %v291 = vadd.f32 0.0, %v290
    %v292 = vpop.f32.mrf.mxu0
    %v293 = vadd.f32 0.0, %v292
    %294 = vmatmul.bf16.gmra.mxu0 %v163
    %v295 = vpop.f32.mrf.mxu0
    %v296 = vadd.f32 0.0, %v295
    %v297 = vpop.f32.mrf.mxu0
    %v298 = vadd.f32 0.0, %v297
    %299 = vmatmul.bf16.gmra.mxu0 %v166
    %v300 = vpop.f32.mrf.mxu0
    %v301 = vadd.f32 0.0, %v300
    %v302 = vpop.f32.mrf.mxu0
    %v303 = vadd.f32 0.0, %v302
    %304 = vmatmul.bf16.gmra.mxu0 %v169
    %v305 = vpop.f32.mrf.mxu0
    %v306 = vadd.f32 0.0, %v305
    %v307 = vpop.f32.mrf.mxu0
    %v308 = vadd.f32 0.0, %v307
    %309 = vmatmul.bf16.gmra.mxu0 %v172
    %v310 = vpop.f32.mrf.mxu0
    %v311 = vadd.f32 0.0, %v310
    %v312 = vpop.f32.mrf.mxu0
    %v313 = vadd.f32 0.0, %v312
    %314 = vmatmul.bf16.gmra.mxu0 %v175
    %v315 = vpop.f32.mrf.mxu0
    %v316 = vadd.f32 0.0, %v315
    %v317 = vpop.f32.mrf.mxu0
    %v318 = vadd.f32 0.0, %v317
    %319 = vmatmul.bf16.gmra.mxu0 %v178
    %v320 = vpop.f32.mrf.mxu0
    %v321 = vadd.f32 0.0, %v320
    %v322 = vpop.f32.mrf.mxu0
    %v323 = vadd.f32 0.0, %v322
    %324 = vmatmul.bf16.gmra.mxu0 %v181
    %v325 = vpop.f32.mrf.mxu0
    %v326 = vadd.f32 0.0, %v325
    %v327 = vpop.f32.mrf.mxu0
    %v328 = vadd.f32 0.0, %v327
    %329 = vmatmul.bf16.gmra.mxu0 %v184
    %v330 = vpop.f32.mrf.mxu0
    %v331 = vadd.f32 0.0, %v330
    %v332 = vpop.f32.mrf.mxu0
    %v333 = vadd.f32 0.0, %v332
    %334 = vmatmul.bf16.gmra.mxu0 %v187
    %v335 = vpop.f32.mrf.mxu0
    %v336 = vadd.f32 0.0, %v335
    %v337 = vpop.f32.mrf.mxu0
    %v338 = vadd.f32 0.0, %v337
    %339 = vmatmul.bf16.gmra.mxu0 %v190
    %v340 = vpop.f32.mrf.mxu0
    %v341 = vadd.f32 0.0, %v340
    %v342 = vpop.f32.mrf.mxu0
    %v343 = vadd.f32 0.0, %v342
    %344 = vmatmul.bf16.gmra.mxu0 %v193
    %v345 = vpop.f32.mrf.mxu0
    %v346 = vadd.f32 0.0, %v345
    %v347 = vpop.f32.mrf.mxu0
    %v348 = vadd.f32 0.0, %v347
    %349 = vmatmul.bf16.gmra.mxu0 %v196
    %v350 = vpop.f32.mrf.mxu0
    %v351 = vadd.f32 0.0, %v350
    %v352 = vpop.f32.mrf.mxu0
    %v353 = vadd.f32 0.0, %v352
    %354 = vmatmul.bf16.gmra.mxu0 %v199
    %v355 = vpop.f32.mrf.mxu0
    %v356 = vadd.f32 0.0, %v355
    %v357 = vpop.f32.mrf.mxu0
    %v358 = vadd.f32 0.0, %v357
    %359 = vmatmul.bf16.gmra.mxu0 %v202
    %v360 = vpop.f32.mrf.mxu0
    %v361 = vadd.f32 0.0, %v360
    %v362 = vpop.f32.mrf.mxu0
    %v363 = vadd.f32 0.0, %v362
    %364 = vmatmul.bf16.gmra.mxu0 %v205
    %v365 = vpop.f32.mrf.mxu0
    %v366 = vadd.f32 0.0, %v365
    %v367 = vpop.f32.mrf.mxu0
    %v368 = vadd.f32 0.0, %v367
    %369 = vmatmul.bf16.gmra.mxu0 %v208
    %v370 = vpop.f32.mrf.mxu0
    %v371 = vadd.f32 0.0, %v370
    %v372 = vpop.f32.mrf.mxu0
    %v373 = vadd.f32 0.0, %v372
    %374 = vmatmul.bf16.gmra.mxu0 %v211
    %v375 = vpop.f32.mrf.mxu0
    %v376 = vadd.f32 0.0, %v375
    %v377 = vpop.f32.mrf.mxu0
    %v378 = vadd.f32 0.0, %v377
    %379 = vmatmul.bf16.gmra.mxu0 %v214
    %v380 = vpop.f32.mrf.mxu0
    %v381 = vadd.f32 0.0, %v380
    %v382 = vpop.f32.mrf.mxu0
    %v383 = vadd.f32 0.0, %v382
    %384 = vmatmul.bf16.gmra.mxu0 %v217
    %v385 = vpop.f32.mrf.mxu0
    %v386 = vadd.f32 0.0, %v385
    %v387 = vpop.f32.mrf.mxu0
    %v388 = vadd.f32 0.0, %v387
    %389 = vmatmul.bf16.gmra.mxu0 %v220
    %v390 = vpop.f32.mrf.mxu0
    %v391 = vadd.f32 0.0, %v390
    %v392 = vpop.f32.mrf.mxu0
    %v393 = vadd.f32 0.0, %v392
    %394 = vdwg.mxu0
    %v395 = vld [vmem:[%s5] sm:$0x1]
    %v396 = vld [vmem:[%s6] sm:$0x1]
    %v397 = vadd.f32 %v236, %v238
    %v398 = vadd.f32 %v397, %v241
    %v399 = vadd.f32 %v398, %v243
    %v400 = vadd.f32 %v399, %v246
    %v401 = vadd.f32 %v400, %v248
    %v402 = vadd.f32 %v401, %v251
    %v403 = vadd.f32 %v402, %v253
    %v404 = vadd.f32 %v403, %v256
    %v405 = vadd.f32 %v404, %v258
    %v406 = vadd.f32 %v405, %v261
    %v407 = vadd.f32 %v406, %v263
    %v408 = vadd.f32 %v407, %v266
    %v409 = vadd.f32 %v408, %v268
    %v410 = vadd.f32 %v409, %v271
    %v411 = vadd.f32 %v410, %v273
    %v412 = vadd.f32 %v411, %v276
    %v413 = vadd.f32 %v412, %v278
    %v414 = vadd.f32 %v413, %v281
    %v415 = vadd.f32 %v414, %v283
    %v416 = vadd.f32 %v415, %v286
    %v417 = vadd.f32 %v416, %v288
    %v418 = vadd.f32 %v417, %v291
    %v419 = vadd.f32 %v418, %v293
    %v420 = vadd.f32 %v419, %v296
    %v421 = vadd.f32 %v420, %v298
    %v422 = vadd.f32 %v421, %v301
    %v423 = vadd.f32 %v422, %v303
    %v424 = vadd.f32 %v423, %v306
    %v425 = vadd.f32 %v424, %v308
    %v426 = vadd.f32 %v425, %v311
    %v427 = vadd.f32 %v426, %v313
    %v428 = vadd.f32 %v427, %v316
    %v429 = vadd.f32 %v428, %v318
    %v430 = vadd.f32 %v429, %v321
    %v431 = vadd.f32 %v430, %v323
    %v432 = vadd.f32 %v431, %v326
    %v433 = vadd.f32 %v432, %v328
    %v434 = vadd.f32 %v433, %v331
    %v435 = vadd.f32 %v434, %v333
    %v436 = vadd.f32 %v435, %v336
    %v437 = vadd.f32 %v436, %v338
    %v438 = vadd.f32 %v437, %v341
    %v439 = vadd.f32 %v438, %v343
    %v440 = vadd.f32 %v439, %v346
    %v441 = vadd.f32 %v440, %v348
    %v442 = vadd.f32 %v441, %v351
    %v443 = vadd.f32 %v442, %v353
    %v444 = vadd.f32 %v443, %v356
    %v445 = vadd.f32 %v444, %v358
    %v446 = vadd.f32 %v445, %v361
    %v447 = vadd.f32 %v446, %v363
    %v448 = vadd.f32 %v447, %v366
    %v449 = vadd.f32 %v448, %v368
    %v450 = vadd.f32 %v449, %v371
    %v451 = vadd.f32 %v450, %v373
    %v452 = vadd.f32 %v451, %v376
    %v453 = vadd.f32 %v452, %v378
    %v454 = vadd.f32 %v453, %v381
    %v455 = vadd.f32 %v454, %v383
    %v456 = vadd.f32 %v455, %v386
    %v457 = vadd.f32 %v456, %v388
    %v458 = vadd.f32 %v457, %v391
    %v459 = vadd.f32 %v458, %v393
    %v460 = vrot.slane %v459, 4
    %v461 = vadd.f32 %v459, %v460
    %v462 = vrot.slane %v461, 2
    %v463 = vadd.f32 %v461, %v462
    %v464 = vrot.slane %v463, 1
    %v465 = vadd.f32 %v463, %v464
    %v466 = vmul.f32 %v465, 0.001953125
    %v467 = vsub.f32 %v236, %v466
    %v468 = vsub.f32 %v238, %v466
    %v469 = vsub.f32 %v241, %v466
    %v470 = vsub.f32 %v243, %v466
    %v471 = vsub.f32 %v246, %v466
    %v472 = vsub.f32 %v248, %v466
    %v473 = vsub.f32 %v251, %v466
    %v474 = vsub.f32 %v253, %v466
    %v475 = vsub.f32 %v256, %v466
    %v476 = vsub.f32 %v258, %v466
    %v477 = vsub.f32 %v261, %v466
    %v478 = vsub.f32 %v263, %v466
    %v479 = vsub.f32 %v266, %v466
    %v480 = vsub.f32 %v268, %v466
    %v481 = vsub.f32 %v271, %v466
    %v482 = vsub.f32 %v273, %v466
    %v483 = vsub.f32 %v276, %v466
    %v484 = vsub.f32 %v278, %v466
    %v485 = vsub.f32 %v281, %v466
    %v486 = vsub.f32 %v283, %v466
    %v487 = vsub.f32 %v286, %v466
    %v488 = vsub.f32 %v288, %v466
    %v489 = vsub.f32 %v291, %v466
    %v490 = vsub.f32 %v293, %v466
    %v491 = vsub.f32 %v296, %v466
    %v492 = vsub.f32 %v298, %v466
    %v493 = vsub.f32 %v301, %v466
    %v494 = vsub.f32 %v303, %v466
    %v495 = vsub.f32 %v306, %v466
    %v496 = vsub.f32 %v308, %v466
    %v497 = vsub.f32 %v311, %v466
    %v498 = vsub.f32 %v313, %v466
    %v499 = vsub.f32 %v316, %v466
    %v500 = vsub.f32 %v318, %v466
    %v501 = vsub.f32 %v321, %v466
    %v502 = vsub.f32 %v323, %v466
    %v503 = vsub.f32 %v326, %v466
    %v504 = vsub.f32 %v328, %v466
    %v505 = vsub.f32 %v331, %v466
    %v506 = vsub.f32 %v333, %v466
    %v507 = vsub.f32 %v336, %v466
    %v508 = vsub.f32 %v338, %v466
    %v509 = vsub.f32 %v341, %v466
    %v510 = vsub.f32 %v343, %v466
    %v511 = vsub.f32 %v346, %v466
    %v512 = vsub.f32 %v348, %v466
    %v513 = vsub.f32 %v351, %v466
    %v514 = vsub.f32 %v353, %v466
    %v515 = vsub.f32 %v356, %v466
    %v516 = vsub.f32 %v358, %v466
    %v517 = vsub.f32 %v361, %v466
    %v518 = vsub.f32 %v363, %v466
    %v519 = vsub.f32 %v366, %v466
    %v520 = vsub.f32 %v368, %v466
    %v521 = vsub.f32 %v371, %v466
    %v522 = vsub.f32 %v373, %v466
    %v523 = vsub.f32 %v376, %v466
    %v524 = vsub.f32 %v378, %v466
    %v525 = vsub.f32 %v381, %v466
    %v526 = vsub.f32 %v383, %v466
    %v527 = vsub.f32 %v386, %v466
    %v528 = vsub.f32 %v388, %v466
    %v529 = vsub.f32 %v391, %v466
    %v530 = vsub.f32 %v393, %v466
    %v531 = vmul.f32 %v467, %v467
    %v532 = vmul.f32 %v468, %v468
    %v533 = vmul.f32 %v469, %v469
    %v534 = vmul.f32 %v470, %v470
    %v535 = vmul.f32 %v471, %v471
    %v536 = vmul.f32 %v472, %v472
    %v537 = vmul.f32 %v473, %v473
    %v538 = vmul.f32 %v474, %v474
    %v539 = vmul.f32 %v475, %v475
    %v540 = vmul.f32 %v476, %v476
    %v541 = vmul.f32 %v477, %v477
    %v542 = vmul.f32 %v478, %v478
    %v543 = vmul.f32 %v479, %v479
    %v544 = vmul.f32 %v480, %v480
    %v545 = vmul.f32 %v481, %v481
    %v546 = vmul.f32 %v482, %v482
    %v547 = vmul.f32 %v483, %v483
    %v548 = vmul.f32 %v484, %v484
    %v549 = vmul.f32 %v485, %v485
    %v550 = vmul.f32 %v486, %v486
    %v551 = vmul.f32 %v487, %v487
    %v552 = vmul.f32 %v488, %v488
    %v553 = vmul.f32 %v489, %v489
    %v554 = vmul.f32 %v490, %v490
    %v555 = vmul.f32 %v491, %v491
    %v556 = vmul.f32 %v492, %v492
    %v557 = vmul.f32 %v493, %v493
    %v558 = vmul.f32 %v494, %v494
    %v559 = vmul.f32 %v495, %v495
    %v560 = vmul.f32 %v496, %v496
    %v561 = vmul.f32 %v497, %v497
    %v562 = vmul.f32 %v498, %v498
    %v563 = vmul.f32 %v499, %v499
    %v564 = vmul.f32 %v500, %v500
    %v565 = vmul.f32 %v501, %v501
    %v566 = vmul.f32 %v502, %v502
    %v567 = vmul.f32 %v503, %v503
    %v568 = vmul.f32 %v504, %v504
    %v569 = vmul.f32 %v505, %v505
    %v570 = vmul.f32 %v506, %v506
    %v571 = vmul.f32 %v507, %v507
    %v572 = vmul.f32 %v508, %v508
    %v573 = vmul.f32 %v509, %v509
    %v574 = vmul.f32 %v510, %v510
    %v575 = vmul.f32 %v511, %v511
    %v576 = vmul.f32 %v512, %v512
    %v577 = vmul.f32 %v513, %v513
    %v578 = vmul.f32 %v514, %v514
    %v579 = vmul.f32 %v515, %v515
    %v580 = vmul.f32 %v516, %v516
    %v581 = vmul.f32 %v517, %v517
    %v582 = vmul.f32 %v518, %v518
    %v583 = vmul.f32 %v519, %v519
    %v584 = vmul.f32 %v520, %v520
    %v585 = vmul.f32 %v521, %v521
    %v586 = vmul.f32 %v522, %v522
    %v587 = vmul.f32 %v523, %v523
    %v588 = vmul.f32 %v524, %v524
    %v589 = vmul.f32 %v525, %v525
    %v590 = vmul.f32 %v526, %v526
    %v591 = vmul.f32 %v527, %v527
    %v592 = vmul.f32 %v528, %v528
    %v593 = vmul.f32 %v529, %v529
    %v594 = vmul.f32 %v530, %v530
    %v595 = vadd.f32 %v531, %v532
    %v596 = vadd.f32 %v595, %v533
    %v597 = vadd.f32 %v596, %v534
    %v598 = vadd.f32 %v597, %v535
    %v599 = vadd.f32 %v598, %v536
    %v600 = vadd.f32 %v599, %v537
    %v601 = vadd.f32 %v600, %v538
    %v602 = vadd.f32 %v601, %v539
    %v603 = vadd.f32 %v602, %v540
    %v604 = vadd.f32 %v603, %v541
    %v605 = vadd.f32 %v604, %v542
    %v606 = vadd.f32 %v605, %v543
    %v607 = vadd.f32 %v606, %v544
    %v608 = vadd.f32 %v607, %v545
    %v609 = vadd.f32 %v608, %v546
    %v610 = vadd.f32 %v609, %v547
    %v611 = vadd.f32 %v610, %v548
    %v612 = vadd.f32 %v611, %v549
    %v613 = vadd.f32 %v612, %v550
    %v614 = vadd.f32 %v613, %v551
    %v615 = vadd.f32 %v614, %v552
    %v616 = vadd.f32 %v615, %v553
    %v617 = vadd.f32 %v616, %v554
    %v618 = vadd.f32 %v617, %v555
    %v619 = vadd.f32 %v618, %v556
    %v620 = vadd.f32 %v619, %v557
    %v621 = vadd.f32 %v620, %v558
    %v622 = vadd.f32 %v621, %v559
    %v623 = vadd.f32 %v622, %v560
    %v624 = vadd.f32 %v623, %v561
    %v625 = vadd.f32 %v624, %v562
    %v626 = vadd.f32 %v625, %v563
    %v627 = vadd.f32 %v626, %v564
    %v628 = vadd.f32 %v627, %v565
    %v629 = vadd.f32 %v628, %v566
    %v630 = vadd.f32 %v629, %v567
    %v631 = vadd.f32 %v630, %v568
    %v632 = vadd.f32 %v631, %v569
    %v633 = vadd.f32 %v632, %v570
    %v634 = vadd.f32 %v633, %v571
    %v635 = vadd.f32 %v634, %v572
    %v636 = vadd.f32 %v635, %v573
    %v637 = vadd.f32 %v636, %v574
    %v638 = vadd.f32 %v637, %v575
    %v639 = vadd.f32 %v638, %v576
    %v640 = vadd.f32 %v639, %v577
    %v641 = vadd.f32 %v640, %v578
    %v642 = vadd.f32 %v641, %v579
    %v643 = vadd.f32 %v642, %v580
    %v644 = vadd.f32 %v643, %v581
    %v645 = vadd.f32 %v644, %v582
    %v646 = vadd.f32 %v645, %v583
    %v647 = vadd.f32 %v646, %v584
    %v648 = vadd.f32 %v647, %v585
    %v649 = vadd.f32 %v648, %v586
    %v650 = vadd.f32 %v649, %v587
    %v651 = vadd.f32 %v650, %v588
    %v652 = vadd.f32 %v651, %v589
    %v653 = vadd.f32 %v652, %v590
    %v654 = vadd.f32 %v653, %v591
    %v655 = vadd.f32 %v654, %v592
    %v656 = vadd.f32 %v655, %v593
    %v657 = vadd.f32 %v656, %v594
    %v658 = vrot.slane %v657, 4
    %v659 = vadd.f32 %v657, %v658
    %v660 = vrot.slane %v659, 2
    %v661 = vadd.f32 %v659, %v660
    %v662 = vrot.slane %v661, 1
    %v663 = vadd.f32 %v661, %v662
    %v664 = vmul.f32 %v663, 0.001953125
    %v665 = vadd.f32 %v664, 1e-05
    %v666 = vrsqrt.pop %v665
    %v667 = vmul.f32 %v666, %v665
    %v668 = vmul.f32 %v667, %v666
    %v669 = vmul.f32 0.5, %v668
    %v670 = vsub.f32 1.5, %v669
    %v671 = vmul.f32 %v666, %v670
    %vm672 = vweird.f32 %v665
    %vm673 = vweird.f32 %v666
    %vm674 = vmor %vm672, %vm673
    %v675 = vsel %vm674, %v666, %v671
    %v676 = vmul.f32 %v675, %v395
    %v677 = vperm.slane %v676, 0
    %v678 = vmul.f32 %v467, %v677
    %v679 = vmul.f32 %v468, %v677
    %v680 = vmul.f32 %v469, %v677
    %v681 = vmul.f32 %v470, %v677
    %v682 = vmul.f32 %v471, %v677
    %v683 = vmul.f32 %v472, %v677
    %v684 = vmul.f32 %v473, %v677
    %v685 = vmul.f32 %v474, %v677
    %v686 = vmul.f32 %v475, %v677
    %v687 = vmul.f32 %v476, %v677
    %v688 = vmul.f32 %v477, %v677
    %v689 = vmul.f32 %v478, %v677
    %v690 = vmul.f32 %v479, %v677
    %v691 = vmul.f32 %v480, %v677
    %v692 = vmul.f32 %v481, %v677
    %v693 = vmul.f32 %v482, %v677
    %v694 = vmul.f32 %v483, %v677
    %v695 = vmul.f32 %v484, %v677
    %v696 = vmul.f32 %v485, %v677
    %v697 = vmul.f32 %v486, %v677
    %v698 = vmul.f32 %v487, %v677
    %v699 = vmul.f32 %v488, %v677
    %v700 = vmul.f32 %v489, %v677
    %v701 = vmul.f32 %v490, %v677
    %v702 = vmul.f32 %v491, %v677
    %v703 = vmul.f32 %v492, %v677
    %v704 = vmul.f32 %v493, %v677
    %v705 = vmul.f32 %v494, %v677
    %v706 = vmul.f32 %v495, %v677
    %v707 = vmul.f32 %v496, %v677
    %v708 = vmul.f32 %v497, %v677
    %v709 = vmul.f32 %v498, %v677
    %v710 = vmul.f32 %v499, %v677
    %v711 = vmul.f32 %v500, %v677
    %v712 = vmul.f32 %v501, %v677
    %v713 = vmul.f32 %v502, %v677
    %v714 = vmul.f32 %v503, %v677
    %v715 = vmul.f32 %v504, %v677
    %v716 = vmul.f32 %v505, %v677
    %v717 = vmul.f32 %v506, %v677
    %v718 = vmul.f32 %v507, %v677
    %v719 = vmul.f32 %v508, %v677
    %v720 = vmul.f32 %v509, %v677
    %v721 = vmul.f32 %v510, %v677
    %v722 = vmul.f32 %v511, %v677
    %v723 = vmul.f32 %v512, %v677
    %v724 = vmul.f32 %v513, %v677
    %v725 = vmul.f32 %v514, %v677
    %v726 = vmul.f32 %v515, %v677
    %v727 = vmul.f32 %v516, %v677
    %v728 = vmul.f32 %v517, %v677
    %v729 = vmul.f32 %v518, %v677
    %v730 = vmul.f32 %v519, %v677
    %v731 = vmul.f32 %v520, %v677
    %v732 = vmul.f32 %v521, %v677
    %v733 = vmul.f32 %v522, %v677
    %v734 = vmul.f32 %v523, %v677
    %v735 = vmul.f32 %v524, %v677
    %v736 = vmul.f32 %v525, %v677
    %v737 = vmul.f32 %v526, %v677
    %v738 = vmul.f32 %v527, %v677
    %v739 = vmul.f32 %v528, %v677
    %v740 = vmul.f32 %v529, %v677
    %v741 = vmul.f32 %v530, %v677
    %v742 = vperm.slane %v396, 0
    %v743 = vadd.f32 %v678, %v742
    %v744 = vadd.f32 %v679, %v742
    %v745 = vadd.f32 %v680, %v742
    %v746 = vadd.f32 %v681, %v742
    %v747 = vadd.f32 %v682, %v742
    %v748 = vadd.f32 %v683, %v742
    %v749 = vadd.f32 %v684, %v742
    %v750 = vadd.f32 %v685, %v742
    %v751 = vadd.f32 %v686, %v742
    %v752 = vadd.f32 %v687, %v742
    %v753 = vadd.f32 %v688, %v742
    %v754 = vadd.f32 %v689, %v742
    %v755 = vadd.f32 %v690, %v742
    %v756 = vadd.f32 %v691, %v742
    %v757 = vadd.f32 %v692, %v742
    %v758 = vadd.f32 %v693, %v742
    %v759 = vadd.f32 %v694, %v742
    %v760 = vadd.f32 %v695, %v742
    %v761 = vadd.f32 %v696, %v742
    %v762 = vadd.f32 %v697, %v742
    %v763 = vadd.f32 %v698, %v742
    %v764 = vadd.f32 %v699, %v742
    %v765 = vadd.f32 %v700, %v742
    %v766 = vadd.f32 %v701, %v742
    %v767 = vadd.f32 %v702, %v742
    %v768 = vadd.f32 %v703, %v742
    %v769 = vadd.f32 %v704, %v742
    %v770 = vadd.f32 %v705, %v742
    %v771 = vadd.f32 %v706, %v742
    %v772 = vadd.f32 %v707, %v742
    %v773 = vadd.f32 %v708, %v742
    %v774 = vadd.f32 %v709, %v742
    %v775 = vadd.f32 %v710, %v742
    %v776 = vadd.f32 %v711, %v742
    %v777 = vadd.f32 %v712, %v742
    %v778 = vadd.f32 %v713, %v742
    %v779 = vadd.f32 %v714, %v742
    %v780 = vadd.f32 %v715, %v742
    %v781 = vadd.f32 %v716, %v742
    %v782 = vadd.f32 %v717, %v742
    %v783 = vadd.f32 %v718, %v742
    %v784 = vadd.f32 %v719, %v742
    %v785 = vadd.f32 %v720, %v742
    %v786 = vadd.f32 %v721, %v742
    %v787 = vadd.f32 %v722, %v742
    %v788 = vadd.f32 %v723, %v742
    %v789 = vadd.f32 %v724, %v742
    %v790 = vadd.f32 %v725, %v742
    %v791 = vadd.f32 %v726, %v742
    %v792 = vadd.f32 %v727, %v742
    %v793 = vadd.f32 %v728, %v742
    %v794 = vadd.f32 %v729, %v742
    %v795 = vadd.f32 %v730, %v742
    %v796 = vadd.f32 %v731, %v742
    %v797 = vadd.f32 %v732, %v742
    %v798 = vadd.f32 %v733, %v742
    %v799 = vadd.f32 %v734, %v742
    %v800 = vadd.f32 %v735, %v742
    %v801 = vadd.f32 %v736, %v742
    %v802 = vadd.f32 %v737, %v742
    %v803 = vadd.f32 %v738, %v742
    %v804 = vadd.f32 %v739, %v742
    %v805 = vadd.f32 %v740, %v742
    %v806 = vadd.f32 %v741, %v742
    %v807 = vmax.f32 %v743, 0.0
    %v808 = vmax.f32 %v744, 0.0
    %v809 = vmax.f32 %v745, 0.0
    %v810 = vmax.f32 %v746, 0.0
    %v811 = vmax.f32 %v747, 0.0
    %v812 = vmax.f32 %v748, 0.0
    %v813 = vmax.f32 %v749, 0.0
    %v814 = vmax.f32 %v750, 0.0
    %v815 = vmax.f32 %v751, 0.0
    %v816 = vmax.f32 %v752, 0.0
    %v817 = vmax.f32 %v753, 0.0
    %v818 = vmax.f32 %v754, 0.0
    %v819 = vmax.f32 %v755, 0.0
    %v820 = vmax.f32 %v756, 0.0
    %v821 = vmax.f32 %v757, 0.0
    %v822 = vmax.f32 %v758, 0.0
    %v823 = vmax.f32 %v759, 0.0
    %v824 = vmax.f32 %v760, 0.0
    %v825 = vmax.f32 %v761, 0.0
    %v826 = vmax.f32 %v762, 0.0
    %v827 = vmax.f32 %v763, 0.0
    %v828 = vmax.f32 %v764, 0.0
    %v829 = vmax.f32 %v765, 0.0
    %v830 = vmax.f32 %v766, 0.0
    %v831 = vmax.f32 %v767, 0.0
    %v832 = vmax.f32 %v768, 0.0
    %v833 = vmax.f32 %v769, 0.0
    %v834 = vmax.f32 %v770, 0.0
    %v835 = vmax.f32 %v771, 0.0
    %v836 = vmax.f32 %v772, 0.0
    %v837 = vmax.f32 %v773, 0.0
    %v838 = vmax.f32 %v774, 0.0
    %v839 = vmax.f32 %v775, 0.0
    %v840 = vmax.f32 %v776, 0.0
    %v841 = vmax.f32 %v777, 0.0
    %v842 = vmax.f32 %v778, 0.0
    %v843 = vmax.f32 %v779, 0.0
    %v844 = vmax.f32 %v780, 0.0
    %v845 = vmax.f32 %v781, 0.0
    %v846 = vmax.f32 %v782, 0.0
    %v847 = vmax.f32 %v783, 0.0
    %v848 = vmax.f32 %v784, 0.0
    %v849 = vmax.f32 %v785, 0.0
    %v850 = vmax.f32 %v786, 0.0
    %v851 = vmax.f32 %v787, 0.0
    %v852 = vmax.f32 %v788, 0.0
    %v853 = vmax.f32 %v789, 0.0
    %v854 = vmax.f32 %v790, 0.0
    %v855 = vmax.f32 %v791, 0.0
    %v856 = vmax.f32 %v792, 0.0
    %v857 = vmax.f32 %v793, 0.0
    %v858 = vmax.f32 %v794, 0.0
    %v859 = vmax.f32 %v795, 0.0
    %v860 = vmax.f32 %v796, 0.0
    %v861 = vmax.f32 %v797, 0.0
    %v862 = vmax.f32 %v798, 0.0
    %v863 = vmax.f32 %v799, 0.0
    %v864 = vmax.f32 %v800, 0.0
    %v865 = vmax.f32 %v801, 0.0
    %v866 = vmax.f32 %v802, 0.0
    %v867 = vmax.f32 %v803, 0.0
    %v868 = vmax.f32 %v804, 0.0
    %v869 = vmax.f32 %v805, 0.0
    %v870 = vmax.f32 %v806, 0.0
    %871 = vst [vmem:[#allocation2] sm:$0xff] 0.0
    %872 = vst [vmem:[#allocation2 + $0x8] sm:$0x3] 0.0
    %873 = vst [vmem:[#allocation2 + $0x10] sm:$0xff] 0.0
    %874 = vst [vmem:[#allocation2 + $0x18] sm:$0x3] 0.0
    %875 = vst [vmem:[#allocation2 + $0x20] sm:$0xff] 0.0
    %876 = vst [vmem:[#allocation2 + $0x28] sm:$0x3] 0.0
    %877 = vst [vmem:[#allocation2 + $0x30] sm:$0xff] 0.0
    %878 = vst [vmem:[#allocation2 + $0x38] sm:$0x3] 0.0
    %879 = vst [vmem:[#allocation2 + $0x40] sm:$0xff] 0.0
    %880 = vst [vmem:[#allocation2 + $0x48] sm:$0x3] 0.0
    %881 = vst [vmem:[#allocation2 + $0x50] sm:$0xff] 0.0
    %882 = vst [vmem:[#allocation2 + $0x58] sm:$0x3] 0.0
    %883 = vst [vmem:[#allocation2 + $0x60] sm:$0xff] 0.0
    %884 = vst [vmem:[#allocation2 + $0x68] sm:$0x3] 0.0
    %885 = vst [vmem:[#allocation2 + $0x70] sm:$0xff] 0.0
    %886 = vst [vmem:[#allocation2 + $0x78] sm:$0x3] 0.0
    %887 = vst [vmem:[#allocation2 + $0x80] sm:$0xff] 0.0
    %888 = vst [vmem:[#allocation2 + $0x88] sm:$0x3] 0.0
    %889 = vst [vmem:[#allocation2 + $0x90] sm:$0xff] 0.0
    %890 = vst [vmem:[#allocation2 + $0x98] sm:$0x3] 0.0
    %891 = vst [vmem:[#allocation2 + $0xa0] sm:$0xff] 0.0
    %892 = vst [vmem:[#allocation2 + $0xa8] sm:$0x3] 0.0
    %893 = vst [vmem:[#allocation2 + $0xb0] sm:$0xff] 0.0
    %894 = vst [vmem:[#allocation2 + $0xb8] sm:$0x3] 0.0
    %895 = vst [vmem:[#allocation2 + $0xc0] sm:$0xff] 0.0
    %896 = vst [vmem:[#allocation2 + $0xc8] sm:$0x3] 0.0
    %897 = vst [vmem:[#allocation2 + $0xd0] sm:$0xff] 0.0
    %898 = vst [vmem:[#allocation2 + $0xd8] sm:$0x3] 0.0
    %899 = vst [vmem:[#allocation2 + $0xe0] sm:$0xff] 0.0
    %900 = vst [vmem:[#allocation2 + $0xe8] sm:$0x3] 0.0
    %901 = vst [vmem:[#allocation2 + $0xf0] sm:$0xff] 0.0
    %902 = vst [vmem:[#allocation2 + $0xf8] sm:$0x3] 0.0
    %903 = vst [vmem:[#allocation2 + $0x100] sm:$0xff] 0.0
    %904 = vst [vmem:[#allocation2 + $0x108] sm:$0x3] 0.0
    %905 = vst [vmem:[#allocation2 + $0x110] sm:$0xff] 0.0
    %906 = vst [vmem:[#allocation2 + $0x118] sm:$0x3] 0.0
    %907 = vst [vmem:[#allocation2 + $0x120] sm:$0xff] 0.0
    %908 = vst [vmem:[#allocation2 + $0x128] sm:$0x3] 0.0
    %909 = vst [vmem:[#allocation2 + $0x130] sm:$0xff] 0.0
    %910 = vst [vmem:[#allocation2 + $0x138] sm:$0x3] 0.0
    %911 = vst [vmem:[#allocation2 + $0x140] sm:$0xff] 0.0
    %912 = vst [vmem:[#allocation2 + $0x148] sm:$0x3] 0.0
    %913 = vst [vmem:[#allocation2 + $0x150] sm:$0xff] 0.0
    %914 = vst [vmem:[#allocation2 + $0x158] sm:$0x3] 0.0
    %915 = vst [vmem:[#allocation2 + $0x160] sm:$0xff] 0.0
    %916 = vst [vmem:[#allocation2 + $0x168] sm:$0x3] 0.0
    %917 = vst [vmem:[#allocation2 + $0x170] sm:$0xff] 0.0
    %918 = vst [vmem:[#allocation2 + $0x178] sm:$0x3] 0.0
    %919 = vst [vmem:[#allocation2 + $0x180] sm:$0xff] 0.0
    %920 = vst [vmem:[#allocation2 + $0x188] sm:$0x3] 0.0
    %921 = vst [vmem:[#allocation2 + $0x190] sm:$0xff] 0.0
    %922 = vst [vmem:[#allocation2 + $0x198] sm:$0x3] 0.0
    %923 = vst [vmem:[#allocation2 + $0x1a0] sm:$0xff] 0.0
    %924 = vst [vmem:[#allocation2 + $0x1a8] sm:$0x3] 0.0
    %925 = vst [vmem:[#allocation2 + $0x1b0] sm:$0xff] 0.0
    %926 = vst [vmem:[#allocation2 + $0x1b8] sm:$0x3] 0.0
    %927 = vst [vmem:[#allocation2 + $0x1c0] sm:$0xff] 0.0
    %928 = vst [vmem:[#allocation2 + $0x1c8] sm:$0x3] 0.0
    %929 = vst [vmem:[#allocation2 + $0x1d0] sm:$0xff] 0.0
    %930 = vst [vmem:[#allocation2 + $0x1d8] sm:$0x3] 0.0
    %931 = vst [vmem:[#allocation2 + $0x1e0] sm:$0xff] 0.0
    %932 = vst [vmem:[#allocation2 + $0x1e8] sm:$0x3] 0.0
    %933 = vst [vmem:[#allocation2 + $0x1f0] sm:$0xff] 0.0
    %934 = vst [vmem:[#allocation2 + $0x1f8] sm:$0x3] 0.0
    %935 = vst [vmem:[#allocation2 + $0x200] sm:$0xff] 0.0
    %936 = vst [vmem:[#allocation2 + $0x208] sm:$0x3] 0.0
    %937 = vst [vmem:[#allocation2 + $0x210] sm:$0xff] 0.0
    %938 = vst [vmem:[#allocation2 + $0x218] sm:$0x3] 0.0
    %939 = vst [vmem:[#allocation2 + $0x220] sm:$0xff] 0.0
    %940 = vst [vmem:[#allocation2 + $0x228] sm:$0x3] 0.0
    %941 = vst [vmem:[#allocation2 + $0x230] sm:$0xff] 0.0
    %942 = vst [vmem:[#allocation2 + $0x238] sm:$0x3] 0.0
    %943 = vst [vmem:[#allocation2 + $0x240] sm:$0xff] 0.0
    %944 = vst [vmem:[#allocation2 + $0x248] sm:$0x3] 0.0
    %945 = vst [vmem:[#allocation2 + $0x250] sm:$0xff] 0.0
    %946 = vst [vmem:[#allocation2 + $0x258] sm:$0x3] 0.0
    %947 = vst [vmem:[#allocation2 + $0x260] sm:$0xff] 0.0
    %948 = vst [vmem:[#allocation2 + $0x268] sm:$0x3] 0.0
    %949 = vst [vmem:[#allocation2 + $0x270] sm:$0xff] 0.0
    %950 = vst [vmem:[#allocation2 + $0x278] sm:$0x3] 0.0
    %951 = vst [vmem:[#allocation2 + $0x280] sm:$0xff] 0.0
    %952 = vst [vmem:[#allocation2 + $0x288] sm:$0x3] 0.0
    %953 = vst [vmem:[#allocation2 + $0x290] sm:$0xff] 0.0
    %954 = vst [vmem:[#allocation2 + $0x298] sm:$0x3] 0.0
    %955 = vst [vmem:[#allocation2 + $0x2a0] sm:$0xff] 0.0
    %956 = vst [vmem:[#allocation2 + $0x2a8] sm:$0x3] 0.0
    %957 = vst [vmem:[#allocation2 + $0x2b0] sm:$0xff] 0.0
    %958 = vst [vmem:[#allocation2 + $0x2b8] sm:$0x3] 0.0
    %959 = vst [vmem:[#allocation2 + $0x2c0] sm:$0xff] 0.0
    %960 = vst [vmem:[#allocation2 + $0x2c8] sm:$0x3] 0.0
    %961 = vst [vmem:[#allocation2 + $0x2d0] sm:$0xff] 0.0
    %962 = vst [vmem:[#allocation2 + $0x2d8] sm:$0x3] 0.0
    %963 = vst [vmem:[#allocation2 + $0x2e0] sm:$0xff] 0.0
    %964 = vst [vmem:[#allocation2 + $0x2e8] sm:$0x3] 0.0
    %965 = vst [vmem:[#allocation2 + $0x2f0] sm:$0xff] 0.0
    %966 = vst [vmem:[#allocation2 + $0x2f8] sm:$0x3] 0.0
    %967 = vst [vmem:[#allocation2 + $0x300] sm:$0xff] 0.0
    %968 = vst [vmem:[#allocation2 + $0x308] sm:$0x3] 0.0
    %969 = vst [vmem:[#allocation2 + $0x310] sm:$0xff] 0.0
    %970 = vst [vmem:[#allocation2 + $0x318] sm:$0x3] 0.0
    %971 = vst [vmem:[#allocation2 + $0x320] sm:$0xff] 0.0
    %972 = vst [vmem:[#allocation2 + $0x328] sm:$0x3] 0.0
    %973 = vst [vmem:[#allocation2 + $0x330] sm:$0xff] 0.0
    %974 = vst [vmem:[#allocation2 + $0x338] sm:$0x3] 0.0
    %975 = vst [vmem:[#allocation2 + $0x340] sm:$0xff] 0.0
    %976 = vst [vmem:[#allocation2 + $0x348] sm:$0x3] 0.0
    %977 = vst [vmem:[#allocation2 + $0x350] sm:$0xff] 0.0
    %978 = vst [vmem:[#allocation2 + $0x358] sm:$0x3] 0.0
    %979 = vst [vmem:[#allocation2 + $0x360] sm:$0xff] 0.0
    %980 = vst [vmem:[#allocation2 + $0x368] sm:$0x3] 0.0
    %981 = vst [vmem:[#allocation2 + $0x370] sm:$0xff] 0.0
    %982 = vst [vmem:[#allocation2 + $0x378] sm:$0x3] 0.0
    %983 = vst [vmem:[#allocation2 + $0x380] sm:$0xff] 0.0
    %984 = vst [vmem:[#allocation2 + $0x388] sm:$0x3] 0.0
    %985 = vst [vmem:[#allocation2 + $0x390] sm:$0xff] 0.0
    %986 = vst [vmem:[#allocation2 + $0x398] sm:$0x3] 0.0
    %987 = vst [vmem:[#allocation2 + $0x3a0] sm:$0xff] 0.0
    %988 = vst [vmem:[#allocation2 + $0x3a8] sm:$0x3] 0.0
    %989 = vst [vmem:[#allocation2 + $0x3b0] sm:$0xff] 0.0
    %990 = vst [vmem:[#allocation2 + $0x3b8] sm:$0x3] 0.0
    %991 = vst [vmem:[#allocation2 + $0x3c0] sm:$0xff] 0.0
    %992 = vst [vmem:[#allocation2 + $0x3c8] sm:$0x3] 0.0
    %993 = vst [vmem:[#allocation2 + $0x3d0] sm:$0xff] 0.0
    %994 = vst [vmem:[#allocation2 + $0x3d8] sm:$0x3] 0.0
    %995 = vst [vmem:[#allocation2 + $0x3e0] sm:$0xff] 0.0
    %996 = vst [vmem:[#allocation2 + $0x3e8] sm:$0x3] 0.0
    %997 = vst [vmem:[#allocation2 + $0x3f0] sm:$0xff] 0.0
    %998 = vst [vmem:[#allocation2 + $0x3f8] sm:$0x3] 0.0
    %999 = vst [vmem:[#allocation2 + $0x400] sm:$0xff] 0.0
    %1000 = vst [vmem:[#allocation2 + $0x408] sm:$0x3] 0.0
    %1001 = vst [vmem:[#allocation2 + $0x410] sm:$0xff] 0.0
    %1002 = vst [vmem:[#allocation2 + $0x418] sm:$0x3] 0.0
    %1003 = vst [vmem:[#allocation2 + $0x420] sm:$0xff] 0.0
    %1004 = vst [vmem:[#allocation2 + $0x428] sm:$0x3] 0.0
    %1005 = vst [vmem:[#allocation2 + $0x430] sm:$0xff] 0.0
    %1006 = vst [vmem:[#allocation2 + $0x438] sm:$0x3] 0.0
    %1007 = vst [vmem:[#allocation2 + $0x440] sm:$0xff] 0.0
    %1008 = vst [vmem:[#allocation2 + $0x448] sm:$0x3] 0.0
    %1009 = vst [vmem:[#allocation2 + $0x450] sm:$0xff] 0.0
    %1010 = vst [vmem:[#allocation2 + $0x458] sm:$0x3] 0.0
    %1011 = vst [vmem:[#allocation2 + $0x460] sm:$0xff] 0.0
    %1012 = vst [vmem:[#allocation2 + $0x468] sm:$0x3] 0.0
    %1013 = vst [vmem:[#allocation2 + $0x470] sm:$0xff] 0.0
    %1014 = vst [vmem:[#allocation2 + $0x478] sm:$0x3] 0.0
    %1015 = vst [vmem:[#allocation2 + $0x480] sm:$0xff] 0.0
    %1016 = vst [vmem:[#allocation2 + $0x488] sm:$0x3] 0.0
    %1017 = vst [vmem:[#allocation2 + $0x490] sm:$0xff] 0.0
    %1018 = vst [vmem:[#allocation2 + $0x498] sm:$0x3] 0.0
    %1019 = vst [vmem:[#allocation2 + $0x4a0] sm:$0xff] 0.0
    %1020 = vst [vmem:[#allocation2 + $0x4a8] sm:$0x3] 0.0
    %1021 = vst [vmem:[#allocation2 + $0x4b0] sm:$0xff] 0.0
    %1022 = vst [vmem:[#allocation2 + $0x4b8] sm:$0x3] 0.0
    %1023 = vst [vmem:[#allocation2 + $0x4c0] sm:$0xff] 0.0
    %1024 = vst [vmem:[#allocation2 + $0x4c8] sm:$0x3] 0.0
    %1025 = vst [vmem:[#allocation2 + $0x4d0] sm:$0xff] 0.0
    %1026 = vst [vmem:[#allocation2 + $0x4d8] sm:$0x3] 0.0
    %1027 = vst [vmem:[#allocation2 + $0x4e0] sm:$0xff] 0.0
    %1028 = vst [vmem:[#allocation2 + $0x4e8] sm:$0x3] 0.0
    %1029 = vst [vmem:[#allocation2 + $0x4f0] sm:$0xff] 0.0
    %1030 = vst [vmem:[#allocation2 + $0x4f8] sm:$0x3] 0.0
    %s1031 = scalar_lea.vmem [#allocation2], 16
    %1032 = vst [vmem:[%s1031 + $0x1] sm:$0xff] %v807
    %1033 = vst [vmem:[%s1031 + $0x11] sm:$0xff] %v808
    %1034 = vst [vmem:[%s1031 + $0x21] sm:$0xff] %v809
    %1035 = vst [vmem:[%s1031 + $0x31] sm:$0xff] %v810
    %1036 = vst [vmem:[%s1031 + $0x41] sm:$0xff] %v811
    %1037 = vst [vmem:[%s1031 + $0x51] sm:$0xff] %v812
    %1038 = vst [vmem:[%s1031 + $0x61] sm:$0xff] %v813
    %1039 = vst [vmem:[%s1031 + $0x71] sm:$0xff] %v814
    %1040 = vst [vmem:[%s1031 + $0xa1] sm:$0xff] %v815
    %1041 = vst [vmem:[%s1031 + $0xb1] sm:$0xff] %v816
    %1042 = vst [vmem:[%s1031 + $0xc1] sm:$0xff] %v817
    %1043 = vst [vmem:[%s1031 + $0xd1] sm:$0xff] %v818
    %1044 = vst [vmem:[%s1031 + $0xe1] sm:$0xff] %v819
    %1045 = vst [vmem:[%s1031 + $0xf1] sm:$0xff] %v820
    %1046 = vst [vmem:[%s1031 + $0x101] sm:$0xff] %v821
    %1047 = vst [vmem:[%s1031 + $0x111] sm:$0xff] %v822
    %1048 = vst [vmem:[%s1031 + $0x141] sm:$0xff] %v823
    %1049 = vst [vmem:[%s1031 + $0x151] sm:$0xff] %v824
    %1050 = vst [vmem:[%s1031 + $0x161] sm:$0xff] %v825
    %1051 = vst [vmem:[%s1031 + $0x171] sm:$0xff] %v826
    %1052 = vst [vmem:[%s1031 + $0x181] sm:$0xff] %v827
    %1053 = vst [vmem:[%s1031 + $0x191] sm:$0xff] %v828
    %1054 = vst [vmem:[%s1031 + $0x1a1] sm:$0xff] %v829
    %1055 = vst [vmem:[%s1031 + $0x1b1] sm:$0xff] %v830
    %1056 = vst [vmem:[%s1031 + $0x1e1] sm:$0xff] %v831
    %1057 = vst [vmem:[%s1031 + $0x1f1] sm:$0xff] %v832
    %1058 = vst [vmem:[%s1031 + $0x201] sm:$0xff] %v833
    %1059 = vst [vmem:[%s1031 + $0x211] sm:$0xff] %v834
    %1060 = vst [vmem:[%s1031 + $0x221] sm:$0xff] %v835
    %1061 = vst [vmem:[%s1031 + $0x231] sm:$0xff] %v836
    %1062 = vst [vmem:[%s1031 + $0x241] sm:$0xff] %v837
    %1063 = vst [vmem:[%s1031 + $0x251] sm:$0xff] %v838
    %1064 = vst [vmem:[%s1031 + $0x281] sm:$0xff] %v839
    %1065 = vst [vmem:[%s1031 + $0x291] sm:$0xff] %v840
    %1066 = vst [vmem:[%s1031 + $0x2a1] sm:$0xff] %v841
    %1067 = vst [vmem:[%s1031 + $0x2b1] sm:$0xff] %v842
    %1068 = vst [vmem:[%s1031 + $0x2c1] sm:$0xff] %v843
    %1069 = vst [vmem:[%s1031 + $0x2d1] sm:$0xff] %v844
    %1070 = vst [vmem:[%s1031 + $0x2e1] sm:$0xff] %v845
    %1071 = vst [vmem:[%s1031 + $0x2f1] sm:$0xff] %v846
    %1072 = vst [vmem:[%s1031 + $0x321] sm:$0xff] %v847
    %1073 = vst [vmem:[%s1031 + $0x331] sm:$0xff] %v848
    %1074 = vst [vmem:[%s1031 + $0x341] sm:$0xff] %v849
    %1075 = vst [vmem:[%s1031 + $0x351] sm:$0xff] %v850
    %1076 = vst [vmem:[%s1031 + $0x361] sm:$0xff] %v851
    %1077 = vst [vmem:[%s1031 + $0x371] sm:$0xff] %v852
    %1078 = vst [vmem:[%s1031 + $0x381] sm:$0xff] %v853
    %1079 = vst [vmem:[%s1031 + $0x391] sm:$0xff] %v854
    %1080 = vst [vmem:[%s1031 + $0x3c1] sm:$0xff] %v855
    %1081 = vst [vmem:[%s1031 + $0x3d1] sm:$0xff] %v856
    %1082 = vst [vmem:[%s1031 + $0x3e1] sm:$0xff] %v857
    %1083 = vst [vmem:[%s1031 + $0x3f1] sm:$0xff] %v858
    %1084 = vst [vmem:[%s1031 + $0x401] sm:$0xff] %v859
    %1085 = vst [vmem:[%s1031 + $0x411] sm:$0xff] %v860
    %1086 = vst [vmem:[%s1031 + $0x421] sm:$0xff] %v861
    %1087 = vst [vmem:[%s1031 + $0x431] sm:$0xff] %v862
    %1088 = vst [vmem:[%s1031 + $0x461] sm:$0xff] %v863
    %1089 = vst [vmem:[%s1031 + $0x471] sm:$0xff] %v864
    %1090 = vst [vmem:[%s1031 + $0x481] sm:$0xff] %v865
    %1091 = vst [vmem:[%s1031 + $0x491] sm:$0xff] %v866
    %1092 = vst [vmem:[%s1031 + $0x4a1] sm:$0xff] %v867
    %1093 = vst [vmem:[%s1031 + $0x4b1] sm:$0xff] %v868
    %1094 = vst [vmem:[%s1031 + $0x4c1] sm:$0xff] %v869
    %1095 = vst [vmem:[%s1031 + $0x4d1] sm:$0xff] %v870
    %s1096 = scalar_lea.vmem [#allocation2], 960
    %v1097 = vld [vmem:[%s1096] sm:$0xff]
    %v1098 = vld [vmem:[%s1096 + $0x10] sm:$0xff]
    %v1099 = vld [vmem:[%s1096 + $0x20] sm:$0xff]
    %v1100 = vld [vmem:[%s1096 + $0x30] sm:$0xff]
    %v1101 = vld [vmem:[%s1096 + $0x40] sm:$0xff]
    %v1102 = vld [vmem:[%s1096 + $0x50] sm:$0xff]
    %v1103 = vld [vmem:[%s1096 + $0x60] sm:$0xff]
    %v1104 = vld [vmem:[%s1096 + $0x70] sm:$0xff]
    %v1105 = vld [vmem:[%s1096 + $0xa0] sm:$0xff]
    %v1106 = vld [vmem:[%s1096 + $0xb0] sm:$0xff]
    %v1107 = vld [vmem:[%s1096 + $0xc0] sm:$0xff]
    %v1108 = vld [vmem:[%s1096 + $0xd0] sm:$0xff]
    %v1109 = vld [vmem:[%s1096 + $0xe0] sm:$0xff]
    %v1110 = vld [vmem:[%s1096 + $0xf0] sm:$0xff]
    %v1111 = vld [vmem:[%s1096 + $0x100] sm:$0xff]
    %v1112 = vld [vmem:[%s1096 + $0x110] sm:$0xff]
    %v1113 = vpack.c.bf16 %v1098, %v1097
    %v1114 = vpack.c.bf16 %v1100, %v1099
    %v1115 = vpack.c.bf16 %v1102, %v1101
    %v1116 = vpack.c.bf16 %v1104, %v1103
    %v1117 = vpack.c.bf16 %v1106, %v1105
    %v1118 = vpack.c.bf16 %v1108, %v1107
    %v1119 = vpack.c.bf16 %v1110, %v1109
    %v1120 = vpack.c.bf16 %v1112, %v1111
    %v1121 = vld [vmem:[%s2] sm:$0xf]
    %v1122 = vld [vmem:[%s2 + $0x4] sm:$0xf]
    %v1123 = vld [vmem:[%s2 + $0x8] sm:$0xf]
    %v1124 = vld [vmem:[%s2 + $0xc] sm:$0xf]
    %v1125 = vld [vmem:[%s2 + $0x10] sm:$0xf]
    %v1126 = vld [vmem:[%s2 + $0x14] sm:$0xf]
    %v1127 = vld [vmem:[%s2 + $0x18] sm:$0xf]
    %v1128 = vld [vmem:[%s2 + $0x1c] sm:$0xf]
    %v1129 = vld [vmem:[%s2 + $0x20] sm:$0xf]
    %v1130 = vld [vmem:[%s2 + $0x24] sm:$0xf]
    %v1131 = vld [vmem:[%s2 + $0x28] sm:$0xf]
    %v1132 = vld [vmem:[%s2 + $0x2c] sm:$0xf]
    %v1133 = vld [vmem:[%s2 + $0x30] sm:$0xf]
    %v1134 = vld [vmem:[%s2 + $0x34] sm:$0xf]
    %v1135 = vld [vmem:[%s2 + $0x38] sm:$0xf]
    %v1136 = vld [vmem:[%s2 + $0x3c] sm:$0xf]
    %s1137 = scalar_lea.vmem [#allocation2], 640
    %v1138 = vld [vmem:[%s1137 + $0x1] sm:$0xff]
    %v1139 = vld [vmem:[%s1137 + $0x11] sm:$0xff]
    %v1140 = vld [vmem:[%s1137 + $0x21] sm:$0xff]
    %v1141 = vld [vmem:[%s1137 + $0x31] sm:$0xff]
    %v1142 = vld [vmem:[%s1137 + $0x41] sm:$0xff]
    %v1143 = vld [vmem:[%s1137 + $0x51] sm:$0xff]
    %v1144 = vld [vmem:[%s1137 + $0x61] sm:$0xff]
    %v1145 = vld [vmem:[%s1137 + $0x71] sm:$0xff]
    %v1146 = vld [vmem:[%s1137 + $0xa1] sm:$0xff]
    %v1147 = vld [vmem:[%s1137 + $0xb1] sm:$0xff]
    %v1148 = vld [vmem:[%s1137 + $0xc1] sm:$0xff]
    %v1149 = vld [vmem:[%s1137 + $0xd1] sm:$0xff]
    %v1150 = vld [vmem:[%s1137 + $0xe1] sm:$0xff]
    %v1151 = vld [vmem:[%s1137 + $0xf1] sm:$0xff]
    %v1152 = vld [vmem:[%s1137 + $0x101] sm:$0xff]
    %v1153 = vld [vmem:[%s1137 + $0x111] sm:$0xff]
    %v1154 = vpack.c.bf16 %v1139, %v1138
    %v1155 = vpack.c.bf16 %v1141, %v1140
    %v1156 = vpack.c.bf16 %v1143, %v1142
    %v1157 = vpack.c.bf16 %v1145, %v1144
    %v1158 = vpack.c.bf16 %v1147, %v1146
    %v1159 = vpack.c.bf16 %v1149, %v1148
    %v1160 = vpack.c.bf16 %v1151, %v1150
    %v1161 = vpack.c.bf16 %v1153, %v1152
    %s1162 = scalar_lea.vmem %s2, 64
    %v1163 = vld [vmem:[%s1162] sm:$0xf]
    %v1164 = vld [vmem:[%s1162 + $0x4] sm:$0xf]
    %v1165 = vld [vmem:[%s1162 + $0x8] sm:$0xf]
    %v1166 = vld [vmem:[%s1162 + $0xc] sm:$0xf]
    %v1167 = vld [vmem:[%s1162 + $0x10] sm:$0xf]
    %v1168 = vld [vmem:[%s1162 + $0x14] sm:$0xf]
    %v1169 = vld [vmem:[%s1162 + $0x18] sm:$0xf]
    %v1170 = vld [vmem:[%s1162 + $0x1c] sm:$0xf]
    %v1171 = vld [vmem:[%s1162 + $0x20] sm:$0xf]
    %v1172 = vld [vmem:[%s1162 + $0x24] sm:$0xf]
    %v1173 = vld [vmem:[%s1162 + $0x28] sm:$0xf]
    %v1174 = vld [vmem:[%s1162 + $0x2c] sm:$0xf]
    %v1175 = vld [vmem:[%s1162 + $0x30] sm:$0xf]
    %v1176 = vld [vmem:[%s1162 + $0x34] sm:$0xf]
    %v1177 = vld [vmem:[%s1162 + $0x38] sm:$0xf]
    %v1178 = vld [vmem:[%s1162 + $0x3c] sm:$0xf]
    %v1195 = vunpack.c.l.b16 %v1163
    %v1196 = vunpack.c.l.b16 %v1164
    %v1197 = vunpack.c.l.b16 %v1165
    %v1198 = vunpack.c.l.b16 %v1166
    %v1199 = vunpack.c.l.b16 %v1167
    %v1200 = vunpack.c.l.b16 %v1168
    %v1201 = vunpack.c.l.b16 %v1169
    %v1202 = vunpack.c.l.b16 %v1170
    %v1203 = vunpack.c.l.b16 %v1171
    %v1204 = vunpack.c.l.b16 %v1172
    %v1205 = vunpack.c.l.b16 %v1173
    %v1206 = vunpack.c.l.b16 %v1174
    %v1207 = vunpack.c.l.b16 %v1175
    %v1208 = vunpack.c.l.b16 %v1176
    %v1209 = vunpack.c.l.b16 %v1177
    %v1210 = vunpack.c.l.b16 %v1178
    %v1211 = vpack.c.b16 %v1196, %v1195
    %v1212 = vpack.c.b16 %v1198, %v1197
    %v1213 = vpack.c.b16 %v1200, %v1199
    %v1214 = vpack.c.b16 %v1202, %v1201
    %v1215 = vpack.c.b16 %v1204, %v1203
    %v1216 = vpack.c.b16 %v1206, %v1205
    %v1217 = vpack.c.b16 %v1208, %v1207
    %v1218 = vpack.c.b16 %v1210, %v1209
    %1227 = vmatpush.bf16.msra.mxu0 %v1218
    %1228 = vmatpush.bf16.msra.mxu0 %v1217
    %1229 = vmatpush.bf16.msra.mxu0 %v1216
    %1230 = vmatpush.bf16.msra.mxu0 %v1215
    %1231 = vmatpush.bf16.msra.mxu0 %v1214
    %1232 = vmatpush.bf16.msra.mxu0 %v1213
    %1233 = vmatpush.bf16.msra.mxu0 %v1212
    %1234 = vmatpush.bf16.msra.mxu0 %v1211
    %1235 = vmatmul.bf16.gmra.mxu0 %v1154
    %v1236 = vpop.f32.mrf.mxu0
    %v1237 = vadd.f32 0.0, %v1236
    %v1238 = vpop.f32.mrf.mxu0
    %v1239 = vadd.f32 0.0, %v1238
    %1240 = vmatmul.bf16.gmra.mxu0 %v1155
    %v1241 = vpop.f32.mrf.mxu0
    %v1242 = vadd.f32 0.0, %v1241
    %v1243 = vpop.f32.mrf.mxu0
    %v1244 = vadd.f32 0.0, %v1243
    %1245 = vmatmul.bf16.gmra.mxu0 %v1156
    %v1246 = vpop.f32.mrf.mxu0
    %v1247 = vadd.f32 0.0, %v1246
    %v1248 = vpop.f32.mrf.mxu0
    %v1249 = vadd.f32 0.0, %v1248
    %1250 = vmatmul.bf16.gmra.mxu0 %v1157
    %v1251 = vpop.f32.mrf.mxu0
    %v1252 = vadd.f32 0.0, %v1251
    %v1253 = vpop.f32.mrf.mxu0
    %v1254 = vadd.f32 0.0, %v1253
    %1255 = vmatmul.bf16.gmra.mxu0 %v1158
    %v1256 = vpop.f32.mrf.mxu0
    %v1257 = vadd.f32 0.0, %v1256
    %v1258 = vpop.f32.mrf.mxu0
    %v1259 = vadd.f32 0.0, %v1258
    %1260 = vmatmul.bf16.gmra.mxu0 %v1159
    %v1261 = vpop.f32.mrf.mxu0
    %v1262 = vadd.f32 0.0, %v1261
    %v1263 = vpop.f32.mrf.mxu0
    %v1264 = vadd.f32 0.0, %v1263
    %1265 = vmatmul.bf16.gmra.mxu0 %v1160
    %v1266 = vpop.f32.mrf.mxu0
    %v1267 = vadd.f32 0.0, %v1266
    %v1268 = vpop.f32.mrf.mxu0
    %v1269 = vadd.f32 0.0, %v1268
    %1270 = vmatmul.bf16.gmra.mxu0 %v1161
    %v1271 = vpop.f32.mrf.mxu0
    %v1272 = vadd.f32 0.0, %v1271
    %v1273 = vpop.f32.mrf.mxu0
    %v1274 = vadd.f32 0.0, %v1273
    %1275 = vdwg.mxu0
    %v1292 = vunpack.c.l.b16 %v1121
    %v1293 = vunpack.c.l.b16 %v1122
    %v1294 = vunpack.c.l.b16 %v1123
    %v1295 = vunpack.c.l.b16 %v1124
    %v1296 = vunpack.c.l.b16 %v1125
    %v1297 = vunpack.c.l.b16 %v1126
    %v1298 = vunpack.c.l.b16 %v1127
    %v1299 = vunpack.c.l.b16 %v1128
    %v1300 = vunpack.c.l.b16 %v1129
    %v1301 = vunpack.c.l.b16 %v1130
    %v1302 = vunpack.c.l.b16 %v1131
    %v1303 = vunpack.c.l.b16 %v1132
    %v1304 = vunpack.c.l.b16 %v1133
    %v1305 = vunpack.c.l.b16 %v1134
    %v1306 = vunpack.c.l.b16 %v1135
    %v1307 = vunpack.c.l.b16 %v1136
    %v1308 = vpack.c.b16 %v1293, %v1292
    %v1309 = vpack.c.b16 %v1295, %v1294
    %v1310 = vpack.c.b16 %v1297, %v1296
    %v1311 = vpack.c.b16 %v1299, %v1298
    %v1312 = vpack.c.b16 %v1301, %v1300
    %v1313 = vpack.c.b16 %v1303, %v1302
    %v1314 = vpack.c.b16 %v1305, %v1304
    %v1315 = vpack.c.b16 %v1307, %v1306
    %1324 = vmatpush.bf16.msra.mxu0 %v1315
    %1325 = vmatpush.bf16.msra.mxu0 %v1314
    %1326 = vmatpush.bf16.msra.mxu0 %v1313
    %1327 = vmatpush.bf16.msra.mxu0 %v1312
    %1328 = vmatpush.bf16.msra.mxu0 %v1311
    %1329 = vmatpush.bf16.msra.mxu0 %v1310
    %1330 = vmatpush.bf16.msra.mxu0 %v1309
    %1331 = vmatpush.bf16.msra.mxu0 %v1308
    %1332 = vmatmul.bf16.gmra.mxu0 %v1113
    %v1333 = vpop.f32.mrf.mxu0
    %v1334 = vadd.f32 %v1237, %v1333
    %v1335 = vpop.f32.mrf.mxu0
    %v1336 = vadd.f32 %v1239, %v1335
    %1337 = vmatmul.bf16.gmra.mxu0 %v1114
    %v1338 = vpop.f32.mrf.mxu0
    %v1339 = vadd.f32 %v1242, %v1338
    %v1340 = vpop.f32.mrf.mxu0
    %v1341 = vadd.f32 %v1244, %v1340
    %1342 = vmatmul.bf16.gmra.mxu0 %v1115
    %v1343 = vpop.f32.mrf.mxu0
    %v1344 = vadd.f32 %v1247, %v1343
    %v1345 = vpop.f32.mrf.mxu0
    %v1346 = vadd.f32 %v1249, %v1345
    %1347 = vmatmul.bf16.gmra.mxu0 %v1116
    %v1348 = vpop.f32.mrf.mxu0
    %v1349 = vadd.f32 %v1252, %v1348
    %v1350 = vpop.f32.mrf.mxu0
    %v1351 = vadd.f32 %v1254, %v1350
    %1352 = vmatmul.bf16.gmra.mxu0 %v1117
    %v1353 = vpop.f32.mrf.mxu0
    %v1354 = vadd.f32 %v1257, %v1353
    %v1355 = vpop.f32.mrf.mxu0
    %v1356 = vadd.f32 %v1259, %v1355
    %1357 = vmatmul.bf16.gmra.mxu0 %v1118
    %v1358 = vpop.f32.mrf.mxu0
    %v1359 = vadd.f32 %v1262, %v1358
    %v1360 = vpop.f32.mrf.mxu0
    %v1361 = vadd.f32 %v1264, %v1360
    %1362 = vmatmul.bf16.gmra.mxu0 %v1119
    %v1363 = vpop.f32.mrf.mxu0
    %v1364 = vadd.f32 %v1267, %v1363
    %v1365 = vpop.f32.mrf.mxu0
    %v1366 = vadd.f32 %v1269, %v1365
    %1367 = vmatmul.bf16.gmra.mxu0 %v1120
    %v1368 = vpop.f32.mrf.mxu0
    %v1369 = vadd.f32 %v1272, %v1368
    %v1370 = vpop.f32.mrf.mxu0
    %v1371 = vadd.f32 %v1274, %v1370
    %1372 = vdwg.mxu0
    %v1373 = vld [vmem:[%s1096 + $0x1] sm:$0xff]
    %v1374 = vld [vmem:[%s1096 + $0x11] sm:$0xff]
    %v1375 = vld [vmem:[%s1096 + $0x21] sm:$0xff]
    %v1376 = vld [vmem:[%s1096 + $0x31] sm:$0xff]
    %v1377 = vld [vmem:[%s1096 + $0x41] sm:$0xff]
    %v1378 = vld [vmem:[%s1096 + $0x51] sm:$0xff]
    %v1379 = vld [vmem:[%s1096 + $0x61] sm:$0xff]
    %v1380 = vld [vmem:[%s1096 + $0x71] sm:$0xff]
    %v1381 = vld [vmem:[%s1096 + $0xa1] sm:$0xff]
    %v1382 = vld [vmem:[%s1096 + $0xb1] sm:$0xff]
    %v1383 = vld [vmem:[%s1096 + $0xc1] sm:$0xff]
    %v1384 = vld [vmem:[%s1096 + $0xd1] sm:$0xff]
    %v1385 = vld [vmem:[%s1096 + $0xe1] sm:$0xff]
    %v1386 = vld [vmem:[%s1096 + $0xf1] sm:$0xff]
    %v1387 = vld [vmem:[%s1096 + $0x101] sm:$0xff]
    %v1388 = vld [vmem:[%s1096 + $0x111] sm:$0xff]
    %v1389 = vpack.c.bf16 %v1374, %v1373
    %v1390 = vpack.c.bf16 %v1376, %v1375
    %v1391 = vpack.c.bf16 %v1378, %v1377
    %v1392 = vpack.c.bf16 %v1380, %v1379
    %v1393 = vpack.c.bf16 %v1382, %v1381
    %v1394 = vpack.c.bf16 %v1384, %v1383
    %v1395 = vpack.c.bf16 %v1386, %v1385
    %v1396 = vpack.c.bf16 %v1388, %v1387
    %s1397 = scalar_lea.vmem %s2, 128
    %v1398 = vld [vmem:[%s1397] sm:$0xf]
    %v1399 = vld [vmem:[%s1397 + $0x4] sm:$0xf]
    %v1400 = vld [vmem:[%s1397 + $0x8] sm:$0xf]
    %v1401 = vld [vmem:[%s1397 + $0xc] sm:$0xf]
    %v1402 = vld [vmem:[%s1397 + $0x10] sm:$0xf]
    %v1403 = vld [vmem:[%s1397 + $0x14] sm:$0xf]
    %v1404 = vld [vmem:[%s1397 + $0x18] sm:$0xf]
    %v1405 = vld [vmem:[%s1397 + $0x1c] sm:$0xf]
    %v1406 = vld [vmem:[%s1397 + $0x20] sm:$0xf]
    %v1407 = vld [vmem:[%s1397 + $0x24] sm:$0xf]
    %v1408 = vld [vmem:[%s1397 + $0x28] sm:$0xf]
    %v1409 = vld [vmem:[%s1397 + $0x2c] sm:$0xf]
    %v1410 = vld [vmem:[%s1397 + $0x30] sm:$0xf]
    %v1411 = vld [vmem:[%s1397 + $0x34] sm:$0xf]
    %v1412 = vld [vmem:[%s1397 + $0x38] sm:$0xf]
    %v1413 = vld [vmem:[%s1397 + $0x3c] sm:$0xf]
    %v1430 = vunpack.c.l.b16 %v1398
    %v1431 = vunpack.c.l.b16 %v1399
    %v1432 = vunpack.c.l.b16 %v1400
    %v1433 = vunpack.c.l.b16 %v1401
    %v1434 = vunpack.c.l.b16 %v1402
    %v1435 = vunpack.c.l.b16 %v1403
    %v1436 = vunpack.c.l.b16 %v1404
    %v1437 = vunpack.c.l.b16 %v1405
    %v1438 = vunpack.c.l.b16 %v1406
    %v1439 = vunpack.c.l.b16 %v1407
    %v1440 = vunpack.c.l.b16 %v1408
    %v1441 = vunpack.c.l.b16 %v1409
    %v1442 = vunpack.c.l.b16 %v1410
    %v1443 = vunpack.c.l.b16 %v1411
    %v1444 = vunpack.c.l.b16 %v1412
    %v1445 = vunpack.c.l.b16 %v1413
    %v1446 = vpack.c.b16 %v1431, %v1430
    %v1447 = vpack.c.b16 %v1433, %v1432
    %v1448 = vpack.c.b16 %v1435, %v1434
    %v1449 = vpack.c.b16 %v1437, %v1436
    %v1450 = vpack.c.b16 %v1439, %v1438
    %v1451 = vpack.c.b16 %v1441, %v1440
    %v1452 = vpack.c.b16 %v1443, %v1442
    %v1453 = vpack.c.b16 %v1445, %v1444
    %1462 = vmatpush.bf16.msra.mxu0 %v1453
    %1463 = vmatpush.bf16.msra.mxu0 %v1452
    %1464 = vmatpush.bf16.msra.mxu0 %v1451
    %1465 = vmatpush.bf16.msra.mxu0 %v1450
    %1466 = vmatpush.bf16.msra.mxu0 %v1449
    %1467 = vmatpush.bf16.msra.mxu0 %v1448
    %1468 = vmatpush.bf16.msra.mxu0 %v1447
    %1469 = vmatpush.bf16.msra.mxu0 %v1446
    %1470 = vmatmul.bf16.gmra.mxu0 %v1389
    %v1471 = vpop.f32.mrf.mxu0
    %v1472 = vadd.f32 0.0, %v1471
    %v1473 = vpop.f32.mrf.mxu0
    %v1474 = vadd.f32 0.0, %v1473
    %1475 = vmatmul.bf16.gmra.mxu0 %v1390
    %v1476 = vpop.f32.mrf.mxu0
    %v1477 = vadd.f32 0.0, %v1476
    %v1478 = vpop.f32.mrf.mxu0
    %v1479 = vadd.f32 0.0, %v1478
    %1480 = vmatmul.bf16.gmra.mxu0 %v1391
    %v1481 = vpop.f32.mrf.mxu0
    %v1482 = vadd.f32 0.0, %v1481
    %v1483 = vpop.f32.mrf.mxu0
    %v1484 = vadd.f32 0.0, %v1483
    %1485 = vmatmul.bf16.gmra.mxu0 %v1392
    %v1486 = vpop.f32.mrf.mxu0
    %v1487 = vadd.f32 0.0, %v1486
    %v1488 = vpop.f32.mrf.mxu0
    %v1489 = vadd.f32 0.0, %v1488
    %1490 = vmatmul.bf16.gmra.mxu0 %v1393
    %v1491 = vpop.f32.mrf.mxu0
    %v1492 = vadd.f32 0.0, %v1491
    %v1493 = vpop.f32.mrf.mxu0
    %v1494 = vadd.f32 0.0, %v1493
    %1495 = vmatmul.bf16.gmra.mxu0 %v1394
    %v1496 = vpop.f32.mrf.mxu0
    %v1497 = vadd.f32 0.0, %v1496
    %v1498 = vpop.f32.mrf.mxu0
    %v1499 = vadd.f32 0.0, %v1498
    %1500 = vmatmul.bf16.gmra.mxu0 %v1395
    %v1501 = vpop.f32.mrf.mxu0
    %v1502 = vadd.f32 0.0, %v1501
    %v1503 = vpop.f32.mrf.mxu0
    %v1504 = vadd.f32 0.0, %v1503
    %1505 = vmatmul.bf16.gmra.mxu0 %v1396
    %v1506 = vpop.f32.mrf.mxu0
    %v1507 = vadd.f32 0.0, %v1506
    %v1508 = vpop.f32.mrf.mxu0
    %v1509 = vadd.f32 0.0, %v1508
    %1510 = vdwg.mxu0
    %v1511 = vadd.f32 %v1334, %v1472
    %v1512 = vadd.f32 %v1336, %v1474
    %v1513 = vadd.f32 %v1339, %v1477
    %v1514 = vadd.f32 %v1341, %v1479
    %v1515 = vadd.f32 %v1344, %v1482
    %v1516 = vadd.f32 %v1346, %v1484
    %v1517 = vadd.f32 %v1349, %v1487
    %v1518 = vadd.f32 %v1351, %v1489
    %v1519 = vadd.f32 %v1354, %v1492
    %v1520 = vadd.f32 %v1356, %v1494
    %v1521 = vadd.f32 %v1359, %v1497
    %v1522 = vadd.f32 %v1361, %v1499
    %v1523 = vadd.f32 %v1364, %v1502
    %v1524 = vadd.f32 %v1366, %v1504
    %v1525 = vadd.f32 %v1369, %v1507
    %v1526 = vadd.f32 %v1371, %v1509
    %s1527 = scalar_lea.vmem [#allocation2], 336
    %v1528 = vld [vmem:[%s1527] sm:$0xff]
    %v1529 = vld [vmem:[%s1527 + $0x10] sm:$0xff]
    %v1530 = vld [vmem:[%s1527 + $0x20] sm:$0xff]
    %v1531 = vld [vmem:[%s1527 + $0x30] sm:$0xff]
    %v1532 = vld [vmem:[%s1527 + $0x40] sm:$0xff]
    %v1533 = vld [vmem:[%s1527 + $0x50] sm:$0xff]
    %v1534 = vld [vmem:[%s1527 + $0x60] sm:$0xff]
    %v1535 = vld [vmem:[%s1527 + $0x70] sm:$0xff]
    %v1536 = vld [vmem:[%s1527 + $0xa0] sm:$0xff]
    %v1537 = vld [vmem:[%s1527 + $0xb0] sm:$0xff]
    %v1538 = vld [vmem:[%s1527 + $0xc0] sm:$0xff]
    %v1539 = vld [vmem:[%s1527 + $0xd0] sm:$0xff]
    %v1540 = vld [vmem:[%s1527 + $0xe0] sm:$0xff]
    %v1541 = vld [vmem:[%s1527 + $0xf0] sm:$0xff]
    %v1542 = vld [vmem:[%s1527 + $0x100] sm:$0xff]
    %v1543 = vld [vmem:[%s1527 + $0x110] sm:$0xff]
    %v1544 = vpack.c.bf16 %v1529, %v1528
    %v1545 = vpack.c.bf16 %v1531, %v1530
    %v1546 = vpack.c.bf16 %v1533, %v1532
    %v1547 = vpack.c.bf16 %v1535, %v1534
    %v1548 = vpack.c.bf16 %v1537, %v1536
    %v1549 = vpack.c.bf16 %v1539, %v1538
    %v1550 = vpack.c.bf16 %v1541, %v1540
    %v1551 = vpack.c.bf16 %v1543, %v1542
    %s1552 = scalar_lea.vmem %s2, 192
    %v1553 = vld [vmem:[%s1552] sm:$0xf]
    %v1554 = vld [vmem:[%s1552 + $0x4] sm:$0xf]
    %v1555 = vld [vmem:[%s1552 + $0x8] sm:$0xf]
    %v1556 = vld [vmem:[%s1552 + $0xc] sm:$0xf]
    %v1557 = vld [vmem:[%s1552 + $0x10] sm:$0xf]
    %v1558 = vld [vmem:[%s1552 + $0x14] sm:$0xf]
    %v1559 = vld [vmem:[%s1552 + $0x18] sm:$0xf]
    %v1560 = vld [vmem:[%s1552 + $0x1c] sm:$0xf]
    %v1561 = vld [vmem:[%s1552 + $0x20] sm:$0xf]
    %v1562 = vld [vmem:[%s1552 + $0x24] sm:$0xf]
    %v1563 = vld [vmem:[%s1552 + $0x28] sm:$0xf]
    %v1564 = vld [vmem:[%s1552 + $0x2c] sm:$0xf]
    %v1565 = vld [vmem:[%s1552 + $0x30] sm:$0xf]
    %v1566 = vld [vmem:[%s1552 + $0x34] sm:$0xf]
    %v1567 = vld [vmem:[%s1552 + $0x38] sm:$0xf]
    %v1568 = vld [vmem:[%s1552 + $0x3c] sm:$0xf]
    %v1585 = vunpack.c.l.b16 %v1553
    %v1586 = vunpack.c.l.b16 %v1554
    %v1587 = vunpack.c.l.b16 %v1555
    %v1588 = vunpack.c.l.b16 %v1556
    %v1589 = vunpack.c.l.b16 %v1557
    %v1590 = vunpack.c.l.b16 %v1558
    %v1591 = vunpack.c.l.b16 %v1559
    %v1592 = vunpack.c.l.b16 %v1560
    %v1593 = vunpack.c.l.b16 %v1561
    %v1594 = vunpack.c.l.b16 %v1562
    %v1595 = vunpack.c.l.b16 %v1563
    %v1596 = vunpack.c.l.b16 %v1564
    %v1597 = vunpack.c.l.b16 %v1565
    %v1598 = vunpack.c.l.b16 %v1566
    %v1599 = vunpack.c.l.b16 %v1567
    %v1600 = vunpack.c.l.b16 %v1568
    %v1601 = vpack.c.b16 %v1586, %v1585
    %v1602 = vpack.c.b16 %v1588, %v1587
    %v1603 = vpack.c.b16 %v1590, %v1589
    %v1604 = vpack.c.b16 %v1592, %v1591
    %v1605 = vpack.c.b16 %v1594, %v1593
    %v1606 = vpack.c.b16 %v1596, %v1595
    %v1607 = vpack.c.b16 %v1598, %v1597
    %v1608 = vpack.c.b16 %v1600, %v1599
    %1617 = vmatpush.bf16.msra.mxu0 %v1608
    %1618 = vmatpush.bf16.msra.mxu0 %v1607
    %1619 = vmatpush.bf16.msra.mxu0 %v1606
    %1620 = vmatpush.bf16.msra.mxu0 %v1605
    %1621 = vmatpush.bf16.msra.mxu0 %v1604
    %1622 = vmatpush.bf16.msra.mxu0 %v1603
    %1623 = vmatpush.bf16.msra.mxu0 %v1602
    %1624 = vmatpush.bf16.msra.mxu0 %v1601
    %1625 = vmatmul.bf16.gmra.mxu0 %v1544
    %v1626 = vpop.f32.mrf.mxu0
    %v1627 = vadd.f32 0.0, %v1626
    %v1628 = vpop.f32.mrf.mxu0
    %v1629 = vadd.f32 0.0, %v1628
    %1630 = vmatmul.bf16.gmra.mxu0 %v1545
    %v1631 = vpop.f32.mrf.mxu0
    %v1632 = vadd.f32 0.0, %v1631
    %v1633 = vpop.f32.mrf.mxu0
    %v1634 = vadd.f32 0.0, %v1633
    %1635 = vmatmul.bf16.gmra.mxu0 %v1546
    %v1636 = vpop.f32.mrf.mxu0
    %v1637 = vadd.f32 0.0, %v1636
    %v1638 = vpop.f32.mrf.mxu0
    %v1639 = vadd.f32 0.0, %v1638
    %1640 = vmatmul.bf16.gmra.mxu0 %v1547
    %v1641 = vpop.f32.mrf.mxu0
    %v1642 = vadd.f32 0.0, %v1641
    %v1643 = vpop.f32.mrf.mxu0
    %v1644 = vadd.f32 0.0, %v1643
    %1645 = vmatmul.bf16.gmra.mxu0 %v1548
    %v1646 = vpop.f32.mrf.mxu0
    %v1647 = vadd.f32 0.0, %v1646
    %v1648 = vpop.f32.mrf.mxu0
    %v1649 = vadd.f32 0.0, %v1648
    %1650 = vmatmul.bf16.gmra.mxu0 %v1549
    %v1651 = vpop.f32.mrf.mxu0
    %v1652 = vadd.f32 0.0, %v1651
    %v1653 = vpop.f32.mrf.mxu0
    %v1654 = vadd.f32 0.0, %v1653
    %1655 = vmatmul.bf16.gmra.mxu0 %v1550
    %v1656 = vpop.f32.mrf.mxu0
    %v1657 = vadd.f32 0.0, %v1656
    %v1658 = vpop.f32.mrf.mxu0
    %v1659 = vadd.f32 0.0, %v1658
    %1660 = vmatmul.bf16.gmra.mxu0 %v1551
    %v1661 = vpop.f32.mrf.mxu0
    %v1662 = vadd.f32 0.0, %v1661
    %v1663 = vpop.f32.mrf.mxu0
    %v1664 = vadd.f32 0.0, %v1663
    %1665 = vdwg.mxu0
    %v1666 = vadd.f32 %v1511, %v1627
    %v1667 = vadd.f32 %v1512, %v1629
    %v1668 = vadd.f32 %v1513, %v1632
    %v1669 = vadd.f32 %v1514, %v1634
    %v1670 = vadd.f32 %v1515, %v1637
    %v1671 = vadd.f32 %v1516, %v1639
    %v1672 = vadd.f32 %v1517, %v1642
    %v1673 = vadd.f32 %v1518, %v1644
    %v1674 = vadd.f32 %v1519, %v1647
    %v1675 = vadd.f32 %v1520, %v1649
    %v1676 = vadd.f32 %v1521, %v1652
    %v1677 = vadd.f32 %v1522, %v1654
    %v1678 = vadd.f32 %v1523, %v1657
    %v1679 = vadd.f32 %v1524, %v1659
    %v1680 = vadd.f32 %v1525, %v1662
    %v1681 = vadd.f32 %v1526, %v1664
    %v1682 = vld [vmem:[%s1031 + $0x1] sm:$0xff]
    %v1683 = vld [vmem:[%s1031 + $0x11] sm:$0xff]
    %v1684 = vld [vmem:[%s1031 + $0x21] sm:$0xff]
    %v1685 = vld [vmem:[%s1031 + $0x31] sm:$0xff]
    %v1686 = vld [vmem:[%s1031 + $0x41] sm:$0xff]
    %v1687 = vld [vmem:[%s1031 + $0x51] sm:$0xff]
    %v1688 = vld [vmem:[%s1031 + $0x61] sm:$0xff]
    %v1689 = vld [vmem:[%s1031 + $0x71] sm:$0xff]
    %v1690 = vld [vmem:[%s1031 + $0xa1] sm:$0xff]
    %v1691 = vld [vmem:[%s1031 + $0xb1] sm:$0xff]
    %v1692 = vld [vmem:[%s1031 + $0xc1] sm:$0xff]
    %v1693 = vld [vmem:[%s1031 + $0xd1] sm:$0xff]
    %v1694 = vld [vmem:[%s1031 + $0xe1] sm:$0xff]
    %v1695 = vld [vmem:[%s1031 + $0xf1] sm:$0xff]
    %v1696 = vld [vmem:[%s1031 + $0x101] sm:$0xff]
    %v1697 = vld [vmem:[%s1031 + $0x111] sm:$0xff]
    %v1698 = vpack.c.bf16 %v1683, %v1682
    %v1699 = vpack.c.bf16 %v1685, %v1684
    %v1700 = vpack.c.bf16 %v1687, %v1686
    %v1701 = vpack.c.bf16 %v1689, %v1688
    %v1702 = vpack.c.bf16 %v1691, %v1690
    %v1703 = vpack.c.bf16 %v1693, %v1692
    %v1704 = vpack.c.bf16 %v1695, %v1694
    %v1705 = vpack.c.bf16 %v1697, %v1696
    %s1706 = scalar_lea.vmem %s2, 256
    %v1707 = vld [vmem:[%s1706] sm:$0xf]
    %v1708 = vld [vmem:[%s1706 + $0x4] sm:$0xf]
    %v1709 = vld [vmem:[%s1706 + $0x8] sm:$0xf]
    %v1710 = vld [vmem:[%s1706 + $0xc] sm:$0xf]
    %v1711 = vld [vmem:[%s1706 + $0x10] sm:$0xf]
    %v1712 = vld [vmem:[%s1706 + $0x14] sm:$0xf]
    %v1713 = vld [vmem:[%s1706 + $0x18] sm:$0xf]
    %v1714 = vld [vmem:[%s1706 + $0x1c] sm:$0xf]
    %v1715 = vld [vmem:[%s1706 + $0x20] sm:$0xf]
    %v1716 = vld [vmem:[%s1706 + $0x24] sm:$0xf]
    %v1717 = vld [vmem:[%s1706 + $0x28] sm:$0xf]
    %v1718 = vld [vmem:[%s1706 + $0x2c] sm:$0xf]
    %v1719 = vld [vmem:[%s1706 + $0x30] sm:$0xf]
    %v1720 = vld [vmem:[%s1706 + $0x34] sm:$0xf]
    %v1721 = vld [vmem:[%s1706 + $0x38] sm:$0xf]
    %v1722 = vld [vmem:[%s1706 + $0x3c] sm:$0xf]
    %v1739 = vunpack.c.l.b16 %v1707
    %v1740 = vunpack.c.l.b16 %v1708
    %v1741 = vunpack.c.l.b16 %v1709
    %v1742 = vunpack.c.l.b16 %v1710
    %v1743 = vunpack.c.l.b16 %v1711
    %v1744 = vunpack.c.l.b16 %v1712
    %v1745 = vunpack.c.l.b16 %v1713
    %v1746 = vunpack.c.l.b16 %v1714
    %v1747 = vunpack.c.l.b16 %v1715
    %v1748 = vunpack.c.l.b16 %v1716
    %v1749 = vunpack.c.l.b16 %v1717
    %v1750 = vunpack.c.l.b16 %v1718
    %v1751 = vunpack.c.l.b16 %v1719
    %v1752 = vunpack.c.l.b16 %v1720
    %v1753 = vunpack.c.l.b16 %v1721
    %v1754 = vunpack.c.l.b16 %v1722
    %v1755 = vpack.c.b16 %v1740, %v1739
    %v1756 = vpack.c.b16 %v1742, %v1741
    %v1757 = vpack.c.b16 %v1744, %v1743
    %v1758 = vpack.c.b16 %v1746, %v1745
    %v1759 = vpack.c.b16 %v1748, %v1747
    %v1760 = vpack.c.b16 %v1750, %v1749
    %v1761 = vpack.c.b16 %v1752, %v1751
    %v1762 = vpack.c.b16 %v1754, %v1753
    %1771 = vmatpush.bf16.msra.mxu0 %v1762
    %1772 = vmatpush.bf16.msra.mxu0 %v1761
    %1773 = vmatpush.bf16.msra.mxu0 %v1760
    %1774 = vmatpush.bf16.msra.mxu0 %v1759
    %1775 = vmatpush.bf16.msra.mxu0 %v1758
    %1776 = vmatpush.bf16.msra.mxu0 %v1757
    %1777 = vmatpush.bf16.msra.mxu0 %v1756
    %1778 = vmatpush.bf16.msra.mxu0 %v1755
    %1779 = vmatmul.bf16.gmra.mxu0 %v1698
    %v1780 = vpop.f32.mrf.mxu0
    %v1781 = vadd.f32 0.0, %v1780
    %v1782 = vpop.f32.mrf.mxu0
    %v1783 = vadd.f32 0.0, %v1782
    %1784 = vmatmul.bf16.gmra.mxu0 %v1699
    %v1785 = vpop.f32.mrf.mxu0
    %v1786 = vadd.f32 0.0, %v1785
    %v1787 = vpop.f32.mrf.mxu0
    %v1788 = vadd.f32 0.0, %v1787
    %1789 = vmatmul.bf16.gmra.mxu0 %v1700
    %v1790 = vpop.f32.mrf.mxu0
    %v1791 = vadd.f32 0.0, %v1790
    %v1792 = vpop.f32.mrf.mxu0
    %v1793 = vadd.f32 0.0, %v1792
    %1794 = vmatmul.bf16.gmra.mxu0 %v1701
    %v1795 = vpop.f32.mrf.mxu0
    %v1796 = vadd.f32 0.0, %v1795
    %v1797 = vpop.f32.mrf.mxu0
    %v1798 = vadd.f32 0.0, %v1797
    %1799 = vmatmul.bf16.gmra.mxu0 %v1702
    %v1800 = vpop.f32.mrf.mxu0
    %v1801 = vadd.f32 0.0, %v1800
    %v1802 = vpop.f32.mrf.mxu0
    %v1803 = vadd.f32 0.0, %v1802
    %1804 = vmatmul.bf16.gmra.mxu0 %v1703
    %v1805 = vpop.f32.mrf.mxu0
    %v1806 = vadd.f32 0.0, %v1805
    %v1807 = vpop.f32.mrf.mxu0
    %v1808 = vadd.f32 0.0, %v1807
    %1809 = vmatmul.bf16.gmra.mxu0 %v1704
    %v1810 = vpop.f32.mrf.mxu0
    %v1811 = vadd.f32 0.0, %v1810
    %v1812 = vpop.f32.mrf.mxu0
    %v1813 = vadd.f32 0.0, %v1812
    %1814 = vmatmul.bf16.gmra.mxu0 %v1705
    %v1815 = vpop.f32.mrf.mxu0
    %v1816 = vadd.f32 0.0, %v1815
    %v1817 = vpop.f32.mrf.mxu0
    %v1818 = vadd.f32 0.0, %v1817
    %1819 = vdwg.mxu0
    %v1820 = vadd.f32 %v1666, %v1781
    %v1821 = vadd.f32 %v1667, %v1783
    %v1822 = vadd.f32 %v1668, %v1786
    %v1823 = vadd.f32 %v1669, %v1788
    %v1824 = vadd.f32 %v1670, %v1791
    %v1825 = vadd.f32 %v1671, %v1793
    %v1826 = vadd.f32 %v1672, %v1796
    %v1827 = vadd.f32 %v1673, %v1798
    %v1828 = vadd.f32 %v1674, %v1801
    %v1829 = vadd.f32 %v1675, %v1803
    %v1830 = vadd.f32 %v1676, %v1806
    %v1831 = vadd.f32 %v1677, %v1808
    %v1832 = vadd.f32 %v1678, %v1811
    %v1833 = vadd.f32 %v1679, %v1813
    %v1834 = vadd.f32 %v1680, %v1816
    %v1835 = vadd.f32 %v1681, %v1818
    %v1836 = vld [vmem:[%s1527 + $0x1] sm:$0xff]
    %v1837 = vld [vmem:[%s1527 + $0x11] sm:$0xff]
    %v1838 = vld [vmem:[%s1527 + $0x21] sm:$0xff]
    %v1839 = vld [vmem:[%s1527 + $0x31] sm:$0xff]
    %v1840 = vld [vmem:[%s1527 + $0x41] sm:$0xff]
    %v1841 = vld [vmem:[%s1527 + $0x51] sm:$0xff]
    %v1842 = vld [vmem:[%s1527 + $0x61] sm:$0xff]
    %v1843 = vld [vmem:[%s1527 + $0x71] sm:$0xff]
    %v1844 = vld [vmem:[%s1527 + $0xa1] sm:$0xff]
    %v1845 = vld [vmem:[%s1527 + $0xb1] sm:$0xff]
    %v1846 = vld [vmem:[%s1527 + $0xc1] sm:$0xff]
    %v1847 = vld [vmem:[%s1527 + $0xd1] sm:$0xff]
    %v1848 = vld [vmem:[%s1527 + $0xe1] sm:$0xff]
    %v1849 = vld [vmem:[%s1527 + $0xf1] sm:$0xff]
    %v1850 = vld [vmem:[%s1527 + $0x101] sm:$0xff]
    %v1851 = vld [vmem:[%s1527 + $0x111] sm:$0xff]
    %v1852 = vpack.c.bf16 %v1837, %v1836
    %v1853 = vpack.c.bf16 %v1839, %v1838
    %v1854 = vpack.c.bf16 %v1841, %v1840
    %v1855 = vpack.c.bf16 %v1843, %v1842
    %v1856 = vpack.c.bf16 %v1845, %v1844
    %v1857 = vpack.c.bf16 %v1847, %v1846
    %v1858 = vpack.c.bf16 %v1849, %v1848
    %v1859 = vpack.c.bf16 %v1851, %v1850
    %s1860 = scalar_lea.vmem %s2, 320
    %v1861 = vld [vmem:[%s1860] sm:$0xf]
    %v1862 = vld [vmem:[%s1860 + $0x4] sm:$0xf]
    %v1863 = vld [vmem:[%s1860 + $0x8] sm:$0xf]
    %v1864 = vld [vmem:[%s1860 + $0xc] sm:$0xf]
    %v1865 = vld [vmem:[%s1860 + $0x10] sm:$0xf]
    %v1866 = vld [vmem:[%s1860 + $0x14] sm:$0xf]
    %v1867 = vld [vmem:[%s1860 + $0x18] sm:$0xf]
    %v1868 = vld [vmem:[%s1860 + $0x1c] sm:$0xf]
    %v1869 = vld [vmem:[%s1860 + $0x20] sm:$0xf]
    %v1870 = vld [vmem:[%s1860 + $0x24] sm:$0xf]
    %v1871 = vld [vmem:[%s1860 + $0x28] sm:$0xf]
    %v1872 = vld [vmem:[%s1860 + $0x2c] sm:$0xf]
    %v1873 = vld [vmem:[%s1860 + $0x30] sm:$0xf]
    %v1874 = vld [vmem:[%s1860 + $0x34] sm:$0xf]
    %v1875 = vld [vmem:[%s1860 + $0x38] sm:$0xf]
    %v1876 = vld [vmem:[%s1860 + $0x3c] sm:$0xf]
    %v1893 = vunpack.c.l.b16 %v1861
    %v1894 = vunpack.c.l.b16 %v1862
    %v1895 = vunpack.c.l.b16 %v1863
    %v1896 = vunpack.c.l.b16 %v1864
    %v1897 = vunpack.c.l.b16 %v1865
    %v1898 = vunpack.c.l.b16 %v1866
    %v1899 = vunpack.c.l.b16 %v1867
    %v1900 = vunpack.c.l.b16 %v1868
    %v1901 = vunpack.c.l.b16 %v1869
    %v1902 = vunpack.c.l.b16 %v1870
    %v1903 = vunpack.c.l.b16 %v1871
    %v1904 = vunpack.c.l.b16 %v1872
    %v1905 = vunpack.c.l.b16 %v1873
    %v1906 = vunpack.c.l.b16 %v1874
    %v1907 = vunpack.c.l.b16 %v1875
    %v1908 = vunpack.c.l.b16 %v1876
    %v1909 = vpack.c.b16 %v1894, %v1893
    %v1910 = vpack.c.b16 %v1896, %v1895
    %v1911 = vpack.c.b16 %v1898, %v1897
    %v1912 = vpack.c.b16 %v1900, %v1899
    %v1913 = vpack.c.b16 %v1902, %v1901
    %v1914 = vpack.c.b16 %v1904, %v1903
    %v1915 = vpack.c.b16 %v1906, %v1905
    %v1916 = vpack.c.b16 %v1908, %v1907
    %1925 = vmatpush.bf16.msra.mxu0 %v1916
    %1926 = vmatpush.bf16.msra.mxu0 %v1915
    %1927 = vmatpush.bf16.msra.mxu0 %v1914
    %1928 = vmatpush.bf16.msra.mxu0 %v1913
    %1929 = vmatpush.bf16.msra.mxu0 %v1912
    %1930 = vmatpush.bf16.msra.mxu0 %v1911
    %1931 = vmatpush.bf16.msra.mxu0 %v1910
    %1932 = vmatpush.bf16.msra.mxu0 %v1909
    %1933 = vmatmul.bf16.gmra.mxu0 %v1852
    %v1934 = vpop.f32.mrf.mxu0
    %v1935 = vadd.f32 0.0, %v1934
    %v1936 = vpop.f32.mrf.mxu0
    %v1937 = vadd.f32 0.0, %v1936
    %1938 = vmatmul.bf16.gmra.mxu0 %v1853
    %v1939 = vpop.f32.mrf.mxu0
    %v1940 = vadd.f32 0.0, %v1939
    %v1941 = vpop.f32.mrf.mxu0
    %v1942 = vadd.f32 0.0, %v1941
    %1943 = vmatmul.bf16.gmra.mxu0 %v1854
    %v1944 = vpop.f32.mrf.mxu0
    %v1945 = vadd.f32 0.0, %v1944
    %v1946 = vpop.f32.mrf.mxu0
    %v1947 = vadd.f32 0.0, %v1946
    %1948 = vmatmul.bf16.gmra.mxu0 %v1855
    %v1949 = vpop.f32.mrf.mxu0
    %v1950 = vadd.f32 0.0, %v1949
    %v1951 = vpop.f32.mrf.mxu0
    %v1952 = vadd.f32 0.0, %v1951
    %1953 = vmatmul.bf16.gmra.mxu0 %v1856
    %v1954 = vpop.f32.mrf.mxu0
    %v1955 = vadd.f32 0.0, %v1954
    %v1956 = vpop.f32.mrf.mxu0
    %v1957 = vadd.f32 0.0, %v1956
    %1958 = vmatmul.bf16.gmra.mxu0 %v1857
    %v1959 = vpop.f32.mrf.mxu0
    %v1960 = vadd.f32 0.0, %v1959
    %v1961 = vpop.f32.mrf.mxu0
    %v1962 = vadd.f32 0.0, %v1961
    %1963 = vmatmul.bf16.gmra.mxu0 %v1858
    %v1964 = vpop.f32.mrf.mxu0
    %v1965 = vadd.f32 0.0, %v1964
    %v1966 = vpop.f32.mrf.mxu0
    %v1967 = vadd.f32 0.0, %v1966
    %1968 = vmatmul.bf16.gmra.mxu0 %v1859
    %v1969 = vpop.f32.mrf.mxu0
    %v1970 = vadd.f32 0.0, %v1969
    %v1971 = vpop.f32.mrf.mxu0
    %v1972 = vadd.f32 0.0, %v1971
    %1973 = vdwg.mxu0
    %v1974 = vadd.f32 %v1820, %v1935
    %v1975 = vadd.f32 %v1821, %v1937
    %v1976 = vadd.f32 %v1822, %v1940
    %v1977 = vadd.f32 %v1823, %v1942
    %v1978 = vadd.f32 %v1824, %v1945
    %v1979 = vadd.f32 %v1825, %v1947
    %v1980 = vadd.f32 %v1826, %v1950
    %v1981 = vadd.f32 %v1827, %v1952
    %v1982 = vadd.f32 %v1828, %v1955
    %v1983 = vadd.f32 %v1829, %v1957
    %v1984 = vadd.f32 %v1830, %v1960
    %v1985 = vadd.f32 %v1831, %v1962
    %v1986 = vadd.f32 %v1832, %v1965
    %v1987 = vadd.f32 %v1833, %v1967
    %v1988 = vadd.f32 %v1834, %v1970
    %v1989 = vadd.f32 %v1835, %v1972
    %s1990 = scalar_lea.vmem [#allocation2], 976
    %v1991 = vld [vmem:[%s1990] sm:$0xff]
    %v1992 = vld [vmem:[%s1990 + $0x10] sm:$0xff]
    %v1993 = vld [vmem:[%s1990 + $0x20] sm:$0xff]
    %v1994 = vld [vmem:[%s1990 + $0x30] sm:$0xff]
    %v1995 = vld [vmem:[%s1990 + $0x40] sm:$0xff]
    %v1996 = vld [vmem:[%s1990 + $0x50] sm:$0xff]
    %v1997 = vld [vmem:[%s1990 + $0x60] sm:$0xff]
    %v1998 = vld [vmem:[%s1990 + $0x70] sm:$0xff]
    %v1999 = vld [vmem:[%s1990 + $0xa0] sm:$0xff]
    %v2000 = vld [vmem:[%s1990 + $0xb0] sm:$0xff]
    %v2001 = vld [vmem:[%s1990 + $0xc0] sm:$0xff]
    %v2002 = vld [vmem:[%s1990 + $0xd0] sm:$0xff]
    %v2003 = vld [vmem:[%s1990 + $0xe0] sm:$0xff]
    %v2004 = vld [vmem:[%s1990 + $0xf0] sm:$0xff]
    %v2005 = vld [vmem:[%s1990 + $0x100] sm:$0xff]
    %v2006 = vld [vmem:[%s1990 + $0x110] sm:$0xff]
    %v2007 = vpack.c.bf16 %v1992, %v1991
    %v2008 = vpack.c.bf16 %v1994, %v1993
    %v2009 = vpack.c.bf16 %v1996, %v1995
    %v2010 = vpack.c.bf16 %v1998, %v1997
    %v2011 = vpack.c.bf16 %v2000, %v1999
    %v2012 = vpack.c.bf16 %v2002, %v2001
    %v2013 = vpack.c.bf16 %v2004, %v2003
    %v2014 = vpack.c.bf16 %v2006, %v2005
    %s2015 = scalar_lea.vmem %s2, 384
    %v2016 = vld [vmem:[%s2015] sm:$0xf]
    %v2017 = vld [vmem:[%s2015 + $0x4] sm:$0xf]
    %v2018 = vld [vmem:[%s2015 + $0x8] sm:$0xf]
    %v2019 = vld [vmem:[%s2015 + $0xc] sm:$0xf]
    %v2020 = vld [vmem:[%s2015 + $0x10] sm:$0xf]
    %v2021 = vld [vmem:[%s2015 + $0x14] sm:$0xf]
    %v2022 = vld [vmem:[%s2015 + $0x18] sm:$0xf]
    %v2023 = vld [vmem:[%s2015 + $0x1c] sm:$0xf]
    %v2024 = vld [vmem:[%s2015 + $0x20] sm:$0xf]
    %v2025 = vld [vmem:[%s2015 + $0x24] sm:$0xf]
    %v2026 = vld [vmem:[%s2015 + $0x28] sm:$0xf]
    %v2027 = vld [vmem:[%s2015 + $0x2c] sm:$0xf]
    %v2028 = vld [vmem:[%s2015 + $0x30] sm:$0xf]
    %v2029 = vld [vmem:[%s2015 + $0x34] sm:$0xf]
    %v2030 = vld [vmem:[%s2015 + $0x38] sm:$0xf]
    %v2031 = vld [vmem:[%s2015 + $0x3c] sm:$0xf]
    %v2048 = vunpack.c.l.b16 %v2016
    %v2049 = vunpack.c.l.b16 %v2017
    %v2050 = vunpack.c.l.b16 %v2018
    %v2051 = vunpack.c.l.b16 %v2019
    %v2052 = vunpack.c.l.b16 %v2020
    %v2053 = vunpack.c.l.b16 %v2021
    %v2054 = vunpack.c.l.b16 %v2022
    %v2055 = vunpack.c.l.b16 %v2023
    %v2056 = vunpack.c.l.b16 %v2024
    %v2057 = vunpack.c.l.b16 %v2025
    %v2058 = vunpack.c.l.b16 %v2026
    %v2059 = vunpack.c.l.b16 %v2027
    %v2060 = vunpack.c.l.b16 %v2028
    %v2061 = vunpack.c.l.b16 %v2029
    %v2062 = vunpack.c.l.b16 %v2030
    %v2063 = vunpack.c.l.b16 %v2031
    %v2064 = vpack.c.b16 %v2049, %v2048
    %v2065 = vpack.c.b16 %v2051, %v2050
    %v2066 = vpack.c.b16 %v2053, %v2052
    %v2067 = vpack.c.b16 %v2055, %v2054
    %v2068 = vpack.c.b16 %v2057, %v2056
    %v2069 = vpack.c.b16 %v2059, %v2058
    %v2070 = vpack.c.b16 %v2061, %v2060
    %v2071 = vpack.c.b16 %v2063, %v2062
    %2080 = vmatpush.bf16.msra.mxu0 %v2071
    %2081 = vmatpush.bf16.msra.mxu0 %v2070
    %2082 = vmatpush.bf16.msra.mxu0 %v2069
    %2083 = vmatpush.bf16.msra.mxu0 %v2068
    %2084 = vmatpush.bf16.msra.mxu0 %v2067
    %2085 = vmatpush.bf16.msra.mxu0 %v2066
    %2086 = vmatpush.bf16.msra.mxu0 %v2065
    %2087 = vmatpush.bf16.msra.mxu0 %v2064
    %2088 = vmatmul.bf16.gmra.mxu0 %v2007
    %v2089 = vpop.f32.mrf.mxu0
    %v2090 = vadd.f32 0.0, %v2089
    %v2091 = vpop.f32.mrf.mxu0
    %v2092 = vadd.f32 0.0, %v2091
    %2093 = vmatmul.bf16.gmra.mxu0 %v2008
    %v2094 = vpop.f32.mrf.mxu0
    %v2095 = vadd.f32 0.0, %v2094
    %v2096 = vpop.f32.mrf.mxu0
    %v2097 = vadd.f32 0.0, %v2096
    %2098 = vmatmul.bf16.gmra.mxu0 %v2009
    %v2099 = vpop.f32.mrf.mxu0
    %v2100 = vadd.f32 0.0, %v2099
    %v2101 = vpop.f32.mrf.mxu0
    %v2102 = vadd.f32 0.0, %v2101
    %2103 = vmatmul.bf16.gmra.mxu0 %v2010
    %v2104 = vpop.f32.mrf.mxu0
    %v2105 = vadd.f32 0.0, %v2104
    %v2106 = vpop.f32.mrf.mxu0
    %v2107 = vadd.f32 0.0, %v2106
    %2108 = vmatmul.bf16.gmra.mxu0 %v2011
    %v2109 = vpop.f32.mrf.mxu0
    %v2110 = vadd.f32 0.0, %v2109
    %v2111 = vpop.f32.mrf.mxu0
    %v2112 = vadd.f32 0.0, %v2111
    %2113 = vmatmul.bf16.gmra.mxu0 %v2012
    %v2114 = vpop.f32.mrf.mxu0
    %v2115 = vadd.f32 0.0, %v2114
    %v2116 = vpop.f32.mrf.mxu0
    %v2117 = vadd.f32 0.0, %v2116
    %2118 = vmatmul.bf16.gmra.mxu0 %v2013
    %v2119 = vpop.f32.mrf.mxu0
    %v2120 = vadd.f32 0.0, %v2119
    %v2121 = vpop.f32.mrf.mxu0
    %v2122 = vadd.f32 0.0, %v2121
    %2123 = vmatmul.bf16.gmra.mxu0 %v2014
    %v2124 = vpop.f32.mrf.mxu0
    %v2125 = vadd.f32 0.0, %v2124
    %v2126 = vpop.f32.mrf.mxu0
    %v2127 = vadd.f32 0.0, %v2126
    %2128 = vdwg.mxu0
    %v2129 = vadd.f32 %v1974, %v2090
    %v2130 = vadd.f32 %v1975, %v2092
    %v2131 = vadd.f32 %v1976, %v2095
    %v2132 = vadd.f32 %v1977, %v2097
    %v2133 = vadd.f32 %v1978, %v2100
    %v2134 = vadd.f32 %v1979, %v2102
    %v2135 = vadd.f32 %v1980, %v2105
    %v2136 = vadd.f32 %v1981, %v2107
    %v2137 = vadd.f32 %v1982, %v2110
    %v2138 = vadd.f32 %v1983, %v2112
    %v2139 = vadd.f32 %v1984, %v2115
    %v2140 = vadd.f32 %v1985, %v2117
    %v2141 = vadd.f32 %v1986, %v2120
    %v2142 = vadd.f32 %v1987, %v2122
    %v2143 = vadd.f32 %v1988, %v2125
    %v2144 = vadd.f32 %v1989, %v2127
    %s2145 = scalar_lea.vmem [#allocation2], 656
    %v2146 = vld [vmem:[%s2145 + $0x1] sm:$0xff]
    %v2147 = vld [vmem:[%s2145 + $0x11] sm:$0xff]
    %v2148 = vld [vmem:[%s2145 + $0x21] sm:$0xff]
    %v2149 = vld [vmem:[%s2145 + $0x31] sm:$0xff]
    %v2150 = vld [vmem:[%s2145 + $0x41] sm:$0xff]
    %v2151 = vld [vmem:[%s2145 + $0x51] sm:$0xff]
    %v2152 = vld [vmem:[%s2145 + $0x61] sm:$0xff]
    %v2153 = vld [vmem:[%s2145 + $0x71] sm:$0xff]
    %v2154 = vld [vmem:[%s2145 + $0xa1] sm:$0xff]
    %v2155 = vld [vmem:[%s2145 + $0xb1] sm:$0xff]
    %v2156 = vld [vmem:[%s2145 + $0xc1] sm:$0xff]
    %v2157 = vld [vmem:[%s2145 + $0xd1] sm:$0xff]
    %v2158 = vld [vmem:[%s2145 + $0xe1] sm:$0xff]
    %v2159 = vld [vmem:[%s2145 + $0xf1] sm:$0xff]
    %v2160 = vld [vmem:[%s2145 + $0x101] sm:$0xff]
    %v2161 = vld [vmem:[%s2145 + $0x111] sm:$0xff]
    %v2162 = vpack.c.bf16 %v2147, %v2146
    %v2163 = vpack.c.bf16 %v2149, %v2148
    %v2164 = vpack.c.bf16 %v2151, %v2150
    %v2165 = vpack.c.bf16 %v2153, %v2152
    %v2166 = vpack.c.bf16 %v2155, %v2154
    %v2167 = vpack.c.bf16 %v2157, %v2156
    %v2168 = vpack.c.bf16 %v2159, %v2158
    %v2169 = vpack.c.bf16 %v2161, %v2160
    %s2170 = scalar_lea.vmem %s2, 448
    %v2171 = vld [vmem:[%s2170] sm:$0xf]
    %v2172 = vld [vmem:[%s2170 + $0x4] sm:$0xf]
    %v2173 = vld [vmem:[%s2170 + $0x8] sm:$0xf]
    %v2174 = vld [vmem:[%s2170 + $0xc] sm:$0xf]
    %v2175 = vld [vmem:[%s2170 + $0x10] sm:$0xf]
    %v2176 = vld [vmem:[%s2170 + $0x14] sm:$0xf]
    %v2177 = vld [vmem:[%s2170 + $0x18] sm:$0xf]
    %v2178 = vld [vmem:[%s2170 + $0x1c] sm:$0xf]
    %v2179 = vld [vmem:[%s2170 + $0x20] sm:$0xf]
    %v2180 = vld [vmem:[%s2170 + $0x24] sm:$0xf]
    %v2181 = vld [vmem:[%s2170 + $0x28] sm:$0xf]
    %v2182 = vld [vmem:[%s2170 + $0x2c] sm:$0xf]
    %v2183 = vld [vmem:[%s2170 + $0x30] sm:$0xf]
    %v2184 = vld [vmem:[%s2170 + $0x34] sm:$0xf]
    %v2185 = vld [vmem:[%s2170 + $0x38] sm:$0xf]
    %v2186 = vld [vmem:[%s2170 + $0x3c] sm:$0xf]
    %v2203 = vunpack.c.l.b16 %v2171
    %v2204 = vunpack.c.l.b16 %v2172
    %v2205 = vunpack.c.l.b16 %v2173
    %v2206 = vunpack.c.l.b16 %v2174
    %v2207 = vunpack.c.l.b16 %v2175
    %v2208 = vunpack.c.l.b16 %v2176
    %v2209 = vunpack.c.l.b16 %v2177
    %v2210 = vunpack.c.l.b16 %v2178
    %v2211 = vunpack.c.l.b16 %v2179
    %v2212 = vunpack.c.l.b16 %v2180
    %v2213 = vunpack.c.l.b16 %v2181
    %v2214 = vunpack.c.l.b16 %v2182
    %v2215 = vunpack.c.l.b16 %v2183
    %v2216 = vunpack.c.l.b16 %v2184
    %v2217 = vunpack.c.l.b16 %v2185
    %v2218 = vunpack.c.l.b16 %v2186
    %v2219 = vpack.c.b16 %v2204, %v2203
    %v2220 = vpack.c.b16 %v2206, %v2205
    %v2221 = vpack.c.b16 %v2208, %v2207
    %v2222 = vpack.c.b16 %v2210, %v2209
    %v2223 = vpack.c.b16 %v2212, %v2211
    %v2224 = vpack.c.b16 %v2214, %v2213
    %v2225 = vpack.c.b16 %v2216, %v2215
    %v2226 = vpack.c.b16 %v2218, %v2217
    %2235 = vmatpush.bf16.msra.mxu0 %v2226
    %2236 = vmatpush.bf16.msra.mxu0 %v2225
    %2237 = vmatpush.bf16.msra.mxu0 %v2224
    %2238 = vmatpush.bf16.msra.mxu0 %v2223
    %2239 = vmatpush.bf16.msra.mxu0 %v2222
    %2240 = vmatpush.bf16.msra.mxu0 %v2221
    %2241 = vmatpush.bf16.msra.mxu0 %v2220
    %2242 = vmatpush.bf16.msra.mxu0 %v2219
    %2243 = vmatmul.bf16.gmra.mxu0 %v2162
    %v2244 = vpop.f32.mrf.mxu0
    %v2245 = vadd.f32 0.0, %v2244
    %v2246 = vpop.f32.mrf.mxu0
    %v2247 = vadd.f32 0.0, %v2246
    %2248 = vmatmul.bf16.gmra.mxu0 %v2163
    %v2249 = vpop.f32.mrf.mxu0
    %v2250 = vadd.f32 0.0, %v2249
    %v2251 = vpop.f32.mrf.mxu0
    %v2252 = vadd.f32 0.0, %v2251
    %2253 = vmatmul.bf16.gmra.mxu0 %v2164
    %v2254 = vpop.f32.mrf.mxu0
    %v2255 = vadd.f32 0.0, %v2254
    %v2256 = vpop.f32.mrf.mxu0
    %v2257 = vadd.f32 0.0, %v2256
    %2258 = vmatmul.bf16.gmra.mxu0 %v2165
    %v2259 = vpop.f32.mrf.mxu0
    %v2260 = vadd.f32 0.0, %v2259
    %v2261 = vpop.f32.mrf.mxu0
    %v2262 = vadd.f32 0.0, %v2261
    %2263 = vmatmul.bf16.gmra.mxu0 %v2166
    %v2264 = vpop.f32.mrf.mxu0
    %v2265 = vadd.f32 0.0, %v2264
    %v2266 = vpop.f32.mrf.mxu0
    %v2267 = vadd.f32 0.0, %v2266
    %2268 = vmatmul.bf16.gmra.mxu0 %v2167
    %v2269 = vpop.f32.mrf.mxu0
    %v2270 = vadd.f32 0.0, %v2269
    %v2271 = vpop.f32.mrf.mxu0
    %v2272 = vadd.f32 0.0, %v2271
    %2273 = vmatmul.bf16.gmra.mxu0 %v2168
    %v2274 = vpop.f32.mrf.mxu0
    %v2275 = vadd.f32 0.0, %v2274
    %v2276 = vpop.f32.mrf.mxu0
    %v2277 = vadd.f32 0.0, %v2276
    %2278 = vmatmul.bf16.gmra.mxu0 %v2169
    %v2279 = vpop.f32.mrf.mxu0
    %v2280 = vadd.f32 0.0, %v2279
    %v2281 = vpop.f32.mrf.mxu0
    %v2282 = vadd.f32 0.0, %v2281
    %2283 = vdwg.mxu0
    %v2284 = vadd.f32 %v2129, %v2245
    %v2285 = vadd.f32 %v2130, %v2247
    %v2286 = vadd.f32 %v2131, %v2250
    %v2287 = vadd.f32 %v2132, %v2252
    %v2288 = vadd.f32 %v2133, %v2255
    %v2289 = vadd.f32 %v2134, %v2257
    %v2290 = vadd.f32 %v2135, %v2260
    %v2291 = vadd.f32 %v2136, %v2262
    %v2292 = vadd.f32 %v2137, %v2265
    %v2293 = vadd.f32 %v2138, %v2267
    %v2294 = vadd.f32 %v2139, %v2270
    %v2295 = vadd.f32 %v2140, %v2272
    %v2296 = vadd.f32 %v2141, %v2275
    %v2297 = vadd.f32 %v2142, %v2277
    %v2298 = vadd.f32 %v2143, %v2280
    %v2299 = vadd.f32 %v2144, %v2282
    %v2300 = vld [vmem:[%s1990 + $0x1] sm:$0xff]
    %v2301 = vld [vmem:[%s1990 + $0x11] sm:$0xff]
    %v2302 = vld [vmem:[%s1990 + $0x21] sm:$0xff]
    %v2303 = vld [vmem:[%s1990 + $0x31] sm:$0xff]
    %v2304 = vld [vmem:[%s1990 + $0x41] sm:$0xff]
    %v2305 = vld [vmem:[%s1990 + $0x51] sm:$0xff]
    %v2306 = vld [vmem:[%s1990 + $0x61] sm:$0xff]
    %v2307 = vld [vmem:[%s1990 + $0x71] sm:$0xff]
    %v2308 = vld [vmem:[%s1990 + $0xa1] sm:$0xff]
    %v2309 = vld [vmem:[%s1990 + $0xb1] sm:$0xff]
    %v2310 = vld [vmem:[%s1990 + $0xc1] sm:$0xff]
    %v2311 = vld [vmem:[%s1990 + $0xd1] sm:$0xff]
    %v2312 = vld [vmem:[%s1990 + $0xe1] sm:$0xff]
    %v2313 = vld [vmem:[%s1990 + $0xf1] sm:$0xff]
    %v2314 = vld [vmem:[%s1990 + $0x101] sm:$0xff]
    %v2315 = vld [vmem:[%s1990 + $0x111] sm:$0xff]
    %v2316 = vpack.c.bf16 %v2301, %v2300
    %v2317 = vpack.c.bf16 %v2303, %v2302
    %v2318 = vpack.c.bf16 %v2305, %v2304
    %v2319 = vpack.c.bf16 %v2307, %v2306
    %v2320 = vpack.c.bf16 %v2309, %v2308
    %v2321 = vpack.c.bf16 %v2311, %v2310
    %v2322 = vpack.c.bf16 %v2313, %v2312
    %v2323 = vpack.c.bf16 %v2315, %v2314
    %s2324 = scalar_lea.vmem %s2, 512
    %v2325 = vld [vmem:[%s2324] sm:$0xf]
    %v2326 = vld [vmem:[%s2324 + $0x4] sm:$0xf]
    %v2327 = vld [vmem:[%s2324 + $0x8] sm:$0xf]
    %v2328 = vld [vmem:[%s2324 + $0xc] sm:$0xf]
    %v2329 = vld [vmem:[%s2324 + $0x10] sm:$0xf]
    %v2330 = vld [vmem:[%s2324 + $0x14] sm:$0xf]
    %v2331 = vld [vmem:[%s2324 + $0x18] sm:$0xf]
    %v2332 = vld [vmem:[%s2324 + $0x1c] sm:$0xf]
    %v2333 = vld [vmem:[%s2324 + $0x20] sm:$0xf]
    %v2334 = vld [vmem:[%s2324 + $0x24] sm:$0xf]
    %v2335 = vld [vmem:[%s2324 + $0x28] sm:$0xf]
    %v2336 = vld [vmem:[%s2324 + $0x2c] sm:$0xf]
    %v2337 = vld [vmem:[%s2324 + $0x30] sm:$0xf]
    %v2338 = vld [vmem:[%s2324 + $0x34] sm:$0xf]
    %v2339 = vld [vmem:[%s2324 + $0x38] sm:$0xf]
    %v2340 = vld [vmem:[%s2324 + $0x3c] sm:$0xf]
    %v2357 = vunpack.c.l.b16 %v2325
    %v2358 = vunpack.c.l.b16 %v2326
    %v2359 = vunpack.c.l.b16 %v2327
    %v2360 = vunpack.c.l.b16 %v2328
    %v2361 = vunpack.c.l.b16 %v2329
    %v2362 = vunpack.c.l.b16 %v2330
    %v2363 = vunpack.c.l.b16 %v2331
    %v2364 = vunpack.c.l.b16 %v2332
    %v2365 = vunpack.c.l.b16 %v2333
    %v2366 = vunpack.c.l.b16 %v2334
    %v2367 = vunpack.c.l.b16 %v2335
    %v2368 = vunpack.c.l.b16 %v2336
    %v2369 = vunpack.c.l.b16 %v2337
    %v2370 = vunpack.c.l.b16 %v2338
    %v2371 = vunpack.c.l.b16 %v2339
    %v2372 = vunpack.c.l.b16 %v2340
    %v2373 = vpack.c.b16 %v2358, %v2357
    %v2374 = vpack.c.b16 %v2360, %v2359
    %v2375 = vpack.c.b16 %v2362, %v2361
    %v2376 = vpack.c.b16 %v2364, %v2363
    %v2377 = vpack.c.b16 %v2366, %v2365
    %v2378 = vpack.c.b16 %v2368, %v2367
    %v2379 = vpack.c.b16 %v2370, %v2369
    %v2380 = vpack.c.b16 %v2372, %v2371
    %2389 = vmatpush.bf16.msra.mxu0 %v2380
    %2390 = vmatpush.bf16.msra.mxu0 %v2379
    %2391 = vmatpush.bf16.msra.mxu0 %v2378
    %2392 = vmatpush.bf16.msra.mxu0 %v2377
    %2393 = vmatpush.bf16.msra.mxu0 %v2376
    %2394 = vmatpush.bf16.msra.mxu0 %v2375
    %2395 = vmatpush.bf16.msra.mxu0 %v2374
    %2396 = vmatpush.bf16.msra.mxu0 %v2373
    %2397 = vmatmul.bf16.gmra.mxu0 %v2316
    %v2398 = vpop.f32.mrf.mxu0
    %v2399 = vadd.f32 0.0, %v2398
    %v2400 = vpop.f32.mrf.mxu0
    %v2401 = vadd.f32 0.0, %v2400
    %2402 = vmatmul.bf16.gmra.mxu0 %v2317
    %v2403 = vpop.f32.mrf.mxu0
    %v2404 = vadd.f32 0.0, %v2403
    %v2405 = vpop.f32.mrf.mxu0
    %v2406 = vadd.f32 0.0, %v2405
    %2407 = vmatmul.bf16.gmra.mxu0 %v2318
    %v2408 = vpop.f32.mrf.mxu0
    %v2409 = vadd.f32 0.0, %v2408
    %v2410 = vpop.f32.mrf.mxu0
    %v2411 = vadd.f32 0.0, %v2410
    %2412 = vmatmul.bf16.gmra.mxu0 %v2319
    %v2413 = vpop.f32.mrf.mxu0
    %v2414 = vadd.f32 0.0, %v2413
    %v2415 = vpop.f32.mrf.mxu0
    %v2416 = vadd.f32 0.0, %v2415
    %2417 = vmatmul.bf16.gmra.mxu0 %v2320
    %v2418 = vpop.f32.mrf.mxu0
    %v2419 = vadd.f32 0.0, %v2418
    %v2420 = vpop.f32.mrf.mxu0
    %v2421 = vadd.f32 0.0, %v2420
    %2422 = vmatmul.bf16.gmra.mxu0 %v2321
    %v2423 = vpop.f32.mrf.mxu0
    %v2424 = vadd.f32 0.0, %v2423
    %v2425 = vpop.f32.mrf.mxu0
    %v2426 = vadd.f32 0.0, %v2425
    %2427 = vmatmul.bf16.gmra.mxu0 %v2322
    %v2428 = vpop.f32.mrf.mxu0
    %v2429 = vadd.f32 0.0, %v2428
    %v2430 = vpop.f32.mrf.mxu0
    %v2431 = vadd.f32 0.0, %v2430
    %2432 = vmatmul.bf16.gmra.mxu0 %v2323
    %v2433 = vpop.f32.mrf.mxu0
    %v2434 = vadd.f32 0.0, %v2433
    %v2435 = vpop.f32.mrf.mxu0
    %v2436 = vadd.f32 0.0, %v2435
    %2437 = vdwg.mxu0
    %v2438 = vadd.f32 %v2284, %v2399
    %v2439 = vadd.f32 %v2285, %v2401
    %v2440 = vadd.f32 %v2286, %v2404
    %v2441 = vadd.f32 %v2287, %v2406
    %v2442 = vadd.f32 %v2288, %v2409
    %v2443 = vadd.f32 %v2289, %v2411
    %v2444 = vadd.f32 %v2290, %v2414
    %v2445 = vadd.f32 %v2291, %v2416
    %v2446 = vadd.f32 %v2292, %v2419
    %v2447 = vadd.f32 %v2293, %v2421
    %v2448 = vadd.f32 %v2294, %v2424
    %v2449 = vadd.f32 %v2295, %v2426
    %v2450 = vadd.f32 %v2296, %v2429
    %v2451 = vadd.f32 %v2297, %v2431
    %v2452 = vadd.f32 %v2298, %v2434
    %v2453 = vadd.f32 %v2299, %v2436
    %v2454 = vld [vmem:[%s5 + $0x1] sm:$0x1]
    %v2455 = vld [vmem:[%s6 + $0x1] sm:$0x1]
    %v2456 = vadd.f32 %v2438, %v2439
    %v2457 = vadd.f32 %v2456, %v2440
    %v2458 = vadd.f32 %v2457, %v2441
    %v2459 = vadd.f32 %v2458, %v2442
    %v2460 = vadd.f32 %v2459, %v2443
    %v2461 = vadd.f32 %v2460, %v2444
    %v2462 = vadd.f32 %v2461, %v2445
    %v2463 = vadd.f32 %v2462, %v2446
    %v2464 = vadd.f32 %v2463, %v2447
    %v2465 = vadd.f32 %v2464, %v2448
    %v2466 = vadd.f32 %v2465, %v2449
    %v2467 = vadd.f32 %v2466, %v2450
    %v2468 = vadd.f32 %v2467, %v2451
    %v2469 = vadd.f32 %v2468, %v2452
    %v2470 = vadd.f32 %v2469, %v2453
    %v2471 = vrot.slane %v2470, 4
    %v2472 = vadd.f32 %v2470, %v2471
    %v2473 = vrot.slane %v2472, 2
    %v2474 = vadd.f32 %v2472, %v2473
    %v2475 = vrot.slane %v2474, 1
    %v2476 = vadd.f32 %v2474, %v2475
    %v2477 = vmul.f32 %v2476, 0.0078125
    %v2478 = vsub.f32 %v2438, %v2477
    %v2479 = vsub.f32 %v2439, %v2477
    %v2480 = vsub.f32 %v2440, %v2477
    %v2481 = vsub.f32 %v2441, %v2477
    %v2482 = vsub.f32 %v2442, %v2477
    %v2483 = vsub.f32 %v2443, %v2477
    %v2484 = vsub.f32 %v2444, %v2477
    %v2485 = vsub.f32 %v2445, %v2477
    %v2486 = vsub.f32 %v2446, %v2477
    %v2487 = vsub.f32 %v2447, %v2477
    %v2488 = vsub.f32 %v2448, %v2477
    %v2489 = vsub.f32 %v2449, %v2477
    %v2490 = vsub.f32 %v2450, %v2477
    %v2491 = vsub.f32 %v2451, %v2477
    %v2492 = vsub.f32 %v2452, %v2477
    %v2493 = vsub.f32 %v2453, %v2477
    %v2494 = vmul.f32 %v2478, %v2478
    %v2495 = vmul.f32 %v2479, %v2479
    %v2496 = vmul.f32 %v2480, %v2480
    %v2497 = vmul.f32 %v2481, %v2481
    %v2498 = vmul.f32 %v2482, %v2482
    %v2499 = vmul.f32 %v2483, %v2483
    %v2500 = vmul.f32 %v2484, %v2484
    %v2501 = vmul.f32 %v2485, %v2485
    %v2502 = vmul.f32 %v2486, %v2486
    %v2503 = vmul.f32 %v2487, %v2487
    %v2504 = vmul.f32 %v2488, %v2488
    %v2505 = vmul.f32 %v2489, %v2489
    %v2506 = vmul.f32 %v2490, %v2490
    %v2507 = vmul.f32 %v2491, %v2491
    %v2508 = vmul.f32 %v2492, %v2492
    %v2509 = vmul.f32 %v2493, %v2493
    %v2510 = vadd.f32 %v2494, %v2495
    %v2511 = vadd.f32 %v2510, %v2496
    %v2512 = vadd.f32 %v2511, %v2497
    %v2513 = vadd.f32 %v2512, %v2498
    %v2514 = vadd.f32 %v2513, %v2499
    %v2515 = vadd.f32 %v2514, %v2500
    %v2516 = vadd.f32 %v2515, %v2501
    %v2517 = vadd.f32 %v2516, %v2502
    %v2518 = vadd.f32 %v2517, %v2503
    %v2519 = vadd.f32 %v2518, %v2504
    %v2520 = vadd.f32 %v2519, %v2505
    %v2521 = vadd.f32 %v2520, %v2506
    %v2522 = vadd.f32 %v2521, %v2507
    %v2523 = vadd.f32 %v2522, %v2508
    %v2524 = vadd.f32 %v2523, %v2509
    %v2525 = vrot.slane %v2524, 4
    %v2526 = vadd.f32 %v2524, %v2525
    %v2527 = vrot.slane %v2526, 2
    %v2528 = vadd.f32 %v2526, %v2527
    %v2529 = vrot.slane %v2528, 1
    %v2530 = vadd.f32 %v2528, %v2529
    %v2531 = vmul.f32 %v2530, 0.0078125
    %v2532 = vadd.f32 %v2531, 1e-05
    %v2533 = vrsqrt.pop %v2532
    %v2534 = vmul.f32 %v2533, %v2532
    %v2535 = vmul.f32 %v2534, %v2533
    %v2536 = vmul.f32 0.5, %v2535
    %v2537 = vsub.f32 1.5, %v2536
    %v2538 = vmul.f32 %v2533, %v2537
    %vm2539 = vweird.f32 %v2532
    %vm2540 = vweird.f32 %v2533
    %vm2541 = vmor %vm2539, %vm2540
    %v2542 = vsel %vm2541, %v2533, %v2538
    %v2543 = vmul.f32 %v2542, %v2454
    %v2544 = vperm.slane %v2543, 0
    %v2545 = vmul.f32 %v2478, %v2544
    %v2546 = vmul.f32 %v2479, %v2544
    %v2547 = vmul.f32 %v2480, %v2544
    %v2548 = vmul.f32 %v2481, %v2544
    %v2549 = vmul.f32 %v2482, %v2544
    %v2550 = vmul.f32 %v2483, %v2544
    %v2551 = vmul.f32 %v2484, %v2544
    %v2552 = vmul.f32 %v2485, %v2544
    %v2553 = vmul.f32 %v2486, %v2544
    %v2554 = vmul.f32 %v2487, %v2544
    %v2555 = vmul.f32 %v2488, %v2544
    %v2556 = vmul.f32 %v2489, %v2544
    %v2557 = vmul.f32 %v2490, %v2544
    %v2558 = vmul.f32 %v2491, %v2544
    %v2559 = vmul.f32 %v2492, %v2544
    %v2560 = vmul.f32 %v2493, %v2544
    %v2561 = vperm.slane %v2455, 0
    %v2562 = vadd.f32 %v2545, %v2561
    %v2563 = vadd.f32 %v2546, %v2561
    %v2564 = vadd.f32 %v2547, %v2561
    %v2565 = vadd.f32 %v2548, %v2561
    %v2566 = vadd.f32 %v2549, %v2561
    %v2567 = vadd.f32 %v2550, %v2561
    %v2568 = vadd.f32 %v2551, %v2561
    %v2569 = vadd.f32 %v2552, %v2561
    %v2570 = vadd.f32 %v2553, %v2561
    %v2571 = vadd.f32 %v2554, %v2561
    %v2572 = vadd.f32 %v2555, %v2561
    %v2573 = vadd.f32 %v2556, %v2561
    %v2574 = vadd.f32 %v2557, %v2561
    %v2575 = vadd.f32 %v2558, %v2561
    %v2576 = vadd.f32 %v2559, %v2561
    %v2577 = vadd.f32 %v2560, %v2561
    %v2578 = vmax.f32 %v2562, 0.0
    %v2579 = vmax.f32 %v2563, 0.0
    %v2580 = vmax.f32 %v2564, 0.0
    %v2581 = vmax.f32 %v2565, 0.0
    %v2582 = vmax.f32 %v2566, 0.0
    %v2583 = vmax.f32 %v2567, 0.0
    %v2584 = vmax.f32 %v2568, 0.0
    %v2585 = vmax.f32 %v2569, 0.0
    %v2586 = vmax.f32 %v2570, 0.0
    %v2587 = vmax.f32 %v2571, 0.0
    %v2588 = vmax.f32 %v2572, 0.0
    %v2589 = vmax.f32 %v2573, 0.0
    %v2590 = vmax.f32 %v2574, 0.0
    %v2591 = vmax.f32 %v2575, 0.0
    %v2592 = vmax.f32 %v2576, 0.0
    %v2593 = vmax.f32 %v2577, 0.0
    %v2594 = vpack.c.bf16 %v2579, %v2578
    %v2595 = vpack.c.bf16 %v2581, %v2580
    %v2596 = vpack.c.bf16 %v2583, %v2582
    %v2597 = vpack.c.bf16 %v2585, %v2584
    %v2598 = vpack.c.bf16 %v2587, %v2586
    %v2599 = vpack.c.bf16 %v2589, %v2588
    %v2600 = vpack.c.bf16 %v2591, %v2590
    %v2601 = vpack.c.bf16 %v2593, %v2592
    %v2602 = vld [vmem:[%s3] sm:$0xf]
    %v2603 = vld [vmem:[%s3 + $0x4] sm:$0xf]
    %v2604 = vld [vmem:[%s3 + $0x8] sm:$0xf]
    %v2605 = vld [vmem:[%s3 + $0xc] sm:$0xf]
    %v2606 = vld [vmem:[%s3 + $0x10] sm:$0xf]
    %v2607 = vld [vmem:[%s3 + $0x14] sm:$0xf]
    %v2608 = vld [vmem:[%s3 + $0x18] sm:$0xf]
    %v2609 = vld [vmem:[%s3 + $0x1c] sm:$0xf]
    %v2610 = vld [vmem:[%s3 + $0x20] sm:$0xf]
    %v2611 = vld [vmem:[%s3 + $0x24] sm:$0xf]
    %v2612 = vld [vmem:[%s3 + $0x28] sm:$0xf]
    %v2613 = vld [vmem:[%s3 + $0x2c] sm:$0xf]
    %v2614 = vld [vmem:[%s3 + $0x30] sm:$0xf]
    %v2615 = vld [vmem:[%s3 + $0x34] sm:$0xf]
    %v2616 = vld [vmem:[%s3 + $0x38] sm:$0xf]
    %v2617 = vld [vmem:[%s3 + $0x3c] sm:$0xf]
    %v2634 = vunpack.c.l.b16 %v2602
    %v2635 = vunpack.c.l.b16 %v2603
    %v2636 = vunpack.c.l.b16 %v2604
    %v2637 = vunpack.c.l.b16 %v2605
    %v2638 = vunpack.c.l.b16 %v2606
    %v2639 = vunpack.c.l.b16 %v2607
    %v2640 = vunpack.c.l.b16 %v2608
    %v2641 = vunpack.c.l.b16 %v2609
    %v2642 = vunpack.c.l.b16 %v2610
    %v2643 = vunpack.c.l.b16 %v2611
    %v2644 = vunpack.c.l.b16 %v2612
    %v2645 = vunpack.c.l.b16 %v2613
    %v2646 = vunpack.c.l.b16 %v2614
    %v2647 = vunpack.c.l.b16 %v2615
    %v2648 = vunpack.c.l.b16 %v2616
    %v2649 = vunpack.c.l.b16 %v2617
    %v2650 = vpack.c.b16 %v2635, %v2634
    %v2651 = vpack.c.b16 %v2637, %v2636
    %v2652 = vpack.c.b16 %v2639, %v2638
    %v2653 = vpack.c.b16 %v2641, %v2640
    %v2654 = vpack.c.b16 %v2643, %v2642
    %v2655 = vpack.c.b16 %v2645, %v2644
    %v2656 = vpack.c.b16 %v2647, %v2646
    %v2657 = vpack.c.b16 %v2649, %v2648
    %2666 = vmatpush.bf16.msra.mxu0 %v2657
    %2667 = vmatpush.bf16.msra.mxu0 %v2656
    %2668 = vmatpush.bf16.msra.mxu0 %v2655
    %2669 = vmatpush.bf16.msra.mxu0 %v2654
    %2670 = vmatpush.bf16.msra.mxu0 %v2653
    %2671 = vmatpush.bf16.msra.mxu0 %v2652
    %2672 = vmatpush.bf16.msra.mxu0 %v2651
    %2673 = vmatpush.bf16.msra.mxu0 %v2650
    %2674 = vmatmul.bf16.gmra.mxu0 %v2594
    %v2675 = vpop.f32.mrf.mxu0
    %v2676 = vadd.f32 0.0, %v2675
    %v2677 = vpop.f32.mrf.mxu0
    %v2678 = vadd.f32 0.0, %v2677
    %2679 = vmatmul.bf16.gmra.mxu0 %v2595
    %v2680 = vpop.f32.mrf.mxu0
    %v2681 = vadd.f32 0.0, %v2680
    %v2682 = vpop.f32.mrf.mxu0
    %v2683 = vadd.f32 0.0, %v2682
    %2684 = vmatmul.bf16.gmra.mxu0 %v2596
    %v2685 = vpop.f32.mrf.mxu0
    %v2686 = vadd.f32 0.0, %v2685
    %v2687 = vpop.f32.mrf.mxu0
    %v2688 = vadd.f32 0.0, %v2687
    %2689 = vmatmul.bf16.gmra.mxu0 %v2597
    %v2690 = vpop.f32.mrf.mxu0
    %v2691 = vadd.f32 0.0, %v2690
    %v2692 = vpop.f32.mrf.mxu0
    %v2693 = vadd.f32 0.0, %v2692
    %2694 = vmatmul.bf16.gmra.mxu0 %v2598
    %v2695 = vpop.f32.mrf.mxu0
    %v2696 = vadd.f32 0.0, %v2695
    %v2697 = vpop.f32.mrf.mxu0
    %v2698 = vadd.f32 0.0, %v2697
    %2699 = vmatmul.bf16.gmra.mxu0 %v2599
    %v2700 = vpop.f32.mrf.mxu0
    %v2701 = vadd.f32 0.0, %v2700
    %v2702 = vpop.f32.mrf.mxu0
    %v2703 = vadd.f32 0.0, %v2702
    %2704 = vmatmul.bf16.gmra.mxu0 %v2600
    %v2705 = vpop.f32.mrf.mxu0
    %v2706 = vadd.f32 0.0, %v2705
    %v2707 = vpop.f32.mrf.mxu0
    %v2708 = vadd.f32 0.0, %v2707
    %2709 = vmatmul.bf16.gmra.mxu0 %v2601
    %v2710 = vpop.f32.mrf.mxu0
    %v2711 = vadd.f32 0.0, %v2710
    %v2712 = vpop.f32.mrf.mxu0
    %v2713 = vadd.f32 0.0, %v2712
    %2714 = vdwg.mxu0
    %v2715 = vld [vmem:[%s5 + $0x2] sm:$0x1]
    %v2716 = vld [vmem:[%s6 + $0x2] sm:$0x1]
    %v2717 = vadd.f32 %v2676, %v2678
    %v2718 = vadd.f32 %v2717, %v2681
    %v2719 = vadd.f32 %v2718, %v2683
    %v2720 = vadd.f32 %v2719, %v2686
    %v2721 = vadd.f32 %v2720, %v2688
    %v2722 = vadd.f32 %v2721, %v2691
    %v2723 = vadd.f32 %v2722, %v2693
    %v2724 = vadd.f32 %v2723, %v2696
    %v2725 = vadd.f32 %v2724, %v2698
    %v2726 = vadd.f32 %v2725, %v2701
    %v2727 = vadd.f32 %v2726, %v2703
    %v2728 = vadd.f32 %v2727, %v2706
    %v2729 = vadd.f32 %v2728, %v2708
    %v2730 = vadd.f32 %v2729, %v2711
    %v2731 = vadd.f32 %v2730, %v2713
    %v2732 = vrot.slane %v2731, 4
    %v2733 = vadd.f32 %v2731, %v2732
    %v2734 = vrot.slane %v2733, 2
    %v2735 = vadd.f32 %v2733, %v2734
    %v2736 = vrot.slane %v2735, 1
    %v2737 = vadd.f32 %v2735, %v2736
    %v2738 = vmul.f32 %v2737, 0.0078125
    %v2739 = vsub.f32 %v2676, %v2738
    %v2740 = vsub.f32 %v2678, %v2738
    %v2741 = vsub.f32 %v2681, %v2738
    %v2742 = vsub.f32 %v2683, %v2738
    %v2743 = vsub.f32 %v2686, %v2738
    %v2744 = vsub.f32 %v2688, %v2738
    %v2745 = vsub.f32 %v2691, %v2738
    %v2746 = vsub.f32 %v2693, %v2738
    %v2747 = vsub.f32 %v2696, %v2738
    %v2748 = vsub.f32 %v2698, %v2738
    %v2749 = vsub.f32 %v2701, %v2738
    %v2750 = vsub.f32 %v2703, %v2738
    %v2751 = vsub.f32 %v2706, %v2738
    %v2752 = vsub.f32 %v2708, %v2738
    %v2753 = vsub.f32 %v2711, %v2738
    %v2754 = vsub.f32 %v2713, %v2738
    %v2755 = vmul.f32 %v2739, %v2739
    %v2756 = vmul.f32 %v2740, %v2740
    %v2757 = vmul.f32 %v2741, %v2741
    %v2758 = vmul.f32 %v2742, %v2742
    %v2759 = vmul.f32 %v2743, %v2743
    %v2760 = vmul.f32 %v2744, %v2744
    %v2761 = vmul.f32 %v2745, %v2745
    %v2762 = vmul.f32 %v2746, %v2746
    %v2763 = vmul.f32 %v2747, %v2747
    %v2764 = vmul.f32 %v2748, %v2748
    %v2765 = vmul.f32 %v2749, %v2749
    %v2766 = vmul.f32 %v2750, %v2750
    %v2767 = vmul.f32 %v2751, %v2751
    %v2768 = vmul.f32 %v2752, %v2752
    %v2769 = vmul.f32 %v2753, %v2753
    %v2770 = vmul.f32 %v2754, %v2754
    %v2771 = vadd.f32 %v2755, %v2756
    %v2772 = vadd.f32 %v2771, %v2757
    %v2773 = vadd.f32 %v2772, %v2758
    %v2774 = vadd.f32 %v2773, %v2759
    %v2775 = vadd.f32 %v2774, %v2760
    %v2776 = vadd.f32 %v2775, %v2761
    %v2777 = vadd.f32 %v2776, %v2762
    %v2778 = vadd.f32 %v2777, %v2763
    %v2779 = vadd.f32 %v2778, %v2764
    %v2780 = vadd.f32 %v2779, %v2765
    %v2781 = vadd.f32 %v2780, %v2766
    %v2782 = vadd.f32 %v2781, %v2767
    %v2783 = vadd.f32 %v2782, %v2768
    %v2784 = vadd.f32 %v2783, %v2769
    %v2785 = vadd.f32 %v2784, %v2770
    %v2786 = vrot.slane %v2785, 4
    %v2787 = vadd.f32 %v2785, %v2786
    %v2788 = vrot.slane %v2787, 2
    %v2789 = vadd.f32 %v2787, %v2788
    %v2790 = vrot.slane %v2789, 1
    %v2791 = vadd.f32 %v2789, %v2790
    %v2792 = vmul.f32 %v2791, 0.0078125
    %v2793 = vadd.f32 %v2792, 1e-05
    %v2794 = vrsqrt.pop %v2793
    %v2795 = vmul.f32 %v2794, %v2793
    %v2796 = vmul.f32 %v2795, %v2794
    %v2797 = vmul.f32 0.5, %v2796
    %v2798 = vsub.f32 1.5, %v2797
    %v2799 = vmul.f32 %v2794, %v2798
    %vm2800 = vweird.f32 %v2793
    %vm2801 = vweird.f32 %v2794
    %vm2802 = vmor %vm2800, %vm2801
    %v2803 = vsel %vm2802, %v2794, %v2799
    %v2804 = vmul.f32 %v2803, %v2715
    %v2805 = vperm.slane %v2804, 0
    %v2806 = vmul.f32 %v2739, %v2805
    %v2807 = vmul.f32 %v2740, %v2805
    %v2808 = vmul.f32 %v2741, %v2805
    %v2809 = vmul.f32 %v2742, %v2805
    %v2810 = vmul.f32 %v2743, %v2805
    %v2811 = vmul.f32 %v2744, %v2805
    %v2812 = vmul.f32 %v2745, %v2805
    %v2813 = vmul.f32 %v2746, %v2805
    %v2814 = vmul.f32 %v2747, %v2805
    %v2815 = vmul.f32 %v2748, %v2805
    %v2816 = vmul.f32 %v2749, %v2805
    %v2817 = vmul.f32 %v2750, %v2805
    %v2818 = vmul.f32 %v2751, %v2805
    %v2819 = vmul.f32 %v2752, %v2805
    %v2820 = vmul.f32 %v2753, %v2805
    %v2821 = vmul.f32 %v2754, %v2805
    %v2822 = vperm.slane %v2716, 0
    %v2823 = vadd.f32 %v2806, %v2822
    %v2824 = vadd.f32 %v2807, %v2822
    %v2825 = vadd.f32 %v2808, %v2822
    %v2826 = vadd.f32 %v2809, %v2822
    %v2827 = vadd.f32 %v2810, %v2822
    %v2828 = vadd.f32 %v2811, %v2822
    %v2829 = vadd.f32 %v2812, %v2822
    %v2830 = vadd.f32 %v2813, %v2822
    %v2831 = vadd.f32 %v2814, %v2822
    %v2832 = vadd.f32 %v2815, %v2822
    %v2833 = vadd.f32 %v2816, %v2822
    %v2834 = vadd.f32 %v2817, %v2822
    %v2835 = vadd.f32 %v2818, %v2822
    %v2836 = vadd.f32 %v2819, %v2822
    %v2837 = vadd.f32 %v2820, %v2822
    %v2838 = vadd.f32 %v2821, %v2822
    %v2839 = vld [vmem:[%s0] sm:$0xff]
    %v2840 = vld [vmem:[%s0 + $0x8] sm:$0xff]
    %v2841 = vld [vmem:[%s0 + $0x10] sm:$0xff]
    %v2842 = vld [vmem:[%s0 + $0x18] sm:$0xff]
    %v2843 = vld [vmem:[%s0 + $0x20] sm:$0xff]
    %v2844 = vld [vmem:[%s0 + $0x28] sm:$0xff]
    %v2845 = vld [vmem:[%s0 + $0x30] sm:$0xff]
    %v2846 = vld [vmem:[%s0 + $0x38] sm:$0xff]
    %v2847 = vld [vmem:[%s0 + $0x40] sm:$0xff]
    %v2848 = vld [vmem:[%s0 + $0x48] sm:$0xff]
    %v2849 = vld [vmem:[%s0 + $0x50] sm:$0xff]
    %v2850 = vld [vmem:[%s0 + $0x58] sm:$0xff]
    %v2851 = vld [vmem:[%s0 + $0x60] sm:$0xff]
    %v2852 = vld [vmem:[%s0 + $0x68] sm:$0xff]
    %v2853 = vld [vmem:[%s0 + $0x70] sm:$0xff]
    %v2854 = vld [vmem:[%s0 + $0x78] sm:$0xff]
    %v2855 = vpack.c.bf16 %v2840, %v2839
    %v2856 = vpack.c.bf16 %v2842, %v2841
    %v2857 = vpack.c.bf16 %v2844, %v2843
    %v2858 = vpack.c.bf16 %v2846, %v2845
    %v2859 = vpack.c.bf16 %v2848, %v2847
    %v2860 = vpack.c.bf16 %v2850, %v2849
    %v2861 = vpack.c.bf16 %v2852, %v2851
    %v2862 = vpack.c.bf16 %v2854, %v2853
    %v2863 = vld [vmem:[%s4] sm:$0x3]
    %v2865 = vsel %vm125, %v2855, 0
    %v2868 = vsel %vm125, %v2856, 0
    %v2871 = vsel %vm125, %v2857, 0
    %v2874 = vsel %vm125, %v2858, 0
    %v2877 = vsel %vm125, %v2859, 0
    %v2880 = vsel %vm125, %v2860, 0
    %v2883 = vsel %vm125, %v2861, 0
    %v2886 = vsel %vm125, %v2862, 0
    %v2889 = vsel %vm222, %v2863, 0
    %2891 = vmatpush.bf16.msra.mxu0 0
    %2892 = vmatpush.bf16.msra.mxu0 0
    %2893 = vmatpush.bf16.msra.mxu0 0
    %2894 = vmatpush.bf16.msra.mxu0 0
    %2895 = vmatpush.bf16.msra.mxu0 0
    %2896 = vmatpush.bf16.msra.mxu0 0
    %2897 = vmatpush.bf16.msra.mxu0 0
    %2898 = vmatpush.bf16.msra.mxu0 %v2889
    %2899 = vmatmul.bf16.gmra.mxu0 %v2865
    %v2900 = vpop.f32.mrf.mxu0
    %v2901 = vadd.f32 0.0, %v2900
    %v2902 = vpop.f32.mrf.mxu0
    %v2903 = vadd.f32 0.0, %v2902
    %2904 = vmatmul.bf16.gmra.mxu0 %v2868
    %v2905 = vpop.f32.mrf.mxu0
    %v2906 = vadd.f32 0.0, %v2905
    %v2907 = vpop.f32.mrf.mxu0
    %v2908 = vadd.f32 0.0, %v2907
    %2909 = vmatmul.bf16.gmra.mxu0 %v2871
    %v2910 = vpop.f32.mrf.mxu0
    %v2911 = vadd.f32 0.0, %v2910
    %v2912 = vpop.f32.mrf.mxu0
    %v2913 = vadd.f32 0.0, %v2912
    %2914 = vmatmul.bf16.gmra.mxu0 %v2874
    %v2915 = vpop.f32.mrf.mxu0
    %v2916 = vadd.f32 0.0, %v2915
    %v2917 = vpop.f32.mrf.mxu0
    %v2918 = vadd.f32 0.0, %v2917
    %2919 = vmatmul.bf16.gmra.mxu0 %v2877
    %v2920 = vpop.f32.mrf.mxu0
    %v2921 = vadd.f32 0.0, %v2920
    %v2922 = vpop.f32.mrf.mxu0
    %v2923 = vadd.f32 0.0, %v2922
    %2924 = vmatmul.bf16.gmra.mxu0 %v2880
    %v2925 = vpop.f32.mrf.mxu0
    %v2926 = vadd.f32 0.0, %v2925
    %v2927 = vpop.f32.mrf.mxu0
    %v2928 = vadd.f32 0.0, %v2927
    %2929 = vmatmul.bf16.gmra.mxu0 %v2883
    %v2930 = vpop.f32.mrf.mxu0
    %v2931 = vadd.f32 0.0, %v2930
    %v2932 = vpop.f32.mrf.mxu0
    %v2933 = vadd.f32 0.0, %v2932
    %2934 = vmatmul.bf16.gmra.mxu0 %v2886
    %v2935 = vpop.f32.mrf.mxu0
    %v2936 = vadd.f32 0.0, %v2935
    %v2937 = vpop.f32.mrf.mxu0
    %v2938 = vadd.f32 0.0, %v2937
    %2939 = vdwg.mxu0
    %v2940 = vld [vmem:[%s5 + $0x3] sm:$0x1]
    %v2941 = vld [vmem:[%s6 + $0x3] sm:$0x1]
    %v2942 = vadd.f32 %v2901, %v2903
    %v2943 = vadd.f32 %v2942, %v2906
    %v2944 = vadd.f32 %v2943, %v2908
    %v2945 = vadd.f32 %v2944, %v2911
    %v2946 = vadd.f32 %v2945, %v2913
    %v2947 = vadd.f32 %v2946, %v2916
    %v2948 = vadd.f32 %v2947, %v2918
    %v2949 = vadd.f32 %v2948, %v2921
    %v2950 = vadd.f32 %v2949, %v2923
    %v2951 = vadd.f32 %v2950, %v2926
    %v2952 = vadd.f32 %v2951, %v2928
    %v2953 = vadd.f32 %v2952, %v2931
    %v2954 = vadd.f32 %v2953, %v2933
    %v2955 = vadd.f32 %v2954, %v2936
    %v2956 = vadd.f32 %v2955, %v2938
    %v2957 = vrot.slane %v2956, 4
    %v2958 = vadd.f32 %v2956, %v2957
    %v2959 = vrot.slane %v2958, 2
    %v2960 = vadd.f32 %v2958, %v2959
    %v2961 = vrot.slane %v2960, 1
    %v2962 = vadd.f32 %v2960, %v2961
    %v2963 = vmul.f32 %v2962, 0.0078125
    %v2964 = vsub.f32 %v2901, %v2963
    %v2965 = vsub.f32 %v2903, %v2963
    %v2966 = vsub.f32 %v2906, %v2963
    %v2967 = vsub.f32 %v2908, %v2963
    %v2968 = vsub.f32 %v2911, %v2963
    %v2969 = vsub.f32 %v2913, %v2963
    %v2970 = vsub.f32 %v2916, %v2963
    %v2971 = vsub.f32 %v2918, %v2963
    %v2972 = vsub.f32 %v2921, %v2963
    %v2973 = vsub.f32 %v2923, %v2963
    %v2974 = vsub.f32 %v2926, %v2963
    %v2975 = vsub.f32 %v2928, %v2963
    %v2976 = vsub.f32 %v2931, %v2963
    %v2977 = vsub.f32 %v2933, %v2963
    %v2978 = vsub.f32 %v2936, %v2963
    %v2979 = vsub.f32 %v2938, %v2963
    %v2980 = vmul.f32 %v2964, %v2964
    %v2981 = vmul.f32 %v2965, %v2965
    %v2982 = vmul.f32 %v2966, %v2966
    %v2983 = vmul.f32 %v2967, %v2967
    %v2984 = vmul.f32 %v2968, %v2968
    %v2985 = vmul.f32 %v2969, %v2969
    %v2986 = vmul.f32 %v2970, %v2970
    %v2987 = vmul.f32 %v2971, %v2971
    %v2988 = vmul.f32 %v2972, %v2972
    %v2989 = vmul.f32 %v2973, %v2973
    %v2990 = vmul.f32 %v2974, %v2974
    %v2991 = vmul.f32 %v2975, %v2975
    %v2992 = vmul.f32 %v2976, %v2976
    %v2993 = vmul.f32 %v2977, %v2977
    %v2994 = vmul.f32 %v2978, %v2978
    %v2995 = vmul.f32 %v2979, %v2979
    %v2996 = vadd.f32 %v2980, %v2981
    %v2997 = vadd.f32 %v2996, %v2982
    %v2998 = vadd.f32 %v2997, %v2983
    %v2999 = vadd.f32 %v2998, %v2984
    %v3000 = vadd.f32 %v2999, %v2985
    %v3001 = vadd.f32 %v3000, %v2986
    %v3002 = vadd.f32 %v3001, %v2987
    %v3003 = vadd.f32 %v3002, %v2988
    %v3004 = vadd.f32 %v3003, %v2989
    %v3005 = vadd.f32 %v3004, %v2990
    %v3006 = vadd.f32 %v3005, %v2991
    %v3007 = vadd.f32 %v3006, %v2992
    %v3008 = vadd.f32 %v3007, %v2993
    %v3009 = vadd.f32 %v3008, %v2994
    %v3010 = vadd.f32 %v3009, %v2995
    %v3011 = vrot.slane %v3010, 4
    %v3012 = vadd.f32 %v3010, %v3011
    %v3013 = vrot.slane %v3012, 2
    %v3014 = vadd.f32 %v3012, %v3013
    %v3015 = vrot.slane %v3014, 1
    %v3016 = vadd.f32 %v3014, %v3015
    %v3017 = vmul.f32 %v3016, 0.0078125
    %v3018 = vadd.f32 %v3017, 1e-05
    %v3019 = vrsqrt.pop %v3018
    %v3020 = vmul.f32 %v3019, %v3018
    %v3021 = vmul.f32 %v3020, %v3019
    %v3022 = vmul.f32 0.5, %v3021
    %v3023 = vsub.f32 1.5, %v3022
    %v3024 = vmul.f32 %v3019, %v3023
    %vm3025 = vweird.f32 %v3018
    %vm3026 = vweird.f32 %v3019
    %vm3027 = vmor %vm3025, %vm3026
    %v3028 = vsel %vm3027, %v3019, %v3024
    %v3029 = vmul.f32 %v3028, %v2940
    %v3030 = vperm.slane %v3029, 0
    %v3031 = vmul.f32 %v2964, %v3030
    %v3032 = vmul.f32 %v2965, %v3030
    %v3033 = vmul.f32 %v2966, %v3030
    %v3034 = vmul.f32 %v2967, %v3030
    %v3035 = vmul.f32 %v2968, %v3030
    %v3036 = vmul.f32 %v2969, %v3030
    %v3037 = vmul.f32 %v2970, %v3030
    %v3038 = vmul.f32 %v2971, %v3030
    %v3039 = vmul.f32 %v2972, %v3030
    %v3040 = vmul.f32 %v2973, %v3030
    %v3041 = vmul.f32 %v2974, %v3030
    %v3042 = vmul.f32 %v2975, %v3030
    %v3043 = vmul.f32 %v2976, %v3030
    %v3044 = vmul.f32 %v2977, %v3030
    %v3045 = vmul.f32 %v2978, %v3030
    %v3046 = vmul.f32 %v2979, %v3030
    %v3047 = vperm.slane %v2941, 0
    %v3048 = vadd.f32 %v3031, %v3047
    %v3049 = vadd.f32 %v3032, %v3047
    %v3050 = vadd.f32 %v3033, %v3047
    %v3051 = vadd.f32 %v3034, %v3047
    %v3052 = vadd.f32 %v3035, %v3047
    %v3053 = vadd.f32 %v3036, %v3047
    %v3054 = vadd.f32 %v3037, %v3047
    %v3055 = vadd.f32 %v3038, %v3047
    %v3056 = vadd.f32 %v3039, %v3047
    %v3057 = vadd.f32 %v3040, %v3047
    %v3058 = vadd.f32 %v3041, %v3047
    %v3059 = vadd.f32 %v3042, %v3047
    %v3060 = vadd.f32 %v3043, %v3047
    %v3061 = vadd.f32 %v3044, %v3047
    %v3062 = vadd.f32 %v3045, %v3047
    %v3063 = vadd.f32 %v3046, %v3047
    %v3064 = vadd.f32 %v2823, %v3048
    %v3065 = vadd.f32 %v2824, %v3049
    %v3066 = vadd.f32 %v2825, %v3050
    %v3067 = vadd.f32 %v2826, %v3051
    %v3068 = vadd.f32 %v2827, %v3052
    %v3069 = vadd.f32 %v2828, %v3053
    %v3070 = vadd.f32 %v2829, %v3054
    %v3071 = vadd.f32 %v2830, %v3055
    %v3072 = vadd.f32 %v2831, %v3056
    %v3073 = vadd.f32 %v2832, %v3057
    %v3074 = vadd.f32 %v2833, %v3058
    %v3075 = vadd.f32 %v2834, %v3059
    %v3076 = vadd.f32 %v2835, %v3060
    %v3077 = vadd.f32 %v2836, %v3061
    %v3078 = vadd.f32 %v2837, %v3062
    %v3079 = vadd.f32 %v2838, %v3063
    %v3080 = vmax.f32 %v3064, 0.0
    %v3081 = vmax.f32 %v3065, 0.0
    %v3082 = vmax.f32 %v3066, 0.0
    %v3083 = vmax.f32 %v3067, 0.0
    %v3084 = vmax.f32 %v3068, 0.0
    %v3085 = vmax.f32 %v3069, 0.0
    %v3086 = vmax.f32 %v3070, 0.0
    %v3087 = vmax.f32 %v3071, 0.0
    %v3088 = vmax.f32 %v3072, 0.0
    %v3089 = vmax.f32 %v3073, 0.0
    %v3090 = vmax.f32 %v3074, 0.0
    %v3091 = vmax.f32 %v3075, 0.0
    %v3092 = vmax.f32 %v3076, 0.0
    %v3093 = vmax.f32 %v3077, 0.0
    %v3094 = vmax.f32 %v3078, 0.0
    %v3095 = vmax.f32 %v3079, 0.0
    %3096 = vst [vmem:[#allocation3] sm:$0xff] %v3080
    %3097 = vst [vmem:[#allocation3 + $0x8] sm:$0xff] %v3081
    %3098 = vst [vmem:[#allocation3 + $0x10] sm:$0xff] %v3082
    %3099 = vst [vmem:[#allocation3 + $0x18] sm:$0xff] %v3083
    %3100 = vst [vmem:[#allocation3 + $0x20] sm:$0xff] %v3084
    %3101 = vst [vmem:[#allocation3 + $0x28] sm:$0xff] %v3085
    %3102 = vst [vmem:[#allocation3 + $0x30] sm:$0xff] %v3086
    %3103 = vst [vmem:[#allocation3 + $0x38] sm:$0xff] %v3087
    %3104 = vst [vmem:[#allocation3 + $0x40] sm:$0xff] %v3088
    %3105 = vst [vmem:[#allocation3 + $0x48] sm:$0xff] %v3089
    %3106 = vst [vmem:[#allocation3 + $0x50] sm:$0xff] %v3090
    %3107 = vst [vmem:[#allocation3 + $0x58] sm:$0xff] %v3091
    %3108 = vst [vmem:[#allocation3 + $0x60] sm:$0xff] %v3092
    %3109 = vst [vmem:[#allocation3 + $0x68] sm:$0xff] %v3093
    %3110 = vst [vmem:[#allocation3 + $0x70] sm:$0xff] %v3094
    %3111 = vst [vmem:[#allocation3 + $0x78] sm:$0xff] %v3095
    // Predicated region
    $region30: #{bottleneck_forward.1} parent=1 // pred_check
      _
    $region31: #{bottleneck_forward.1} parent=1 // pred_check_branch
      %3113 = sbr.rel (0) target = $region33
    $region32: #{bottleneck_forward.1} parent=1 // pred_region
      %3115 = vsyncadd [#allocation4], 0
      %s3116 = sshll.u32 [#allocation3], 4
      %s3117 = int_to_ptr.vmem [resolvable:$true] %s3116
      %s3118 = sshll.u32 %s7, 4
      %s3119 = int_to_ptr.hbm [resolvable:$true] %s3118
      %3124 = dma.vmem_to_hbm [thread:$0]  %s3117, 2048, %s3119, [#allocation4], 128, 128, 8
    $region33: #{bottleneck_forward.1} parent=1 // pred_fallthru
      _
    // Predicated region
    $region34: #{bottleneck_forward.1} parent=1 // pred_check
      _
    $region35: #{bottleneck_forward.1} parent=1 // pred_check_branch
      %3126 = sbr.rel (0) target = $region37
    $region36: #{bottleneck_forward.1} parent=1 // pred_region
      %3128 = dma.done [#allocation4], 2048
    $region37: #{bottleneck_forward.1} parent=1 // pred_fallthru
      _
    %3129 = vsyncpa [#allocation4], 1

</llo_original>
